<compile_context>
chip_gen: v7x
topology: tpu7x:2x2x1
jax: 0.10.0
libtpu: 0.0.40
codegen_flags: <defaults>
</compile_context>

<pallas_src>
import functools

import numpy as np
import jax
import jax.numpy as jnp
from jax.experimental import pallas as pl
from jax.experimental.pallas import tpu as pltpu


_WING = 128   # left/right zero wing of the canvas (multiple of 128, >= 2*Wc+2)


# ----------------------------------------------------------------------------
# Kernel 1: 5x5 same-padding conv + bias + ReLU on flat-canvas slabs.
#   x_ref : (TB, Cin, L)        input canvases (zero ring + zero wings)
#   w_ref : (5, Cout, 5*Cin)    per-kh fused weights (resident)
#   b_ref : (Cout, 1)           bias (resident)
#   m_ref : (1, P_round)        1.0 on the valid HxW interior, 0.0 elsewhere
#   o_ref : (TB, Cout, L)       output canvases (next conv's input, no re-pad)
# Per sample: the P_round output lanes are processed in chunks of PC lanes;
# per chunk each kh row is ONE lane-offset slab load + 5 in-register kw slices
# concatenated along sublanes -> one K=5*Cin GEMM, accumulated in f32.
# ----------------------------------------------------------------------------
def conv5x5_relu_kernel(x_ref, w_ref, b_ref, m_ref, o_ref, *, wc, pad, p_r, pc, tb):
    cout = w_ref.shape[1]
    L = o_ref.shape[2]
    base0 = pad - 2 * wc - 2                      # lane offset of tap (kh=0, kw=0)
    zl = jnp.zeros((cout, pad), o_ref.dtype)      # hoisted wing constants
    zr = jnp.zeros((cout, L - pad - p_r), o_ref.dtype)
    for b in range(tb):                           # TB small (<=8), unrolled
        o_ref[b, :, 0:pad] = zl                   # left wing  (lane-aligned store)
        o_ref[b, :, pad + p_r:] = zr              # right wing (lane-aligned store)
        for c in range(p_r // pc):                # lane chunks of the output
            acc = None
            for kh in range(5):
                s0 = base0 + c * pc + kh * wc
                slab = x_ref[b, :, s0:s0 + pc + 4]            # one VMEM load
                xg = jnp.concatenate(
                    [slab[:, kw:kw + pc] for kw in range(5)], axis=0)  # (5*Cin, PC)
                d = jnp.dot(w_ref[kh], xg, preferred_element_type=jnp.float32)
                acc = d if acc is None else acc + d
            # fused bias + ReLU + ring/tail masking (keeps the zero ring exact)
            y = jnp.maximum(acc + b_ref[...], 0.0) * m_ref[:, c * pc:(c + 1) * pc]
            o_ref[b, :, pad + c * pc: pad + (c + 1) * pc] = y.astype(o_ref.dtype)


# ----------------------------------------------------------------------------
# Kernel 2: head = Linear(F,256) + ReLU + Linear(256, nclass_padded_to_128),
# batched over a batch tile (real MXU GEMMs, lane-dense logits output).
# ----------------------------------------------------------------------------
def head_kernel(x_ref, w1_ref, b1_ref, w2_ref, b2_ref, logits_ref):
    h = jnp.dot(x_ref[...], w1_ref[...],
                preferred_element_type=jnp.float32) + b1_ref[...]
    hr = jnp.maximum(h, 0.0).astype(w2_ref.dtype)
    logits_ref[...] = jnp.dot(hr, w2_ref[...],
                              preferred_element_type=jnp.float32) + b2_ref[...]


def head_kernel_with_hidden(x_ref, w1_ref, b1_ref, w2_ref, b2_ref,
                            logits_ref, hpre_ref):
    h = jnp.dot(x_ref[...], w1_ref[...],
                preferred_element_type=jnp.float32) + b1_ref[...]
    hpre_ref[...] = h
    hr = jnp.maximum(h, 0.0).astype(w2_ref.dtype)
    logits_ref[...] = jnp.dot(hr, w2_ref[...],
                              preferred_element_type=jnp.float32) + b2_ref[...]


# ----------------------------------------------------------------------------
# JAX glue
# ----------------------------------------------------------------------------
def _geometry(H, W, pc):
    """Canvas geometry: Wc, P (real canvas lanes), P_round (accum width), L."""
    Hc, Wc = H + 4, W + 4
    P = Hc * Wc
    assert 2 * Wc + 2 <= _WING, "image too wide for the fixed canvas wing"
    p_r = ((P + pc - 1) // pc) * pc
    L = _WING + p_r + _WING
    return Wc, P, p_r, L


def _valid_mask(H, W, p_r):
    """(1, P_round) f32: 1.0 on the HxW interior, 0.0 on ring / round-up tail."""
    Hc, Wc = H + 4, W + 4
    P = Hc * Wc
    idx = np.arange(p_r)
    r = idx // Wc
    c = idx % Wc
    valid = (idx < P) & (r >= 2) & (r < 2 + H) & (c >= 2) & (c < 2 + W)
    return jnp.asarray(valid.astype(np.float32)).reshape(1, p_r)


def _to_canvas(x_nchw, L, dtype):
    """(N,C,H,W) -> (N,Cp,L) flat canvas: zero 2-ring, zero wings, C padded to 8."""
    N, C, H, W = x_nchw.shape
    Cp = ((C + 7) // 8) * 8
    P = (H + 4) * (W + 4)
    xc = jnp.pad(x_nchw, ((0, 0), (0, Cp - C), (2, 2), (2, 2)))
    flat = xc.reshape(N, Cp, P)
    return jnp.pad(flat, ((0, 0), (0, 0), (_WING, L - _WING - P))).astype(dtype)


def conv5x5_relu(canvas, w_torch, b, *, wc, p_r, pc, tb, mask, compute_dtype):
    """Conv2d(Cin,Cout,5,padding=2)+ReLU, canvas-in / canvas-out."""
    Np, cin, L = canvas.shape
    cout = w_torch.shape[0]
    if w_torch.shape[1] != cin:                     # conv1: Cin zero-padded 3->8
        w_torch = jnp.pad(w_torch,
                          ((0, 0), (0, cin - w_torch.shape[1]), (0, 0), (0, 0)))
    # w[kh, o, kw*Cin + ci] = w_torch[o, ci, kh, kw]   (matches in-kernel concat)
    wk = jnp.transpose(w_torch, (2, 0, 3, 1)).reshape(5, cout, 5 * cin)
    wk = wk.astype(compute_dtype)
    bb = b.reshape(cout, 1).astype(jnp.float32)
    kernel = functools.partial(conv5x5_relu_kernel,
                               wc=wc, pad=_WING, p_r=p_r, pc=pc, tb=tb)
    return pl.pallas_call(
        kernel,
        out_shape=jax.ShapeDtypeStruct((Np, cout, L), compute_dtype),
        grid=(Np // tb,),
        in_specs=[
            pl.BlockSpec((tb, cin, L), lambda n: (n, 0, 0)),
            pl.BlockSpec((5, cout, 5 * cin), lambda n: (0, 0, 0)),   # resident
            pl.BlockSpec((cout, 1), lambda n: (0, 0)),               # resident
            pl.BlockSpec((1, p_r), lambda n: (0, 0)),                # resident
        ],
        out_specs=pl.BlockSpec((tb, cout, L), lambda n: (n, 0, 0)),
        compiler_params=pltpu.CompilerParams(
            dimension_semantics=("parallel",)),
    )(canvas, wk, bb, mask)


def _pool2_flatten(canvas, H, W):
    """MaxPool2d(2) + Flatten from the canvas; NCHW flatten order (== torch).
    Stays as tiny XLA glue by design (saves <0.2us of traffic at these sizes)."""
    Np, C, L = canvas.shape
    Hc, Wc = H + 4, W + 4
    y = canvas[:, :, _WING:_WING + Hc * Wc].reshape(Np, C, Hc, Wc)
    y = y[:, :, 2:2 + H, 2:2 + W]
    p = jnp.maximum(jnp.maximum(y[:, :, 0::2, 0::2], y[:, :, 0::2, 1::2]),
                    jnp.maximum(y[:, :, 1::2, 0::2], y[:, :, 1::2, 1::2]))
    return p.reshape(Np, -1)


def head(flat, w1, b1, w2, b2, compute_dtype, want_hidden):
    """Batched Linear(F,256)+ReLU+Linear(256,nclass); logits lane-padded to 128."""
    N, F = flat.shape
    Hd = w1.shape[1]
    nclass = w2.shape[1]
    CP = 128                                       # lane-dense logits width
    if N <= 256:
        TB, Np = N, N                              # whole batch per block
    else:
        TB = 256
        Np = ((N + TB - 1) // TB) * TB
    x = flat.astype(compute_dtype)
    if Np != N:
        x = jnp.pad(x, ((0, Np - N), (0, 0)))
    w2p = jnp.pad(w2.astype(compute_dtype), ((0, 0), (0, CP - nclass)))
    b2p = jnp.pad(b2.astype(jnp.float32), (0, CP - nclass)).reshape(1, CP)
    args = (x, w1.astype(compute_dtype),
            b1.reshape(1, Hd).astype(jnp.float32), w2p, b2p)
    in_specs = [
        pl.BlockSpec((TB, F), lambda i: (i, 0)),
        pl.BlockSpec((F, Hd), lambda i: (0, 0)),    # resident (one DMA)
        pl.BlockSpec((1, Hd), lambda i: (0, 0)),
        pl.BlockSpec((Hd, CP), lambda i: (0, 0)),
        pl.BlockSpec((1, CP), lambda i: (0, 0)),
    ]
    cp = pltpu.CompilerParams(dimension_semantics=("parallel",))
    if want_hidden:
        logits, hpre = pl.pallas_call(
            head_kernel_with_hidden,
            out_shape=(jax.ShapeDtypeStruct((Np, CP), jnp.float32),
                       jax.ShapeDtypeStruct((Np, Hd), jnp.float32)),
            grid=(Np // TB,),
            in_specs=in_specs,
            out_specs=(pl.BlockSpec((TB, CP), lambda i: (i, 0)),
                       pl.BlockSpec((TB, Hd), lambda i: (i, 0))),
            compiler_params=cp,
        )(*args)
        return logits[:N, :nclass], hpre[:N]
    logits = pl.pallas_call(
        head_kernel,
        out_shape=jax.ShapeDtypeStruct((Np, CP), jnp.float32),
        grid=(Np // TB,),
        in_specs=in_specs,
        out_specs=pl.BlockSpec((TB, CP), lambda i: (i, 0)),
        compiler_params=cp,
    )(*args)
    return logits[:N, :nclass]


# ----------------------------------------------------------------------------
# Full forward (mirrors ConvNetTorch.forward, incl. activations / worelu paths)
# ----------------------------------------------------------------------------
def convnet_forward(params, x_nchw, activations=False, worelu=False,
                    compute_dtype=jnp.bfloat16):
    N, _, H, W = x_nchw.shape
    pc = 512 if jnp.dtype(compute_dtype) == jnp.dtype(jnp.bfloat16) else 256
    wc, P, p_r, L = _geometry(H, W, pc)
    mask = _valid_mask(H, W, p_r)

    # >=2 grid steps so both v7x TensorCores get work; <=8 samples per block.
    tb = max(1, min(8, N // 2))
    Np = ((N + tb - 1) // tb) * tb

    xc = _to_canvas(x_nchw.astype(jnp.float32), L, compute_dtype)
    if Np != N:
        xc = jnp.pad(xc, ((0, Np - N), (0, 0), (0, 0)))

    y1 = conv5x5_relu(xc, params["w_conv1"], params["b_conv1"],
                      wc=wc, p_r=p_r, pc=pc, tb=tb, mask=mask,
                      compute_dtype=compute_dtype)                   # layers 0,1
    y2 = conv5x5_relu(y1, params["w_conv2"], params["b_conv2"],
                      wc=wc, p_r=p_r, pc=pc, tb=tb, mask=mask,
                      compute_dtype=compute_dtype)                   # layers 2,3
    flat = _pool2_flatten(y2, H, W)[:N]                              # layers 4,5

    if not activations:
        return head(flat, params["w1"], params["b1"], params["w2"], params["b2"],
                    compute_dtype, want_hidden=False)                # layers 6..8
    logits, hpre = head(flat, params["w1"], params["b1"], params["w2"],
                        params["b2"], compute_dtype, want_hidden=True)
    outs = {5: flat.astype(jnp.float32),                             # Flatten out
            7: hpre if worelu else jnp.maximum(hpre, 0.0)}           # Linear1 pre/post ReLU
    return logits, outs


# ----------------------------------------------------------------------------
# Deterministic parameter init (torch-default-style uniform bounds) + reference
# ----------------------------------------------------------------------------
def init_params(key, nin=3, base=16, nclass=10):
    flen = 14 * 14 if nin == 1 else 16 * 16
    F = base * flen
    hid = 256
    ks = jax.random.split(key, 8)

    def u(k, shape, fan_in):
        bound = 1.0 / jnp.sqrt(jnp.float32(fan_in))
        return jax.random.uniform(k, shape, jnp.float32, -bound, bound)

    return {
        "w_conv1": u(ks[0], (base, nin, 5, 5), nin * 25),
        "b_conv1": u(ks[1], (base,), nin * 25),
        "w_conv2": u(ks[2], (base, base, 5, 5), base * 25),
        "b_conv2": u(ks[3], (base,), base * 25),
        "w1": u(ks[4], (F, hid), F),        # == torch Linear(F,hid).weight.T
        "b1": u(ks[5], (hid,), F),
        "w2": u(ks[6], (hid, nclass), hid),
        "b2": u(ks[7], (nclass,), hid),
    }


def reference_forward(params, x):
    """Pure-XLA reference of the same forward (f32)."""
    dn = ("NCHW", "OIHW", "NCHW")
    y = jax.lax.conv_general_dilated(x, params["w_conv1"], (1, 1),
                                     ((2, 2), (2, 2)), dimension_numbers=dn)
    y = jnp.maximum(y + params["b_conv1"][None, :, None, None], 0.0)
    y = jax.lax.conv_general_dilated(y, params["w_conv2"], (1, 1),
                                     ((2, 2), (2, 2)), dimension_numbers=dn)
    y = jnp.maximum(y + params["b_conv2"][None, :, None, None], 0.0)
    y = jnp.maximum(jnp.maximum(y[:, :, 0::2, 0::2], y[:, :, 0::2, 1::2]),
                    jnp.maximum(y[:, :, 1::2, 0::2], y[:, :, 1::2, 1::2]))
    flat = y.reshape(y.shape[0], -1)
    h = jnp.maximum(flat @ params["w1"] + params["b1"], 0.0)
    return h @ params["w2"] + params["b2"]


if __name__ == "__main__":
    key = jax.random.PRNGKey(0)
    kp, kx = jax.random.split(key)
    params = init_params(kp, nin=3, base=16, nclass=10)

    # nin=3 => flen=16*16 after MaxPool2d(2), so spatial input is 32x32.
    x = jax.random.normal(kx, (2, 3, 32, 32), jnp.float32)

    # Numerical self-check of the kernels against the pure-XLA reference.
    ref = reference_forward(params, x)
    scale = float(jnp.max(jnp.abs(ref)))
    got_f32 = convnet_forward(params, x, compute_dtype=jnp.float32)
    jax.block_until_ready(got_f32)
    err_f32 = float(jnp.max(jnp.abs(got_f32 - ref)))
    assert err_f32 <= 0.05 * scale + 5e-4, (err_f32, scale)

    # Performance path: bf16 MXU operands, f32 accumulation.
    fwd = jax.jit(functools.partial(convnet_forward, params))
    logits = fwd(x)
    jax.block_until_ready(logits)
    assert logits.shape == (2, 10) and logits.dtype == jnp.float32
    err_bf16 = float(jnp.max(jnp.abs(logits - ref)))
    assert err_bf16 <= 0.12 * scale + 1e-3, (err_bf16, scale)

    # activations=True / worelu paths (head variant with the extra hidden output)
    logits2, outs = convnet_forward(params, x, activations=True, worelu=False)
    jax.block_until_ready((logits2, outs))
    assert outs[5].shape == (2, 16 * 16 * 16) and outs[7].shape == (2, 256)
    logits3, outs3 = convnet_forward(params, x, activations=True, worelu=True)
    jax.block_until_ready((logits3, outs3))

    print("KERNEL_OK")
</pallas_src>

<mosaic_0001>
module attributes {stable_mosaic.version = 11 : i64} {
  func.func @conv5x5_relu_kernel(%arg0: i32, %arg1: memref<1x8x1792xf32, #tpu.memory_space<vmem>>, %arg2: memref<5x16x40xf32, #tpu.memory_space<vmem>>, %arg3: memref<16x1xf32, #tpu.memory_space<vmem>>, %arg4: memref<1x1536xf32, #tpu.memory_space<vmem>>, %arg5: memref<1x16x1792xf32, #tpu.memory_space<vmem>>) attributes {dimension_semantics = [#tpu.dimension_semantics<parallel>], iteration_bounds = array<i64: 2>, scalar_prefetch = 0 : i64, scratch_operands = 0 : i64, tpu.core_type = #tpu.core_type<tc>, window_params = [{transform_indices = @transform_0, window_bounds = array<i64: 1, 8, 1792>}, {pipeline_mode = #tpu.pipeline_mode<synchronous>, transform_indices = @transform_1, window_bounds = array<i64: 5, 16, 40>}, {pipeline_mode = #tpu.pipeline_mode<synchronous>, transform_indices = @transform_2, window_bounds = array<i64: 16, 1>}, {pipeline_mode = #tpu.pipeline_mode<synchronous>, transform_indices = @transform_3, window_bounds = array<i64: 1, 1536>}, {transform_indices = @transform_4, window_bounds = array<i64: 1, 16, 1792>}]} {
    %cst = arith.constant 0.000000e+00 : f32
    %0 = vector.broadcast %cst : f32 to vector<16x128xf32>
    %cst_0 = arith.constant 0.000000e+00 : f32
    %1 = vector.broadcast %cst_0 : f32 to vector<16x128xf32>
    %c0 = arith.constant 0 : index
    %c0_1 = arith.constant 0 : index
    %c0_2 = arith.constant 0 : index
    %2 = vector.load %arg5[%c0, %c0_1, %c0_2] : memref<1x16x1792xf32, #tpu.memory_space<vmem>>, vector<1x16x128xf32>
    %3 = vector.shape_cast %2 : vector<1x16x128xf32> to vector<16x128xf32>
    %4 = vector.shape_cast %0 : vector<16x128xf32> to vector<1x16x128xf32>
    tpu.vector_store %arg5[%c0, %c0_1, %c0_2], %4 {strides = array<i32>} : memref<1x16x1792xf32, #tpu.memory_space<vmem>>, vector<1x16x128xf32>,
    %c0_3 = arith.constant 0 : index
    %c0_4 = arith.constant 0 : index
    %c1664 = arith.constant 1664 : index
    %5 = vector.load %arg5[%c0_3, %c0_4, %c1664] : memref<1x16x1792xf32, #tpu.memory_space<vmem>>, vector<1x16x128xf32>
    %6 = vector.shape_cast %5 : vector<1x16x128xf32> to vector<16x128xf32>
    %7 = vector.shape_cast %1 : vector<16x128xf32> to vector<1x16x128xf32>
    tpu.vector_store %arg5[%c0_3, %c0_4, %c1664], %7 {strides = array<i32>} : memref<1x16x1792xf32, #tpu.memory_space<vmem>>, vector<1x16x128xf32>,
    %c0_5 = arith.constant 0 : index
    %c0_6 = arith.constant 0 : index
    %c54 = arith.constant 54 : index
    %8 = vector.load %arg1[%c0_5, %c0_6, %c54] : memref<1x8x1792xf32, #tpu.memory_space<vmem>>, vector<1x8x260xf32>
    %9 = vector.shape_cast %8 : vector<1x8x260xf32> to vector<8x260xf32>
    %10 = vector.extract_strided_slice %9 {offsets = [0, 0], sizes = [8, 256], strides = [1, 1]} : vector<8x260xf32> to vector<8x256xf32>
    %11 = vector.extract_strided_slice %9 {offsets = [0, 1], sizes = [8, 256], strides = [1, 1]} : vector<8x260xf32> to vector<8x256xf32>
    %12 = vector.extract_strided_slice %9 {offsets = [0, 2], sizes = [8, 256], strides = [1, 1]} : vector<8x260xf32> to vector<8x256xf32>
    %13 = vector.extract_strided_slice %9 {offsets = [0, 3], sizes = [8, 256], strides = [1, 1]} : vector<8x260xf32> to vector<8x256xf32>
    %14 = vector.extract_strided_slice %9 {offsets = [0, 4], sizes = [8, 256], strides = [1, 1]} : vector<8x260xf32> to vector<8x256xf32>
    %15 = tpu.concatenate %10, %11, %12, %13, %14 in 0 : vector<8x256xf32>, vector<8x256xf32>, vector<8x256xf32>, vector<8x256xf32>, vector<8x256xf32> -> vector<40x256xf32>
    %c0_7 = arith.constant 0 : index
    %c0_8 = arith.constant 0 : index
    %c0_9 = arith.constant 0 : index
    %16 = vector.load %arg2[%c0_7, %c0_8, %c0_9] : memref<5x16x40xf32, #tpu.memory_space<vmem>>, vector<1x16x40xf32>
    %17 = vector.shape_cast %16 : vector<1x16x40xf32> to vector<16x40xf32>
    %cst_10 = arith.constant dense<0.000000e+00> : vector<16x256xf32>
    %18 = tpu.matmul %17, %15, %cst_10 {dimension_numbers = #tpu.dot_dimension_numbers<[1], [0], [0], [1], [0, 0, 1, 1], [], []>} : vector<16x40xf32>, vector<40x256xf32>, vector<16x256xf32> -> vector<16x256xf32>
    %c0_11 = arith.constant 0 : index
    %c0_12 = arith.constant 0 : index
    %c90 = arith.constant 90 : index
    %19 = vector.load %arg1[%c0_11, %c0_12, %c90] : memref<1x8x1792xf32, #tpu.memory_space<vmem>>, vector<1x8x260xf32>
    %20 = vector.shape_cast %19 : vector<1x8x260xf32> to vector<8x260xf32>
    %21 = vector.extract_strided_slice %20 {offsets = [0, 0], sizes = [8, 256], strides = [1, 1]} : vector<8x260xf32> to vector<8x256xf32>
    %22 = vector.extract_strided_slice %20 {offsets = [0, 1], sizes = [8, 256], strides = [1, 1]} : vector<8x260xf32> to vector<8x256xf32>
    %23 = vector.extract_strided_slice %20 {offsets = [0, 2], sizes = [8, 256], strides = [1, 1]} : vector<8x260xf32> to vector<8x256xf32>
    %24 = vector.extract_strided_slice %20 {offsets = [0, 3], sizes = [8, 256], strides = [1, 1]} : vector<8x260xf32> to vector<8x256xf32>
    %25 = vector.extract_strided_slice %20 {offsets = [0, 4], sizes = [8, 256], strides = [1, 1]} : vector<8x260xf32> to vector<8x256xf32>
    %26 = tpu.concatenate %21, %22, %23, %24, %25 in 0 : vector<8x256xf32>, vector<8x256xf32>, vector<8x256xf32>, vector<8x256xf32>, vector<8x256xf32> -> vector<40x256xf32>
    %c1 = arith.constant 1 : index
    %c0_13 = arith.constant 0 : index
    %c0_14 = arith.constant 0 : index
    %27 = vector.load %arg2[%c1, %c0_13, %c0_14] : memref<5x16x40xf32, #tpu.memory_space<vmem>>, vector<1x16x40xf32>
    %28 = vector.shape_cast %27 : vector<1x16x40xf32> to vector<16x40xf32>
    %cst_15 = arith.constant dense<0.000000e+00> : vector<16x256xf32>
    %29 = tpu.matmul %28, %26, %cst_15 {dimension_numbers = #tpu.dot_dimension_numbers<[1], [0], [0], [1], [0, 0, 1, 1], [], []>} : vector<16x40xf32>, vector<40x256xf32>, vector<16x256xf32> -> vector<16x256xf32>
    %30 = arith.addf %18, %29 : vector<16x256xf32>
    %c0_16 = arith.constant 0 : index
    %c0_17 = arith.constant 0 : index
    %c126 = arith.constant 126 : index
    %31 = vector.load %arg1[%c0_16, %c0_17, %c126] : memref<1x8x1792xf32, #tpu.memory_space<vmem>>, vector<1x8x260xf32>
    %32 = vector.shape_cast %31 : vector<1x8x260xf32> to vector<8x260xf32>
    %33 = vector.extract_strided_slice %32 {offsets = [0, 0], sizes = [8, 256], strides = [1, 1]} : vector<8x260xf32> to vector<8x256xf32>
    %34 = vector.extract_strided_slice %32 {offsets = [0, 1], sizes = [8, 256], strides = [1, 1]} : vector<8x260xf32> to vector<8x256xf32>
    %35 = vector.extract_strided_slice %32 {offsets = [0, 2], sizes = [8, 256], strides = [1, 1]} : vector<8x260xf32> to vector<8x256xf32>
    %36 = vector.extract_strided_slice %32 {offsets = [0, 3], sizes = [8, 256], strides = [1, 1]} : vector<8x260xf32> to vector<8x256xf32>
    %37 = vector.extract_strided_slice %32 {offsets = [0, 4], sizes = [8, 256], strides = [1, 1]} : vector<8x260xf32> to vector<8x256xf32>
    %38 = tpu.concatenate %33, %34, %35, %36, %37 in 0 : vector<8x256xf32>, vector<8x256xf32>, vector<8x256xf32>, vector<8x256xf32>, vector<8x256xf32> -> vector<40x256xf32>
    %c2 = arith.constant 2 : index
    %c0_18 = arith.constant 0 : index
    %c0_19 = arith.constant 0 : index
    %39 = vector.load %arg2[%c2, %c0_18, %c0_19] : memref<5x16x40xf32, #tpu.memory_space<vmem>>, vector<1x16x40xf32>
    %40 = vector.shape_cast %39 : vector<1x16x40xf32> to vector<16x40xf32>
    %cst_20 = arith.constant dense<0.000000e+00> : vector<16x256xf32>
    %41 = tpu.matmul %40, %38, %cst_20 {dimension_numbers = #tpu.dot_dimension_numbers<[1], [0], [0], [1], [0, 0, 1, 1], [], []>} : vector<16x40xf32>, vector<40x256xf32>, vector<16x256xf32> -> vector<16x256xf32>
    %42 = arith.addf %30, %41 : vector<16x256xf32>
    %c0_21 = arith.constant 0 : index
    %c0_22 = arith.constant 0 : index
    %c162 = arith.constant 162 : index
    %43 = vector.load %arg1[%c0_21, %c0_22, %c162] : memref<1x8x1792xf32, #tpu.memory_space<vmem>>, vector<1x8x260xf32>
    %44 = vector.shape_cast %43 : vector<1x8x260xf32> to vector<8x260xf32>
    %45 = vector.extract_strided_slice %44 {offsets = [0, 0], sizes = [8, 256], strides = [1, 1]} : vector<8x260xf32> to vector<8x256xf32>
    %46 = vector.extract_strided_slice %44 {offsets = [0, 1], sizes = [8, 256], strides = [1, 1]} : vector<8x260xf32> to vector<8x256xf32>
    %47 = vector.extract_strided_slice %44 {offsets = [0, 2], sizes = [8, 256], strides = [1, 1]} : vector<8x260xf32> to vector<8x256xf32>
    %48 = vector.extract_strided_slice %44 {offsets = [0, 3], sizes = [8, 256], strides = [1, 1]} : vector<8x260xf32> to vector<8x256xf32>
    %49 = vector.extract_strided_slice %44 {offsets = [0, 4], sizes = [8, 256], strides = [1, 1]} : vector<8x260xf32> to vector<8x256xf32>
    %50 = tpu.concatenate %45, %46, %47, %48, %49 in 0 : vector<8x256xf32>, vector<8x256xf32>, vector<8x256xf32>, vector<8x256xf32>, vector<8x256xf32> -> vector<40x256xf32>
    %c3 = arith.constant 3 : index
    %c0_23 = arith.constant 0 : index
    %c0_24 = arith.constant 0 : index
    %51 = vector.load %arg2[%c3, %c0_23, %c0_24] : memref<5x16x40xf32, #tpu.memory_space<vmem>>, vector<1x16x40xf32>
    %52 = vector.shape_cast %51 : vector<1x16x40xf32> to vector<16x40xf32>
    %cst_25 = arith.constant dense<0.000000e+00> : vector<16x256xf32>
    %53 = tpu.matmul %52, %50, %cst_25 {dimension_numbers = #tpu.dot_dimension_numbers<[1], [0], [0], [1], [0, 0, 1, 1], [], []>} : vector<16x40xf32>, vector<40x256xf32>, vector<16x256xf32> -> vector<16x256xf32>
    %54 = arith.addf %42, %53 : vector<16x256xf32>
    %c0_26 = arith.constant 0 : index
    %c0_27 = arith.constant 0 : index
    %c198 = arith.constant 198 : index
    %55 = vector.load %arg1[%c0_26, %c0_27, %c198] : memref<1x8x1792xf32, #tpu.memory_space<vmem>>, vector<1x8x260xf32>
    %56 = vector.shape_cast %55 : vector<1x8x260xf32> to vector<8x260xf32>
    %57 = vector.extract_strided_slice %56 {offsets = [0, 0], sizes = [8, 256], strides = [1, 1]} : vector<8x260xf32> to vector<8x256xf32>
    %58 = vector.extract_strided_slice %56 {offsets = [0, 1], sizes = [8, 256], strides = [1, 1]} : vector<8x260xf32> to vector<8x256xf32>
    %59 = vector.extract_strided_slice %56 {offsets = [0, 2], sizes = [8, 256], strides = [1, 1]} : vector<8x260xf32> to vector<8x256xf32>
    %60 = vector.extract_strided_slice %56 {offsets = [0, 3], sizes = [8, 256], strides = [1, 1]} : vector<8x260xf32> to vector<8x256xf32>
    %61 = vector.extract_strided_slice %56 {offsets = [0, 4], sizes = [8, 256], strides = [1, 1]} : vector<8x260xf32> to vector<8x256xf32>
    %62 = tpu.concatenate %57, %58, %59, %60, %61 in 0 : vector<8x256xf32>, vector<8x256xf32>, vector<8x256xf32>, vector<8x256xf32>, vector<8x256xf32> -> vector<40x256xf32>
    %c4 = arith.constant 4 : index
    %c0_28 = arith.constant 0 : index
    %c0_29 = arith.constant 0 : index
    %63 = vector.load %arg2[%c4, %c0_28, %c0_29] : memref<5x16x40xf32, #tpu.memory_space<vmem>>, vector<1x16x40xf32>
    %64 = vector.shape_cast %63 : vector<1x16x40xf32> to vector<16x40xf32>
    %cst_30 = arith.constant dense<0.000000e+00> : vector<16x256xf32>
    %65 = tpu.matmul %64, %62, %cst_30 {dimension_numbers = #tpu.dot_dimension_numbers<[1], [0], [0], [1], [0, 0, 1, 1], [], []>} : vector<16x40xf32>, vector<40x256xf32>, vector<16x256xf32> -> vector<16x256xf32>
    %66 = arith.addf %54, %65 : vector<16x256xf32>
    %c0_31 = arith.constant 0 : index
    %c0_32 = arith.constant 0 : index
    %67 = vector.load %arg3[%c0_31, %c0_32] : memref<16x1xf32, #tpu.memory_space<vmem>>, vector<16x1xf32>
    %68 = vector.broadcast %67 : vector<16x1xf32> to vector<16x256xf32>
    %69 = arith.addf %66, %68 : vector<16x256xf32>
    %cst_33 = arith.constant 0.000000e+00 : f32
    %70 = vector.broadcast %cst_33 : f32 to vector<16x256xf32>
    %71 = arith.maximumf %69, %70 : vector<16x256xf32>
    %c0_34 = arith.constant 0 : index
    %c0_35 = arith.constant 0 : index
    %72 = vector.load %arg4[%c0_34, %c0_35] : memref<1x1536xf32, #tpu.memory_space<vmem>>, vector<1x256xf32>
    %73 = vector.broadcast %72 : vector<1x256xf32> to vector<16x256xf32>
    %74 = arith.mulf %71, %73 : vector<16x256xf32>
    %c0_36 = arith.constant 0 : index
    %c0_37 = arith.constant 0 : index
    %c128 = arith.constant 128 : index
    %75 = vector.load %arg5[%c0_36, %c0_37, %c128] : memref<1x16x1792xf32, #tpu.memory_space<vmem>>, vector<1x16x256xf32>
    %76 = vector.shape_cast %75 : vector<1x16x256xf32> to vector<16x256xf32>
    %77 = vector.shape_cast %74 : vector<16x256xf32> to vector<1x16x256xf32>
    tpu.vector_store %arg5[%c0_36, %c0_37, %c128], %77 {strides = array<i32>} : memref<1x16x1792xf32, #tpu.memory_space<vmem>>, vector<1x16x256xf32>,
    %c0_38 = arith.constant 0 : index
    %c0_39 = arith.constant 0 : index
    %c310 = arith.constant 310 : index
    %78 = vector.load %arg1[%c0_38, %c0_39, %c310] : memref<1x8x1792xf32, #tpu.memory_space<vmem>>, vector<1x8x260xf32>
    %79 = vector.shape_cast %78 : vector<1x8x260xf32> to vector<8x260xf32>
    %80 = vector.extract_strided_slice %79 {offsets = [0, 0], sizes = [8, 256], strides = [1, 1]} : vector<8x260xf32> to vector<8x256xf32>
    %81 = vector.extract_strided_slice %79 {offsets = [0, 1], sizes = [8, 256], strides = [1, 1]} : vector<8x260xf32> to vector<8x256xf32>
    %82 = vector.extract_strided_slice %79 {offsets = [0, 2], sizes = [8, 256], strides = [1, 1]} : vector<8x260xf32> to vector<8x256xf32>
    %83 = vector.extract_strided_slice %79 {offsets = [0, 3], sizes = [8, 256], strides = [1, 1]} : vector<8x260xf32> to vector<8x256xf32>
    %84 = vector.extract_strided_slice %79 {offsets = [0, 4], sizes = [8, 256], strides = [1, 1]} : vector<8x260xf32> to vector<8x256xf32>
    %85 = tpu.concatenate %80, %81, %82, %83, %84 in 0 : vector<8x256xf32>, vector<8x256xf32>, vector<8x256xf32>, vector<8x256xf32>, vector<8x256xf32> -> vector<40x256xf32>
    %c0_40 = arith.constant 0 : index
    %c0_41 = arith.constant 0 : index
    %c0_42 = arith.constant 0 : index
    %86 = vector.load %arg2[%c0_40, %c0_41, %c0_42] : memref<5x16x40xf32, #tpu.memory_space<vmem>>, vector<1x16x40xf32>
    %87 = vector.shape_cast %86 : vector<1x16x40xf32> to vector<16x40xf32>
    %cst_43 = arith.constant dense<0.000000e+00> : vector<16x256xf32>
    %88 = tpu.matmul %87, %85, %cst_43 {dimension_numbers = #tpu.dot_dimension_numbers<[1], [0], [0], [1], [0, 0, 1, 1], [], []>} : vector<16x40xf32>, vector<40x256xf32>, vector<16x256xf32> -> vector<16x256xf32>
    %c0_44 = arith.constant 0 : index
    %c0_45 = arith.constant 0 : index
    %c346 = arith.constant 346 : index
    %89 = vector.load %arg1[%c0_44, %c0_45, %c346] : memref<1x8x1792xf32, #tpu.memory_space<vmem>>, vector<1x8x260xf32>
    %90 = vector.shape_cast %89 : vector<1x8x260xf32> to vector<8x260xf32>
    %91 = vector.extract_strided_slice %90 {offsets = [0, 0], sizes = [8, 256], strides = [1, 1]} : vector<8x260xf32> to vector<8x256xf32>
    %92 = vector.extract_strided_slice %90 {offsets = [0, 1], sizes = [8, 256], strides = [1, 1]} : vector<8x260xf32> to vector<8x256xf32>
    %93 = vector.extract_strided_slice %90 {offsets = [0, 2], sizes = [8, 256], strides = [1, 1]} : vector<8x260xf32> to vector<8x256xf32>
    %94 = vector.extract_strided_slice %90 {offsets = [0, 3], sizes = [8, 256], strides = [1, 1]} : vector<8x260xf32> to vector<8x256xf32>
    %95 = vector.extract_strided_slice %90 {offsets = [0, 4], sizes = [8, 256], strides = [1, 1]} : vector<8x260xf32> to vector<8x256xf32>
    %96 = tpu.concatenate %91, %92, %93, %94, %95 in 0 : vector<8x256xf32>, vector<8x256xf32>, vector<8x256xf32>, vector<8x256xf32>, vector<8x256xf32> -> vector<40x256xf32>
    %c1_46 = arith.constant 1 : index
    %c0_47 = arith.constant 0 : index
    %c0_48 = arith.constant 0 : index
    %97 = vector.load %arg2[%c1_46, %c0_47, %c0_48] : memref<5x16x40xf32, #tpu.memory_space<vmem>>, vector<1x16x40xf32>
    %98 = vector.shape_cast %97 : vector<1x16x40xf32> to vector<16x40xf32>
    %cst_49 = arith.constant dense<0.000000e+00> : vector<16x256xf32>
    %99 = tpu.matmul %98, %96, %cst_49 {dimension_numbers = #tpu.dot_dimension_numbers<[1], [0], [0], [1], [0, 0, 1, 1], [], []>} : vector<16x40xf32>, vector<40x256xf32>, vector<16x256xf32> -> vector<16x256xf32>
    %100 = arith.addf %88, %99 : vector<16x256xf32>
    %c0_50 = arith.constant 0 : index
    %c0_51 = arith.constant 0 : index
    %c382 = arith.constant 382 : index
    %101 = vector.load %arg1[%c0_50, %c0_51, %c382] : memref<1x8x1792xf32, #tpu.memory_space<vmem>>, vector<1x8x260xf32>
    %102 = vector.shape_cast %101 : vector<1x8x260xf32> to vector<8x260xf32>
    %103 = vector.extract_strided_slice %102 {offsets = [0, 0], sizes = [8, 256], strides = [1, 1]} : vector<8x260xf32> to vector<8x256xf32>
    %104 = vector.extract_strided_slice %102 {offsets = [0, 1], sizes = [8, 256], strides = [1, 1]} : vector<8x260xf32> to vector<8x256xf32>
    %105 = vector.extract_strided_slice %102 {offsets = [0, 2], sizes = [8, 256], strides = [1, 1]} : vector<8x260xf32> to vector<8x256xf32>
    %106 = vector.extract_strided_slice %102 {offsets = [0, 3], sizes = [8, 256], strides = [1, 1]} : vector<8x260xf32> to vector<8x256xf32>
    %107 = vector.extract_strided_slice %102 {offsets = [0, 4], sizes = [8, 256], strides = [1, 1]} : vector<8x260xf32> to vector<8x256xf32>
    %108 = tpu.concatenate %103, %104, %105, %106, %107 in 0 : vector<8x256xf32>, vector<8x256xf32>, vector<8x256xf32>, vector<8x256xf32>, vector<8x256xf32> -> vector<40x256xf32>
    %c2_52 = arith.constant 2 : index
    %c0_53 = arith.constant 0 : index
    %c0_54 = arith.constant 0 : index
    %109 = vector.load %arg2[%c2_52, %c0_53, %c0_54] : memref<5x16x40xf32, #tpu.memory_space<vmem>>, vector<1x16x40xf32>
    %110 = vector.shape_cast %109 : vector<1x16x40xf32> to vector<16x40xf32>
    %cst_55 = arith.constant dense<0.000000e+00> : vector<16x256xf32>
    %111 = tpu.matmul %110, %108, %cst_55 {dimension_numbers = #tpu.dot_dimension_numbers<[1], [0], [0], [1], [0, 0, 1, 1], [], []>} : vector<16x40xf32>, vector<40x256xf32>, vector<16x256xf32> -> vector<16x256xf32>
    %112 = arith.addf %100, %111 : vector<16x256xf32>
    %c0_56 = arith.constant 0 : index
    %c0_57 = arith.constant 0 : index
    %c418 = arith.constant 418 : index
    %113 = vector.load %arg1[%c0_56, %c0_57, %c418] : memref<1x8x1792xf32, #tpu.memory_space<vmem>>, vector<1x8x260xf32>
    %114 = vector.shape_cast %113 : vector<1x8x260xf32> to vector<8x260xf32>
    %115 = vector.extract_strided_slice %114 {offsets = [0, 0], sizes = [8, 256], strides = [1, 1]} : vector<8x260xf32> to vector<8x256xf32>
    %116 = vector.extract_strided_slice %114 {offsets = [0, 1], sizes = [8, 256], strides = [1, 1]} : vector<8x260xf32> to vector<8x256xf32>
    %117 = vector.extract_strided_slice %114 {offsets = [0, 2], sizes = [8, 256], strides = [1, 1]} : vector<8x260xf32> to vector<8x256xf32>
    %118 = vector.extract_strided_slice %114 {offsets = [0, 3], sizes = [8, 256], strides = [1, 1]} : vector<8x260xf32> to vector<8x256xf32>
    %119 = vector.extract_strided_slice %114 {offsets = [0, 4], sizes = [8, 256], strides = [1, 1]} : vector<8x260xf32> to vector<8x256xf32>
    %120 = tpu.concatenate %115, %116, %117, %118, %119 in 0 : vector<8x256xf32>, vector<8x256xf32>, vector<8x256xf32>, vector<8x256xf32>, vector<8x256xf32> -> vector<40x256xf32>
    %c3_58 = arith.constant 3 : index
    %c0_59 = arith.constant 0 : index
    %c0_60 = arith.constant 0 : index
    %121 = vector.load %arg2[%c3_58, %c0_59, %c0_60] : memref<5x16x40xf32, #tpu.memory_space<vmem>>, vector<1x16x40xf32>
    %122 = vector.shape_cast %121 : vector<1x16x40xf32> to vector<16x40xf32>
    %cst_61 = arith.constant dense<0.000000e+00> : vector<16x256xf32>
    %123 = tpu.matmul %122, %120, %cst_61 {dimension_numbers = #tpu.dot_dimension_numbers<[1], [0], [0], [1], [0, 0, 1, 1], [], []>} : vector<16x40xf32>, vector<40x256xf32>, vector<16x256xf32> -> vector<16x256xf32>
    %124 = arith.addf %112, %123 : vector<16x256xf32>
    %c0_62 = arith.constant 0 : index
    %c0_63 = arith.constant 0 : index
    %c454 = arith.constant 454 : index
    %125 = vector.load %arg1[%c0_62, %c0_63, %c454] : memref<1x8x1792xf32, #tpu.memory_space<vmem>>, vector<1x8x260xf32>
    %126 = vector.shape_cast %125 : vector<1x8x260xf32> to vector<8x260xf32>
    %127 = vector.extract_strided_slice %126 {offsets = [0, 0], sizes = [8, 256], strides = [1, 1]} : vector<8x260xf32> to vector<8x256xf32>
    %128 = vector.extract_strided_slice %126 {offsets = [0, 1], sizes = [8, 256], strides = [1, 1]} : vector<8x260xf32> to vector<8x256xf32>
    %129 = vector.extract_strided_slice %126 {offsets = [0, 2], sizes = [8, 256], strides = [1, 1]} : vector<8x260xf32> to vector<8x256xf32>
    %130 = vector.extract_strided_slice %126 {offsets = [0, 3], sizes = [8, 256], strides = [1, 1]} : vector<8x260xf32> to vector<8x256xf32>
    %131 = vector.extract_strided_slice %126 {offsets = [0, 4], sizes = [8, 256], strides = [1, 1]} : vector<8x260xf32> to vector<8x256xf32>
    %132 = tpu.concatenate %127, %128, %129, %130, %131 in 0 : vector<8x256xf32>, vector<8x256xf32>, vector<8x256xf32>, vector<8x256xf32>, vector<8x256xf32> -> vector<40x256xf32>
    %c4_64 = arith.constant 4 : index
    %c0_65 = arith.constant 0 : index
    %c0_66 = arith.constant 0 : index
    %133 = vector.load %arg2[%c4_64, %c0_65, %c0_66] : memref<5x16x40xf32, #tpu.memory_space<vmem>>, vector<1x16x40xf32>
    %134 = vector.shape_cast %133 : vector<1x16x40xf32> to vector<16x40xf32>
    %cst_67 = arith.constant dense<0.000000e+00> : vector<16x256xf32>
    %135 = tpu.matmul %134, %132, %cst_67 {dimension_numbers = #tpu.dot_dimension_numbers<[1], [0], [0], [1], [0, 0, 1, 1], [], []>} : vector<16x40xf32>, vector<40x256xf32>, vector<16x256xf32> -> vector<16x256xf32>
    %136 = arith.addf %124, %135 : vector<16x256xf32>
    %c0_68 = arith.constant 0 : index
    %c0_69 = arith.constant 0 : index
    %137 = vector.load %arg3[%c0_68, %c0_69] : memref<16x1xf32, #tpu.memory_space<vmem>>, vector<16x1xf32>
    %138 = vector.broadcast %137 : vector<16x1xf32> to vector<16x256xf32>
    %139 = arith.addf %136, %138 : vector<16x256xf32>
    %cst_70 = arith.constant 0.000000e+00 : f32
    %140 = vector.broadcast %cst_70 : f32 to vector<16x256xf32>
    %141 = arith.maximumf %139, %140 : vector<16x256xf32>
    %c0_71 = arith.constant 0 : index
    %c256 = arith.constant 256 : index
    %142 = vector.load %arg4[%c0_71, %c256] : memref<1x1536xf32, #tpu.memory_space<vmem>>, vector<1x256xf32>
    %143 = vector.broadcast %142 : vector<1x256xf32> to vector<16x256xf32>
    %144 = arith.mulf %141, %143 : vector<16x256xf32>
    %c0_72 = arith.constant 0 : index
    %c0_73 = arith.constant 0 : index
    %c384 = arith.constant 384 : index
    %145 = vector.load %arg5[%c0_72, %c0_73, %c384] : memref<1x16x1792xf32, #tpu.memory_space<vmem>>, vector<1x16x256xf32>
    %146 = vector.shape_cast %145 : vector<1x16x256xf32> to vector<16x256xf32>
    %147 = vector.shape_cast %144 : vector<16x256xf32> to vector<1x16x256xf32>
    tpu.vector_store %arg5[%c0_72, %c0_73, %c384], %147 {strides = array<i32>} : memref<1x16x1792xf32, #tpu.memory_space<vmem>>, vector<1x16x256xf32>,
    %c0_74 = arith.constant 0 : index
    %c0_75 = arith.constant 0 : index
    %c566 = arith.constant 566 : index
    %148 = vector.load %arg1[%c0_74, %c0_75, %c566] : memref<1x8x1792xf32, #tpu.memory_space<vmem>>, vector<1x8x260xf32>
    %149 = vector.shape_cast %148 : vector<1x8x260xf32> to vector<8x260xf32>
    %150 = vector.extract_strided_slice %149 {offsets = [0, 0], sizes = [8, 256], strides = [1, 1]} : vector<8x260xf32> to vector<8x256xf32>
    %151 = vector.extract_strided_slice %149 {offsets = [0, 1], sizes = [8, 256], strides = [1, 1]} : vector<8x260xf32> to vector<8x256xf32>
    %152 = vector.extract_strided_slice %149 {offsets = [0, 2], sizes = [8, 256], strides = [1, 1]} : vector<8x260xf32> to vector<8x256xf32>
    %153 = vector.extract_strided_slice %149 {offsets = [0, 3], sizes = [8, 256], strides = [1, 1]} : vector<8x260xf32> to vector<8x256xf32>
    %154 = vector.extract_strided_slice %149 {offsets = [0, 4], sizes = [8, 256], strides = [1, 1]} : vector<8x260xf32> to vector<8x256xf32>
    %155 = tpu.concatenate %150, %151, %152, %153, %154 in 0 : vector<8x256xf32>, vector<8x256xf32>, vector<8x256xf32>, vector<8x256xf32>, vector<8x256xf32> -> vector<40x256xf32>
    %c0_76 = arith.constant 0 : index
    %c0_77 = arith.constant 0 : index
    %c0_78 = arith.constant 0 : index
    %156 = vector.load %arg2[%c0_76, %c0_77, %c0_78] : memref<5x16x40xf32, #tpu.memory_space<vmem>>, vector<1x16x40xf32>
    %157 = vector.shape_cast %156 : vector<1x16x40xf32> to vector<16x40xf32>
    %cst_79 = arith.constant dense<0.000000e+00> : vector<16x256xf32>
    %158 = tpu.matmul %157, %155, %cst_79 {dimension_numbers = #tpu.dot_dimension_numbers<[1], [0], [0], [1], [0, 0, 1, 1], [], []>} : vector<16x40xf32>, vector<40x256xf32>, vector<16x256xf32> -> vector<16x256xf32>
    %c0_80 = arith.constant 0 : index
    %c0_81 = arith.constant 0 : index
    %c602 = arith.constant 602 : index
    %159 = vector.load %arg1[%c0_80, %c0_81, %c602] : memref<1x8x1792xf32, #tpu.memory_space<vmem>>, vector<1x8x260xf32>
    %160 = vector.shape_cast %159 : vector<1x8x260xf32> to vector<8x260xf32>
    %161 = vector.extract_strided_slice %160 {offsets = [0, 0], sizes = [8, 256], strides = [1, 1]} : vector<8x260xf32> to vector<8x256xf32>
    %162 = vector.extract_strided_slice %160 {offsets = [0, 1], sizes = [8, 256], strides = [1, 1]} : vector<8x260xf32> to vector<8x256xf32>
    %163 = vector.extract_strided_slice %160 {offsets = [0, 2], sizes = [8, 256], strides = [1, 1]} : vector<8x260xf32> to vector<8x256xf32>
    %164 = vector.extract_strided_slice %160 {offsets = [0, 3], sizes = [8, 256], strides = [1, 1]} : vector<8x260xf32> to vector<8x256xf32>
    %165 = vector.extract_strided_slice %160 {offsets = [0, 4], sizes = [8, 256], strides = [1, 1]} : vector<8x260xf32> to vector<8x256xf32>
    %166 = tpu.concatenate %161, %162, %163, %164, %165 in 0 : vector<8x256xf32>, vector<8x256xf32>, vector<8x256xf32>, vector<8x256xf32>, vector<8x256xf32> -> vector<40x256xf32>
    %c1_82 = arith.constant 1 : index
    %c0_83 = arith.constant 0 : index
    %c0_84 = arith.constant 0 : index
    %167 = vector.load %arg2[%c1_82, %c0_83, %c0_84] : memref<5x16x40xf32, #tpu.memory_space<vmem>>, vector<1x16x40xf32>
    %168 = vector.shape_cast %167 : vector<1x16x40xf32> to vector<16x40xf32>
    %cst_85 = arith.constant dense<0.000000e+00> : vector<16x256xf32>
    %169 = tpu.matmul %168, %166, %cst_85 {dimension_numbers = #tpu.dot_dimension_numbers<[1], [0], [0], [1], [0, 0, 1, 1], [], []>} : vector<16x40xf32>, vector<40x256xf32>, vector<16x256xf32> -> vector<16x256xf32>
    %170 = arith.addf %158, %169 : vector<16x256xf32>
    %c0_86 = arith.constant 0 : index
    %c0_87 = arith.constant 0 : index
    %c638 = arith.constant 638 : index
    %171 = vector.load %arg1[%c0_86, %c0_87, %c638] : memref<1x8x1792xf32, #tpu.memory_space<vmem>>, vector<1x8x260xf32>
    %172 = vector.shape_cast %171 : vector<1x8x260xf32> to vector<8x260xf32>
    %173 = vector.extract_strided_slice %172 {offsets = [0, 0], sizes = [8, 256], strides = [1, 1]} : vector<8x260xf32> to vector<8x256xf32>
    %174 = vector.extract_strided_slice %172 {offsets = [0, 1], sizes = [8, 256], strides = [1, 1]} : vector<8x260xf32> to vector<8x256xf32>
    %175 = vector.extract_strided_slice %172 {offsets = [0, 2], sizes = [8, 256], strides = [1, 1]} : vector<8x260xf32> to vector<8x256xf32>
    %176 = vector.extract_strided_slice %172 {offsets = [0, 3], sizes = [8, 256], strides = [1, 1]} : vector<8x260xf32> to vector<8x256xf32>
    %177 = vector.extract_strided_slice %172 {offsets = [0, 4], sizes = [8, 256], strides = [1, 1]} : vector<8x260xf32> to vector<8x256xf32>
    %178 = tpu.concatenate %173, %174, %175, %176, %177 in 0 : vector<8x256xf32>, vector<8x256xf32>, vector<8x256xf32>, vector<8x256xf32>, vector<8x256xf32> -> vector<40x256xf32>
    %c2_88 = arith.constant 2 : index
    %c0_89 = arith.constant 0 : index
    %c0_90 = arith.constant 0 : index
    %179 = vector.load %arg2[%c2_88, %c0_89, %c0_90] : memref<5x16x40xf32, #tpu.memory_space<vmem>>, vector<1x16x40xf32>
    %180 = vector.shape_cast %179 : vector<1x16x40xf32> to vector<16x40xf32>
    %cst_91 = arith.constant dense<0.000000e+00> : vector<16x256xf32>
    %181 = tpu.matmul %180, %178, %cst_91 {dimension_numbers = #tpu.dot_dimension_numbers<[1], [0], [0], [1], [0, 0, 1, 1], [], []>} : vector<16x40xf32>, vector<40x256xf32>, vector<16x256xf32> -> vector<16x256xf32>
    %182 = arith.addf %170, %181 : vector<16x256xf32>
    %c0_92 = arith.constant 0 : index
    %c0_93 = arith.constant 0 : index
    %c674 = arith.constant 674 : index
    %183 = vector.load %arg1[%c0_92, %c0_93, %c674] : memref<1x8x1792xf32, #tpu.memory_space<vmem>>, vector<1x8x260xf32>
    %184 = vector.shape_cast %183 : vector<1x8x260xf32> to vector<8x260xf32>
    %185 = vector.extract_strided_slice %184 {offsets = [0, 0], sizes = [8, 256], strides = [1, 1]} : vector<8x260xf32> to vector<8x256xf32>
    %186 = vector.extract_strided_slice %184 {offsets = [0, 1], sizes = [8, 256], strides = [1, 1]} : vector<8x260xf32> to vector<8x256xf32>
    %187 = vector.extract_strided_slice %184 {offsets = [0, 2], sizes = [8, 256], strides = [1, 1]} : vector<8x260xf32> to vector<8x256xf32>
    %188 = vector.extract_strided_slice %184 {offsets = [0, 3], sizes = [8, 256], strides = [1, 1]} : vector<8x260xf32> to vector<8x256xf32>
    %189 = vector.extract_strided_slice %184 {offsets = [0, 4], sizes = [8, 256], strides = [1, 1]} : vector<8x260xf32> to vector<8x256xf32>
    %190 = tpu.concatenate %185, %186, %187, %188, %189 in 0 : vector<8x256xf32>, vector<8x256xf32>, vector<8x256xf32>, vector<8x256xf32>, vector<8x256xf32> -> vector<40x256xf32>
    %c3_94 = arith.constant 3 : index
    %c0_95 = arith.constant 0 : index
    %c0_96 = arith.constant 0 : index
    %191 = vector.load %arg2[%c3_94, %c0_95, %c0_96] : memref<5x16x40xf32, #tpu.memory_space<vmem>>, vector<1x16x40xf32>
    %192 = vector.shape_cast %191 : vector<1x16x40xf32> to vector<16x40xf32>
    %cst_97 = arith.constant dense<0.000000e+00> : vector<16x256xf32>
    %193 = tpu.matmul %192, %190, %cst_97 {dimension_numbers = #tpu.dot_dimension_numbers<[1], [0], [0], [1], [0, 0, 1, 1], [], []>} : vector<16x40xf32>, vector<40x256xf32>, vector<16x256xf32> -> vector<16x256xf32>
    %194 = arith.addf %182, %193 : vector<16x256xf32>
    %c0_98 = arith.constant 0 : index
    %c0_99 = arith.constant 0 : index
    %c710 = arith.constant 710 : index
    %195 = vector.load %arg1[%c0_98, %c0_99, %c710] : memref<1x8x1792xf32, #tpu.memory_space<vmem>>, vector<1x8x260xf32>
    %196 = vector.shape_cast %195 : vector<1x8x260xf32> to vector<8x260xf32>
    %197 = vector.extract_strided_slice %196 {offsets = [0, 0], sizes = [8, 256], strides = [1, 1]} : vector<8x260xf32> to vector<8x256xf32>
    %198 = vector.extract_strided_slice %196 {offsets = [0, 1], sizes = [8, 256], strides = [1, 1]} : vector<8x260xf32> to vector<8x256xf32>
    %199 = vector.extract_strided_slice %196 {offsets = [0, 2], sizes = [8, 256], strides = [1, 1]} : vector<8x260xf32> to vector<8x256xf32>
    %200 = vector.extract_strided_slice %196 {offsets = [0, 3], sizes = [8, 256], strides = [1, 1]} : vector<8x260xf32> to vector<8x256xf32>
    %201 = vector.extract_strided_slice %196 {offsets = [0, 4], sizes = [8, 256], strides = [1, 1]} : vector<8x260xf32> to vector<8x256xf32>
    %202 = tpu.concatenate %197, %198, %199, %200, %201 in 0 : vector<8x256xf32>, vector<8x256xf32>, vector<8x256xf32>, vector<8x256xf32>, vector<8x256xf32> -> vector<40x256xf32>
    %c4_100 = arith.constant 4 : index
    %c0_101 = arith.constant 0 : index
    %c0_102 = arith.constant 0 : index
    %203 = vector.load %arg2[%c4_100, %c0_101, %c0_102] : memref<5x16x40xf32, #tpu.memory_space<vmem>>, vector<1x16x40xf32>
    %204 = vector.shape_cast %203 : vector<1x16x40xf32> to vector<16x40xf32>
    %cst_103 = arith.constant dense<0.000000e+00> : vector<16x256xf32>
    %205 = tpu.matmul %204, %202, %cst_103 {dimension_numbers = #tpu.dot_dimension_numbers<[1], [0], [0], [1], [0, 0, 1, 1], [], []>} : vector<16x40xf32>, vector<40x256xf32>, vector<16x256xf32> -> vector<16x256xf32>
    %206 = arith.addf %194, %205 : vector<16x256xf32>
    %c0_104 = arith.constant 0 : index
    %c0_105 = arith.constant 0 : index
    %207 = vector.load %arg3[%c0_104, %c0_105] : memref<16x1xf32, #tpu.memory_space<vmem>>, vector<16x1xf32>
    %208 = vector.broadcast %207 : vector<16x1xf32> to vector<16x256xf32>
    %209 = arith.addf %206, %208 : vector<16x256xf32>
    %cst_106 = arith.constant 0.000000e+00 : f32
    %210 = vector.broadcast %cst_106 : f32 to vector<16x256xf32>
    %211 = arith.maximumf %209, %210 : vector<16x256xf32>
    %c0_107 = arith.constant 0 : index
    %c512 = arith.constant 512 : index
    %212 = vector.load %arg4[%c0_107, %c512] : memref<1x1536xf32, #tpu.memory_space<vmem>>, vector<1x256xf32>
    %213 = vector.broadcast %212 : vector<1x256xf32> to vector<16x256xf32>
    %214 = arith.mulf %211, %213 : vector<16x256xf32>
    %c0_108 = arith.constant 0 : index
    %c0_109 = arith.constant 0 : index
    %c640 = arith.constant 640 : index
    %215 = vector.load %arg5[%c0_108, %c0_109, %c640] : memref<1x16x1792xf32, #tpu.memory_space<vmem>>, vector<1x16x256xf32>
    %216 = vector.shape_cast %215 : vector<1x16x256xf32> to vector<16x256xf32>
    %217 = vector.shape_cast %214 : vector<16x256xf32> to vector<1x16x256xf32>
    tpu.vector_store %arg5[%c0_108, %c0_109, %c640], %217 {strides = array<i32>} : memref<1x16x1792xf32, #tpu.memory_space<vmem>>, vector<1x16x256xf32>,
    %c0_110 = arith.constant 0 : index
    %c0_111 = arith.constant 0 : index
    %c822 = arith.constant 822 : index
    %218 = vector.load %arg1[%c0_110, %c0_111, %c822] : memref<1x8x1792xf32, #tpu.memory_space<vmem>>, vector<1x8x260xf32>
    %219 = vector.shape_cast %218 : vector<1x8x260xf32> to vector<8x260xf32>
    %220 = vector.extract_strided_slice %219 {offsets = [0, 0], sizes = [8, 256], strides = [1, 1]} : vector<8x260xf32> to vector<8x256xf32>
    %221 = vector.extract_strided_slice %219 {offsets = [0, 1], sizes = [8, 256], strides = [1, 1]} : vector<8x260xf32> to vector<8x256xf32>
    %222 = vector.extract_strided_slice %219 {offsets = [0, 2], sizes = [8, 256], strides = [1, 1]} : vector<8x260xf32> to vector<8x256xf32>
    %223 = vector.extract_strided_slice %219 {offsets = [0, 3], sizes = [8, 256], strides = [1, 1]} : vector<8x260xf32> to vector<8x256xf32>
    %224 = vector.extract_strided_slice %219 {offsets = [0, 4], sizes = [8, 256], strides = [1, 1]} : vector<8x260xf32> to vector<8x256xf32>
    %225 = tpu.concatenate %220, %221, %222, %223, %224 in 0 : vector<8x256xf32>, vector<8x256xf32>, vector<8x256xf32>, vector<8x256xf32>, vector<8x256xf32> -> vector<40x256xf32>
    %c0_112 = arith.constant 0 : index
    %c0_113 = arith.constant 0 : index
    %c0_114 = arith.constant 0 : index
    %226 = vector.load %arg2[%c0_112, %c0_113, %c0_114] : memref<5x16x40xf32, #tpu.memory_space<vmem>>, vector<1x16x40xf32>
    %227 = vector.shape_cast %226 : vector<1x16x40xf32> to vector<16x40xf32>
    %cst_115 = arith.constant dense<0.000000e+00> : vector<16x256xf32>
    %228 = tpu.matmul %227, %225, %cst_115 {dimension_numbers = #tpu.dot_dimension_numbers<[1], [0], [0], [1], [0, 0, 1, 1], [], []>} : vector<16x40xf32>, vector<40x256xf32>, vector<16x256xf32> -> vector<16x256xf32>
    %c0_116 = arith.constant 0 : index
    %c0_117 = arith.constant 0 : index
    %c858 = arith.constant 858 : index
    %229 = vector.load %arg1[%c0_116, %c0_117, %c858] : memref<1x8x1792xf32, #tpu.memory_space<vmem>>, vector<1x8x260xf32>
    %230 = vector.shape_cast %229 : vector<1x8x260xf32> to vector<8x260xf32>
    %231 = vector.extract_strided_slice %230 {offsets = [0, 0], sizes = [8, 256], strides = [1, 1]} : vector<8x260xf32> to vector<8x256xf32>
    %232 = vector.extract_strided_slice %230 {offsets = [0, 1], sizes = [8, 256], strides = [1, 1]} : vector<8x260xf32> to vector<8x256xf32>
    %233 = vector.extract_strided_slice %230 {offsets = [0, 2], sizes = [8, 256], strides = [1, 1]} : vector<8x260xf32> to vector<8x256xf32>
    %234 = vector.extract_strided_slice %230 {offsets = [0, 3], sizes = [8, 256], strides = [1, 1]} : vector<8x260xf32> to vector<8x256xf32>
    %235 = vector.extract_strided_slice %230 {offsets = [0, 4], sizes = [8, 256], strides = [1, 1]} : vector<8x260xf32> to vector<8x256xf32>
    %236 = tpu.concatenate %231, %232, %233, %234, %235 in 0 : vector<8x256xf32>, vector<8x256xf32>, vector<8x256xf32>, vector<8x256xf32>, vector<8x256xf32> -> vector<40x256xf32>
    %c1_118 = arith.constant 1 : index
    %c0_119 = arith.constant 0 : index
    %c0_120 = arith.constant 0 : index
    %237 = vector.load %arg2[%c1_118, %c0_119, %c0_120] : memref<5x16x40xf32, #tpu.memory_space<vmem>>, vector<1x16x40xf32>
    %238 = vector.shape_cast %237 : vector<1x16x40xf32> to vector<16x40xf32>
    %cst_121 = arith.constant dense<0.000000e+00> : vector<16x256xf32>
    %239 = tpu.matmul %238, %236, %cst_121 {dimension_numbers = #tpu.dot_dimension_numbers<[1], [0], [0], [1], [0, 0, 1, 1], [], []>} : vector<16x40xf32>, vector<40x256xf32>, vector<16x256xf32> -> vector<16x256xf32>
    %240 = arith.addf %228, %239 : vector<16x256xf32>
    %c0_122 = arith.constant 0 : index
    %c0_123 = arith.constant 0 : index
    %c894 = arith.constant 894 : index
    %241 = vector.load %arg1[%c0_122, %c0_123, %c894] : memref<1x8x1792xf32, #tpu.memory_space<vmem>>, vector<1x8x260xf32>
    %242 = vector.shape_cast %241 : vector<1x8x260xf32> to vector<8x260xf32>
    %243 = vector.extract_strided_slice %242 {offsets = [0, 0], sizes = [8, 256], strides = [1, 1]} : vector<8x260xf32> to vector<8x256xf32>
    %244 = vector.extract_strided_slice %242 {offsets = [0, 1], sizes = [8, 256], strides = [1, 1]} : vector<8x260xf32> to vector<8x256xf32>
    %245 = vector.extract_strided_slice %242 {offsets = [0, 2], sizes = [8, 256], strides = [1, 1]} : vector<8x260xf32> to vector<8x256xf32>
    %246 = vector.extract_strided_slice %242 {offsets = [0, 3], sizes = [8, 256], strides = [1, 1]} : vector<8x260xf32> to vector<8x256xf32>
    %247 = vector.extract_strided_slice %242 {offsets = [0, 4], sizes = [8, 256], strides = [1, 1]} : vector<8x260xf32> to vector<8x256xf32>
    %248 = tpu.concatenate %243, %244, %245, %246, %247 in 0 : vector<8x256xf32>, vector<8x256xf32>, vector<8x256xf32>, vector<8x256xf32>, vector<8x256xf32> -> vector<40x256xf32>
    %c2_124 = arith.constant 2 : index
    %c0_125 = arith.constant 0 : index
    %c0_126 = arith.constant 0 : index
    %249 = vector.load %arg2[%c2_124, %c0_125, %c0_126] : memref<5x16x40xf32, #tpu.memory_space<vmem>>, vector<1x16x40xf32>
    %250 = vector.shape_cast %249 : vector<1x16x40xf32> to vector<16x40xf32>
    %cst_127 = arith.constant dense<0.000000e+00> : vector<16x256xf32>
    %251 = tpu.matmul %250, %248, %cst_127 {dimension_numbers = #tpu.dot_dimension_numbers<[1], [0], [0], [1], [0, 0, 1, 1], [], []>} : vector<16x40xf32>, vector<40x256xf32>, vector<16x256xf32> -> vector<16x256xf32>
    %252 = arith.addf %240, %251 : vector<16x256xf32>
    %c0_128 = arith.constant 0 : index
    %c0_129 = arith.constant 0 : index
    %c930 = arith.constant 930 : index
    %253 = vector.load %arg1[%c0_128, %c0_129, %c930] : memref<1x8x1792xf32, #tpu.memory_space<vmem>>, vector<1x8x260xf32>
    %254 = vector.shape_cast %253 : vector<1x8x260xf32> to vector<8x260xf32>
    %255 = vector.extract_strided_slice %254 {offsets = [0, 0], sizes = [8, 256], strides = [1, 1]} : vector<8x260xf32> to vector<8x256xf32>
    %256 = vector.extract_strided_slice %254 {offsets = [0, 1], sizes = [8, 256], strides = [1, 1]} : vector<8x260xf32> to vector<8x256xf32>
    %257 = vector.extract_strided_slice %254 {offsets = [0, 2], sizes = [8, 256], strides = [1, 1]} : vector<8x260xf32> to vector<8x256xf32>
    %258 = vector.extract_strided_slice %254 {offsets = [0, 3], sizes = [8, 256], strides = [1, 1]} : vector<8x260xf32> to vector<8x256xf32>
    %259 = vector.extract_strided_slice %254 {offsets = [0, 4], sizes = [8, 256], strides = [1, 1]} : vector<8x260xf32> to vector<8x256xf32>
    %260 = tpu.concatenate %255, %256, %257, %258, %259 in 0 : vector<8x256xf32>, vector<8x256xf32>, vector<8x256xf32>, vector<8x256xf32>, vector<8x256xf32> -> vector<40x256xf32>
    %c3_130 = arith.constant 3 : index
    %c0_131 = arith.constant 0 : index
    %c0_132 = arith.constant 0 : index
    %261 = vector.load %arg2[%c3_130, %c0_131, %c0_132] : memref<5x16x40xf32, #tpu.memory_space<vmem>>, vector<1x16x40xf32>
    %262 = vector.shape_cast %261 : vector<1x16x40xf32> to vector<16x40xf32>
    %cst_133 = arith.constant dense<0.000000e+00> : vector<16x256xf32>
    %263 = tpu.matmul %262, %260, %cst_133 {dimension_numbers = #tpu.dot_dimension_numbers<[1], [0], [0], [1], [0, 0, 1, 1], [], []>} : vector<16x40xf32>, vector<40x256xf32>, vector<16x256xf32> -> vector<16x256xf32>
    %264 = arith.addf %252, %263 : vector<16x256xf32>
    %c0_134 = arith.constant 0 : index
    %c0_135 = arith.constant 0 : index
    %c966 = arith.constant 966 : index
    %265 = vector.load %arg1[%c0_134, %c0_135, %c966] : memref<1x8x1792xf32, #tpu.memory_space<vmem>>, vector<1x8x260xf32>
    %266 = vector.shape_cast %265 : vector<1x8x260xf32> to vector<8x260xf32>
    %267 = vector.extract_strided_slice %266 {offsets = [0, 0], sizes = [8, 256], strides = [1, 1]} : vector<8x260xf32> to vector<8x256xf32>
    %268 = vector.extract_strided_slice %266 {offsets = [0, 1], sizes = [8, 256], strides = [1, 1]} : vector<8x260xf32> to vector<8x256xf32>
    %269 = vector.extract_strided_slice %266 {offsets = [0, 2], sizes = [8, 256], strides = [1, 1]} : vector<8x260xf32> to vector<8x256xf32>
    %270 = vector.extract_strided_slice %266 {offsets = [0, 3], sizes = [8, 256], strides = [1, 1]} : vector<8x260xf32> to vector<8x256xf32>
    %271 = vector.extract_strided_slice %266 {offsets = [0, 4], sizes = [8, 256], strides = [1, 1]} : vector<8x260xf32> to vector<8x256xf32>
    %272 = tpu.concatenate %267, %268, %269, %270, %271 in 0 : vector<8x256xf32>, vector<8x256xf32>, vector<8x256xf32>, vector<8x256xf32>, vector<8x256xf32> -> vector<40x256xf32>
    %c4_136 = arith.constant 4 : index
    %c0_137 = arith.constant 0 : index
    %c0_138 = arith.constant 0 : index
    %273 = vector.load %arg2[%c4_136, %c0_137, %c0_138] : memref<5x16x40xf32, #tpu.memory_space<vmem>>, vector<1x16x40xf32>
    %274 = vector.shape_cast %273 : vector<1x16x40xf32> to vector<16x40xf32>
    %cst_139 = arith.constant dense<0.000000e+00> : vector<16x256xf32>
    %275 = tpu.matmul %274, %272, %cst_139 {dimension_numbers = #tpu.dot_dimension_numbers<[1], [0], [0], [1], [0, 0, 1, 1], [], []>} : vector<16x40xf32>, vector<40x256xf32>, vector<16x256xf32> -> vector<16x256xf32>
    %276 = arith.addf %264, %275 : vector<16x256xf32>
    %c0_140 = arith.constant 0 : index
    %c0_141 = arith.constant 0 : index
    %277 = vector.load %arg3[%c0_140, %c0_141] : memref<16x1xf32, #tpu.memory_space<vmem>>, vector<16x1xf32>
    %278 = vector.broadcast %277 : vector<16x1xf32> to vector<16x256xf32>
    %279 = arith.addf %276, %278 : vector<16x256xf32>
    %cst_142 = arith.constant 0.000000e+00 : f32
    %280 = vector.broadcast %cst_142 : f32 to vector<16x256xf32>
    %281 = arith.maximumf %279, %280 : vector<16x256xf32>
    %c0_143 = arith.constant 0 : index
    %c768 = arith.constant 768 : index
    %282 = vector.load %arg4[%c0_143, %c768] : memref<1x1536xf32, #tpu.memory_space<vmem>>, vector<1x256xf32>
    %283 = vector.broadcast %282 : vector<1x256xf32> to vector<16x256xf32>
    %284 = arith.mulf %281, %283 : vector<16x256xf32>
    %c0_144 = arith.constant 0 : index
    %c0_145 = arith.constant 0 : index
    %c896 = arith.constant 896 : index
    %285 = vector.load %arg5[%c0_144, %c0_145, %c896] : memref<1x16x1792xf32, #tpu.memory_space<vmem>>, vector<1x16x256xf32>
    %286 = vector.shape_cast %285 : vector<1x16x256xf32> to vector<16x256xf32>
    %287 = vector.shape_cast %284 : vector<16x256xf32> to vector<1x16x256xf32>
    tpu.vector_store %arg5[%c0_144, %c0_145, %c896], %287 {strides = array<i32>} : memref<1x16x1792xf32, #tpu.memory_space<vmem>>, vector<1x16x256xf32>,
    %c0_146 = arith.constant 0 : index
    %c0_147 = arith.constant 0 : index
    %c1078 = arith.constant 1078 : index
    %288 = vector.load %arg1[%c0_146, %c0_147, %c1078] : memref<1x8x1792xf32, #tpu.memory_space<vmem>>, vector<1x8x260xf32>
    %289 = vector.shape_cast %288 : vector<1x8x260xf32> to vector<8x260xf32>
    %290 = vector.extract_strided_slice %289 {offsets = [0, 0], sizes = [8, 256], strides = [1, 1]} : vector<8x260xf32> to vector<8x256xf32>
    %291 = vector.extract_strided_slice %289 {offsets = [0, 1], sizes = [8, 256], strides = [1, 1]} : vector<8x260xf32> to vector<8x256xf32>
    %292 = vector.extract_strided_slice %289 {offsets = [0, 2], sizes = [8, 256], strides = [1, 1]} : vector<8x260xf32> to vector<8x256xf32>
    %293 = vector.extract_strided_slice %289 {offsets = [0, 3], sizes = [8, 256], strides = [1, 1]} : vector<8x260xf32> to vector<8x256xf32>
    %294 = vector.extract_strided_slice %289 {offsets = [0, 4], sizes = [8, 256], strides = [1, 1]} : vector<8x260xf32> to vector<8x256xf32>
    %295 = tpu.concatenate %290, %291, %292, %293, %294 in 0 : vector<8x256xf32>, vector<8x256xf32>, vector<8x256xf32>, vector<8x256xf32>, vector<8x256xf32> -> vector<40x256xf32>
    %c0_148 = arith.constant 0 : index
    %c0_149 = arith.constant 0 : index
    %c0_150 = arith.constant 0 : index
    %296 = vector.load %arg2[%c0_148, %c0_149, %c0_150] : memref<5x16x40xf32, #tpu.memory_space<vmem>>, vector<1x16x40xf32>
    %297 = vector.shape_cast %296 : vector<1x16x40xf32> to vector<16x40xf32>
    %cst_151 = arith.constant dense<0.000000e+00> : vector<16x256xf32>
    %298 = tpu.matmul %297, %295, %cst_151 {dimension_numbers = #tpu.dot_dimension_numbers<[1], [0], [0], [1], [0, 0, 1, 1], [], []>} : vector<16x40xf32>, vector<40x256xf32>, vector<16x256xf32> -> vector<16x256xf32>
    %c0_152 = arith.constant 0 : index
    %c0_153 = arith.constant 0 : index
    %c1114 = arith.constant 1114 : index
    %299 = vector.load %arg1[%c0_152, %c0_153, %c1114] : memref<1x8x1792xf32, #tpu.memory_space<vmem>>, vector<1x8x260xf32>
    %300 = vector.shape_cast %299 : vector<1x8x260xf32> to vector<8x260xf32>
    %301 = vector.extract_strided_slice %300 {offsets = [0, 0], sizes = [8, 256], strides = [1, 1]} : vector<8x260xf32> to vector<8x256xf32>
    %302 = vector.extract_strided_slice %300 {offsets = [0, 1], sizes = [8, 256], strides = [1, 1]} : vector<8x260xf32> to vector<8x256xf32>
    %303 = vector.extract_strided_slice %300 {offsets = [0, 2], sizes = [8, 256], strides = [1, 1]} : vector<8x260xf32> to vector<8x256xf32>
    %304 = vector.extract_strided_slice %300 {offsets = [0, 3], sizes = [8, 256], strides = [1, 1]} : vector<8x260xf32> to vector<8x256xf32>
    %305 = vector.extract_strided_slice %300 {offsets = [0, 4], sizes = [8, 256], strides = [1, 1]} : vector<8x260xf32> to vector<8x256xf32>
    %306 = tpu.concatenate %301, %302, %303, %304, %305 in 0 : vector<8x256xf32>, vector<8x256xf32>, vector<8x256xf32>, vector<8x256xf32>, vector<8x256xf32> -> vector<40x256xf32>
    %c1_154 = arith.constant 1 : index
    %c0_155 = arith.constant 0 : index
    %c0_156 = arith.constant 0 : index
    %307 = vector.load %arg2[%c1_154, %c0_155, %c0_156] : memref<5x16x40xf32, #tpu.memory_space<vmem>>, vector<1x16x40xf32>
    %308 = vector.shape_cast %307 : vector<1x16x40xf32> to vector<16x40xf32>
    %cst_157 = arith.constant dense<0.000000e+00> : vector<16x256xf32>
    %309 = tpu.matmul %308, %306, %cst_157 {dimension_numbers = #tpu.dot_dimension_numbers<[1], [0], [0], [1], [0, 0, 1, 1], [], []>} : vector<16x40xf32>, vector<40x256xf32>, vector<16x256xf32> -> vector<16x256xf32>
    %310 = arith.addf %298, %309 : vector<16x256xf32>
    %c0_158 = arith.constant 0 : index
    %c0_159 = arith.constant 0 : index
    %c1150 = arith.constant 1150 : index
    %311 = vector.load %arg1[%c0_158, %c0_159, %c1150] : memref<1x8x1792xf32, #tpu.memory_space<vmem>>, vector<1x8x260xf32>
    %312 = vector.shape_cast %311 : vector<1x8x260xf32> to vector<8x260xf32>
    %313 = vector.extract_strided_slice %312 {offsets = [0, 0], sizes = [8, 256], strides = [1, 1]} : vector<8x260xf32> to vector<8x256xf32>
    %314 = vector.extract_strided_slice %312 {offsets = [0, 1], sizes = [8, 256], strides = [1, 1]} : vector<8x260xf32> to vector<8x256xf32>
    %315 = vector.extract_strided_slice %312 {offsets = [0, 2], sizes = [8, 256], strides = [1, 1]} : vector<8x260xf32> to vector<8x256xf32>
    %316 = vector.extract_strided_slice %312 {offsets = [0, 3], sizes = [8, 256], strides = [1, 1]} : vector<8x260xf32> to vector<8x256xf32>
    %317 = vector.extract_strided_slice %312 {offsets = [0, 4], sizes = [8, 256], strides = [1, 1]} : vector<8x260xf32> to vector<8x256xf32>
    %318 = tpu.concatenate %313, %314, %315, %316, %317 in 0 : vector<8x256xf32>, vector<8x256xf32>, vector<8x256xf32>, vector<8x256xf32>, vector<8x256xf32> -> vector<40x256xf32>
    %c2_160 = arith.constant 2 : index
    %c0_161 = arith.constant 0 : index
    %c0_162 = arith.constant 0 : index
    %319 = vector.load %arg2[%c2_160, %c0_161, %c0_162] : memref<5x16x40xf32, #tpu.memory_space<vmem>>, vector<1x16x40xf32>
    %320 = vector.shape_cast %319 : vector<1x16x40xf32> to vector<16x40xf32>
    %cst_163 = arith.constant dense<0.000000e+00> : vector<16x256xf32>
    %321 = tpu.matmul %320, %318, %cst_163 {dimension_numbers = #tpu.dot_dimension_numbers<[1], [0], [0], [1], [0, 0, 1, 1], [], []>} : vector<16x40xf32>, vector<40x256xf32>, vector<16x256xf32> -> vector<16x256xf32>
    %322 = arith.addf %310, %321 : vector<16x256xf32>
    %c0_164 = arith.constant 0 : index
    %c0_165 = arith.constant 0 : index
    %c1186 = arith.constant 1186 : index
    %323 = vector.load %arg1[%c0_164, %c0_165, %c1186] : memref<1x8x1792xf32, #tpu.memory_space<vmem>>, vector<1x8x260xf32>
    %324 = vector.shape_cast %323 : vector<1x8x260xf32> to vector<8x260xf32>
    %325 = vector.extract_strided_slice %324 {offsets = [0, 0], sizes = [8, 256], strides = [1, 1]} : vector<8x260xf32> to vector<8x256xf32>
    %326 = vector.extract_strided_slice %324 {offsets = [0, 1], sizes = [8, 256], strides = [1, 1]} : vector<8x260xf32> to vector<8x256xf32>
    %327 = vector.extract_strided_slice %324 {offsets = [0, 2], sizes = [8, 256], strides = [1, 1]} : vector<8x260xf32> to vector<8x256xf32>
    %328 = vector.extract_strided_slice %324 {offsets = [0, 3], sizes = [8, 256], strides = [1, 1]} : vector<8x260xf32> to vector<8x256xf32>
    %329 = vector.extract_strided_slice %324 {offsets = [0, 4], sizes = [8, 256], strides = [1, 1]} : vector<8x260xf32> to vector<8x256xf32>
    %330 = tpu.concatenate %325, %326, %327, %328, %329 in 0 : vector<8x256xf32>, vector<8x256xf32>, vector<8x256xf32>, vector<8x256xf32>, vector<8x256xf32> -> vector<40x256xf32>
    %c3_166 = arith.constant 3 : index
    %c0_167 = arith.constant 0 : index
    %c0_168 = arith.constant 0 : index
    %331 = vector.load %arg2[%c3_166, %c0_167, %c0_168] : memref<5x16x40xf32, #tpu.memory_space<vmem>>, vector<1x16x40xf32>
    %332 = vector.shape_cast %331 : vector<1x16x40xf32> to vector<16x40xf32>
    %cst_169 = arith.constant dense<0.000000e+00> : vector<16x256xf32>
    %333 = tpu.matmul %332, %330, %cst_169 {dimension_numbers = #tpu.dot_dimension_numbers<[1], [0], [0], [1], [0, 0, 1, 1], [], []>} : vector<16x40xf32>, vector<40x256xf32>, vector<16x256xf32> -> vector<16x256xf32>
    %334 = arith.addf %322, %333 : vector<16x256xf32>
    %c0_170 = arith.constant 0 : index
    %c0_171 = arith.constant 0 : index
    %c1222 = arith.constant 1222 : index
    %335 = vector.load %arg1[%c0_170, %c0_171, %c1222] : memref<1x8x1792xf32, #tpu.memory_space<vmem>>, vector<1x8x260xf32>
    %336 = vector.shape_cast %335 : vector<1x8x260xf32> to vector<8x260xf32>
    %337 = vector.extract_strided_slice %336 {offsets = [0, 0], sizes = [8, 256], strides = [1, 1]} : vector<8x260xf32> to vector<8x256xf32>
    %338 = vector.extract_strided_slice %336 {offsets = [0, 1], sizes = [8, 256], strides = [1, 1]} : vector<8x260xf32> to vector<8x256xf32>
    %339 = vector.extract_strided_slice %336 {offsets = [0, 2], sizes = [8, 256], strides = [1, 1]} : vector<8x260xf32> to vector<8x256xf32>
    %340 = vector.extract_strided_slice %336 {offsets = [0, 3], sizes = [8, 256], strides = [1, 1]} : vector<8x260xf32> to vector<8x256xf32>
    %341 = vector.extract_strided_slice %336 {offsets = [0, 4], sizes = [8, 256], strides = [1, 1]} : vector<8x260xf32> to vector<8x256xf32>
    %342 = tpu.concatenate %337, %338, %339, %340, %341 in 0 : vector<8x256xf32>, vector<8x256xf32>, vector<8x256xf32>, vector<8x256xf32>, vector<8x256xf32> -> vector<40x256xf32>
    %c4_172 = arith.constant 4 : index
    %c0_173 = arith.constant 0 : index
    %c0_174 = arith.constant 0 : index
    %343 = vector.load %arg2[%c4_172, %c0_173, %c0_174] : memref<5x16x40xf32, #tpu.memory_space<vmem>>, vector<1x16x40xf32>
    %344 = vector.shape_cast %343 : vector<1x16x40xf32> to vector<16x40xf32>
    %cst_175 = arith.constant dense<0.000000e+00> : vector<16x256xf32>
    %345 = tpu.matmul %344, %342, %cst_175 {dimension_numbers = #tpu.dot_dimension_numbers<[1], [0], [0], [1], [0, 0, 1, 1], [], []>} : vector<16x40xf32>, vector<40x256xf32>, vector<16x256xf32> -> vector<16x256xf32>
    %346 = arith.addf %334, %345 : vector<16x256xf32>
    %c0_176 = arith.constant 0 : index
    %c0_177 = arith.constant 0 : index
    %347 = vector.load %arg3[%c0_176, %c0_177] : memref<16x1xf32, #tpu.memory_space<vmem>>, vector<16x1xf32>
    %348 = vector.broadcast %347 : vector<16x1xf32> to vector<16x256xf32>
    %349 = arith.addf %346, %348 : vector<16x256xf32>
    %cst_178 = arith.constant 0.000000e+00 : f32
    %350 = vector.broadcast %cst_178 : f32 to vector<16x256xf32>
    %351 = arith.maximumf %349, %350 : vector<16x256xf32>
    %c0_179 = arith.constant 0 : index
    %c1024 = arith.constant 1024 : index
    %352 = vector.load %arg4[%c0_179, %c1024] : memref<1x1536xf32, #tpu.memory_space<vmem>>, vector<1x256xf32>
    %353 = vector.broadcast %352 : vector<1x256xf32> to vector<16x256xf32>
    %354 = arith.mulf %351, %353 : vector<16x256xf32>
    %c0_180 = arith.constant 0 : index
    %c0_181 = arith.constant 0 : index
    %c1152 = arith.constant 1152 : index
    %355 = vector.load %arg5[%c0_180, %c0_181, %c1152] : memref<1x16x1792xf32, #tpu.memory_space<vmem>>, vector<1x16x256xf32>
    %356 = vector.shape_cast %355 : vector<1x16x256xf32> to vector<16x256xf32>
    %357 = vector.shape_cast %354 : vector<16x256xf32> to vector<1x16x256xf32>
    tpu.vector_store %arg5[%c0_180, %c0_181, %c1152], %357 {strides = array<i32>} : memref<1x16x1792xf32, #tpu.memory_space<vmem>>, vector<1x16x256xf32>,
    %c0_182 = arith.constant 0 : index
    %c0_183 = arith.constant 0 : index
    %c1334 = arith.constant 1334 : index
    %358 = vector.load %arg1[%c0_182, %c0_183, %c1334] : memref<1x8x1792xf32, #tpu.memory_space<vmem>>, vector<1x8x260xf32>
    %359 = vector.shape_cast %358 : vector<1x8x260xf32> to vector<8x260xf32>
    %360 = vector.extract_strided_slice %359 {offsets = [0, 0], sizes = [8, 256], strides = [1, 1]} : vector<8x260xf32> to vector<8x256xf32>
    %361 = vector.extract_strided_slice %359 {offsets = [0, 1], sizes = [8, 256], strides = [1, 1]} : vector<8x260xf32> to vector<8x256xf32>
    %362 = vector.extract_strided_slice %359 {offsets = [0, 2], sizes = [8, 256], strides = [1, 1]} : vector<8x260xf32> to vector<8x256xf32>
    %363 = vector.extract_strided_slice %359 {offsets = [0, 3], sizes = [8, 256], strides = [1, 1]} : vector<8x260xf32> to vector<8x256xf32>
    %364 = vector.extract_strided_slice %359 {offsets = [0, 4], sizes = [8, 256], strides = [1, 1]} : vector<8x260xf32> to vector<8x256xf32>
    %365 = tpu.concatenate %360, %361, %362, %363, %364 in 0 : vector<8x256xf32>, vector<8x256xf32>, vector<8x256xf32>, vector<8x256xf32>, vector<8x256xf32> -> vector<40x256xf32>
    %c0_184 = arith.constant 0 : index
    %c0_185 = arith.constant 0 : index
    %c0_186 = arith.constant 0 : index
    %366 = vector.load %arg2[%c0_184, %c0_185, %c0_186] : memref<5x16x40xf32, #tpu.memory_space<vmem>>, vector<1x16x40xf32>
    %367 = vector.shape_cast %366 : vector<1x16x40xf32> to vector<16x40xf32>
    %cst_187 = arith.constant dense<0.000000e+00> : vector<16x256xf32>
    %368 = tpu.matmul %367, %365, %cst_187 {dimension_numbers = #tpu.dot_dimension_numbers<[1], [0], [0], [1], [0, 0, 1, 1], [], []>} : vector<16x40xf32>, vector<40x256xf32>, vector<16x256xf32> -> vector<16x256xf32>
    %c0_188 = arith.constant 0 : index
    %c0_189 = arith.constant 0 : index
    %c1370 = arith.constant 1370 : index
    %369 = vector.load %arg1[%c0_188, %c0_189, %c1370] : memref<1x8x1792xf32, #tpu.memory_space<vmem>>, vector<1x8x260xf32>
    %370 = vector.shape_cast %369 : vector<1x8x260xf32> to vector<8x260xf32>
    %371 = vector.extract_strided_slice %370 {offsets = [0, 0], sizes = [8, 256], strides = [1, 1]} : vector<8x260xf32> to vector<8x256xf32>
    %372 = vector.extract_strided_slice %370 {offsets = [0, 1], sizes = [8, 256], strides = [1, 1]} : vector<8x260xf32> to vector<8x256xf32>
    %373 = vector.extract_strided_slice %370 {offsets = [0, 2], sizes = [8, 256], strides = [1, 1]} : vector<8x260xf32> to vector<8x256xf32>
    %374 = vector.extract_strided_slice %370 {offsets = [0, 3], sizes = [8, 256], strides = [1, 1]} : vector<8x260xf32> to vector<8x256xf32>
    %375 = vector.extract_strided_slice %370 {offsets = [0, 4], sizes = [8, 256], strides = [1, 1]} : vector<8x260xf32> to vector<8x256xf32>
    %376 = tpu.concatenate %371, %372, %373, %374, %375 in 0 : vector<8x256xf32>, vector<8x256xf32>, vector<8x256xf32>, vector<8x256xf32>, vector<8x256xf32> -> vector<40x256xf32>
    %c1_190 = arith.constant 1 : index
    %c0_191 = arith.constant 0 : index
    %c0_192 = arith.constant 0 : index
    %377 = vector.load %arg2[%c1_190, %c0_191, %c0_192] : memref<5x16x40xf32, #tpu.memory_space<vmem>>, vector<1x16x40xf32>
    %378 = vector.shape_cast %377 : vector<1x16x40xf32> to vector<16x40xf32>
    %cst_193 = arith.constant dense<0.000000e+00> : vector<16x256xf32>
    %379 = tpu.matmul %378, %376, %cst_193 {dimension_numbers = #tpu.dot_dimension_numbers<[1], [0], [0], [1], [0, 0, 1, 1], [], []>} : vector<16x40xf32>, vector<40x256xf32>, vector<16x256xf32> -> vector<16x256xf32>
    %380 = arith.addf %368, %379 : vector<16x256xf32>
    %c0_194 = arith.constant 0 : index
    %c0_195 = arith.constant 0 : index
    %c1406 = arith.constant 1406 : index
    %381 = vector.load %arg1[%c0_194, %c0_195, %c1406] : memref<1x8x1792xf32, #tpu.memory_space<vmem>>, vector<1x8x260xf32>
    %382 = vector.shape_cast %381 : vector<1x8x260xf32> to vector<8x260xf32>
    %383 = vector.extract_strided_slice %382 {offsets = [0, 0], sizes = [8, 256], strides = [1, 1]} : vector<8x260xf32> to vector<8x256xf32>
    %384 = vector.extract_strided_slice %382 {offsets = [0, 1], sizes = [8, 256], strides = [1, 1]} : vector<8x260xf32> to vector<8x256xf32>
    %385 = vector.extract_strided_slice %382 {offsets = [0, 2], sizes = [8, 256], strides = [1, 1]} : vector<8x260xf32> to vector<8x256xf32>
    %386 = vector.extract_strided_slice %382 {offsets = [0, 3], sizes = [8, 256], strides = [1, 1]} : vector<8x260xf32> to vector<8x256xf32>
    %387 = vector.extract_strided_slice %382 {offsets = [0, 4], sizes = [8, 256], strides = [1, 1]} : vector<8x260xf32> to vector<8x256xf32>
    %388 = tpu.concatenate %383, %384, %385, %386, %387 in 0 : vector<8x256xf32>, vector<8x256xf32>, vector<8x256xf32>, vector<8x256xf32>, vector<8x256xf32> -> vector<40x256xf32>
    %c2_196 = arith.constant 2 : index
    %c0_197 = arith.constant 0 : index
    %c0_198 = arith.constant 0 : index
    %389 = vector.load %arg2[%c2_196, %c0_197, %c0_198] : memref<5x16x40xf32, #tpu.memory_space<vmem>>, vector<1x16x40xf32>
    %390 = vector.shape_cast %389 : vector<1x16x40xf32> to vector<16x40xf32>
    %cst_199 = arith.constant dense<0.000000e+00> : vector<16x256xf32>
    %391 = tpu.matmul %390, %388, %cst_199 {dimension_numbers = #tpu.dot_dimension_numbers<[1], [0], [0], [1], [0, 0, 1, 1], [], []>} : vector<16x40xf32>, vector<40x256xf32>, vector<16x256xf32> -> vector<16x256xf32>
    %392 = arith.addf %380, %391 : vector<16x256xf32>
    %c0_200 = arith.constant 0 : index
    %c0_201 = arith.constant 0 : index
    %c1442 = arith.constant 1442 : index
    %393 = vector.load %arg1[%c0_200, %c0_201, %c1442] : memref<1x8x1792xf32, #tpu.memory_space<vmem>>, vector<1x8x260xf32>
    %394 = vector.shape_cast %393 : vector<1x8x260xf32> to vector<8x260xf32>
    %395 = vector.extract_strided_slice %394 {offsets = [0, 0], sizes = [8, 256], strides = [1, 1]} : vector<8x260xf32> to vector<8x256xf32>
    %396 = vector.extract_strided_slice %394 {offsets = [0, 1], sizes = [8, 256], strides = [1, 1]} : vector<8x260xf32> to vector<8x256xf32>
    %397 = vector.extract_strided_slice %394 {offsets = [0, 2], sizes = [8, 256], strides = [1, 1]} : vector<8x260xf32> to vector<8x256xf32>
    %398 = vector.extract_strided_slice %394 {offsets = [0, 3], sizes = [8, 256], strides = [1, 1]} : vector<8x260xf32> to vector<8x256xf32>
    %399 = vector.extract_strided_slice %394 {offsets = [0, 4], sizes = [8, 256], strides = [1, 1]} : vector<8x260xf32> to vector<8x256xf32>
    %400 = tpu.concatenate %395, %396, %397, %398, %399 in 0 : vector<8x256xf32>, vector<8x256xf32>, vector<8x256xf32>, vector<8x256xf32>, vector<8x256xf32> -> vector<40x256xf32>
    %c3_202 = arith.constant 3 : index
    %c0_203 = arith.constant 0 : index
    %c0_204 = arith.constant 0 : index
    %401 = vector.load %arg2[%c3_202, %c0_203, %c0_204] : memref<5x16x40xf32, #tpu.memory_space<vmem>>, vector<1x16x40xf32>
    %402 = vector.shape_cast %401 : vector<1x16x40xf32> to vector<16x40xf32>
    %cst_205 = arith.constant dense<0.000000e+00> : vector<16x256xf32>
    %403 = tpu.matmul %402, %400, %cst_205 {dimension_numbers = #tpu.dot_dimension_numbers<[1], [0], [0], [1], [0, 0, 1, 1], [], []>} : vector<16x40xf32>, vector<40x256xf32>, vector<16x256xf32> -> vector<16x256xf32>
    %404 = arith.addf %392, %403 : vector<16x256xf32>
    %c0_206 = arith.constant 0 : index
    %c0_207 = arith.constant 0 : index
    %c1478 = arith.constant 1478 : index
    %405 = vector.load %arg1[%c0_206, %c0_207, %c1478] : memref<1x8x1792xf32, #tpu.memory_space<vmem>>, vector<1x8x260xf32>
    %406 = vector.shape_cast %405 : vector<1x8x260xf32> to vector<8x260xf32>
    %407 = vector.extract_strided_slice %406 {offsets = [0, 0], sizes = [8, 256], strides = [1, 1]} : vector<8x260xf32> to vector<8x256xf32>
    %408 = vector.extract_strided_slice %406 {offsets = [0, 1], sizes = [8, 256], strides = [1, 1]} : vector<8x260xf32> to vector<8x256xf32>
    %409 = vector.extract_strided_slice %406 {offsets = [0, 2], sizes = [8, 256], strides = [1, 1]} : vector<8x260xf32> to vector<8x256xf32>
    %410 = vector.extract_strided_slice %406 {offsets = [0, 3], sizes = [8, 256], strides = [1, 1]} : vector<8x260xf32> to vector<8x256xf32>
    %411 = vector.extract_strided_slice %406 {offsets = [0, 4], sizes = [8, 256], strides = [1, 1]} : vector<8x260xf32> to vector<8x256xf32>
    %412 = tpu.concatenate %407, %408, %409, %410, %411 in 0 : vector<8x256xf32>, vector<8x256xf32>, vector<8x256xf32>, vector<8x256xf32>, vector<8x256xf32> -> vector<40x256xf32>
    %c4_208 = arith.constant 4 : index
    %c0_209 = arith.constant 0 : index
    %c0_210 = arith.constant 0 : index
    %413 = vector.load %arg2[%c4_208, %c0_209, %c0_210] : memref<5x16x40xf32, #tpu.memory_space<vmem>>, vector<1x16x40xf32>
    %414 = vector.shape_cast %413 : vector<1x16x40xf32> to vector<16x40xf32>
    %cst_211 = arith.constant dense<0.000000e+00> : vector<16x256xf32>
    %415 = tpu.matmul %414, %412, %cst_211 {dimension_numbers = #tpu.dot_dimension_numbers<[1], [0], [0], [1], [0, 0, 1, 1], [], []>} : vector<16x40xf32>, vector<40x256xf32>, vector<16x256xf32> -> vector<16x256xf32>
    %416 = arith.addf %404, %415 : vector<16x256xf32>
    %c0_212 = arith.constant 0 : index
    %c0_213 = arith.constant 0 : index
    %417 = vector.load %arg3[%c0_212, %c0_213] : memref<16x1xf32, #tpu.memory_space<vmem>>, vector<16x1xf32>
    %418 = vector.broadcast %417 : vector<16x1xf32> to vector<16x256xf32>
    %419 = arith.addf %416, %418 : vector<16x256xf32>
    %cst_214 = arith.constant 0.000000e+00 : f32
    %420 = vector.broadcast %cst_214 : f32 to vector<16x256xf32>
    %421 = arith.maximumf %419, %420 : vector<16x256xf32>
    %c0_215 = arith.constant 0 : index
    %c1280 = arith.constant 1280 : index
    %422 = vector.load %arg4[%c0_215, %c1280] : memref<1x1536xf32, #tpu.memory_space<vmem>>, vector<1x256xf32>
    %423 = vector.broadcast %422 : vector<1x256xf32> to vector<16x256xf32>
    %424 = arith.mulf %421, %423 : vector<16x256xf32>
    %c0_216 = arith.constant 0 : index
    %c0_217 = arith.constant 0 : index
    %c1408 = arith.constant 1408 : index
    %425 = vector.load %arg5[%c0_216, %c0_217, %c1408] : memref<1x16x1792xf32, #tpu.memory_space<vmem>>, vector<1x16x256xf32>
    %426 = vector.shape_cast %425 : vector<1x16x256xf32> to vector<16x256xf32>
    %427 = vector.shape_cast %424 : vector<16x256xf32> to vector<1x16x256xf32>
    tpu.vector_store %arg5[%c0_216, %c0_217, %c1408], %427 {strides = array<i32>} : memref<1x16x1792xf32, #tpu.memory_space<vmem>>, vector<1x16x256xf32>,
    return
  }
  func.func @transform_0(%arg0: i32) -> (i32, i32, i32) {
    %c0_i32 = arith.constant 0 : i32
    %c0_i32_0 = arith.constant 0 : i32
    %c0_i32_1 = arith.constant 0 : i32
    return %arg0, %c0_i32, %c0_i32_0 : i32, i32, i32
  }
  func.func @transform_1(%arg0: i32) -> (i32, i32, i32) {
    %c0_i32 = arith.constant 0 : i32
    %c0_i32_0 = arith.constant 0 : i32
    %c0_i32_1 = arith.constant 0 : i32
    %c0_i32_2 = arith.constant 0 : i32
    return %c0_i32, %c0_i32_0, %c0_i32_1 : i32, i32, i32
  }
  func.func @transform_2(%arg0: i32) -> (i32, i32) {
    %c0_i32 = arith.constant 0 : i32
    %c0_i32_0 = arith.constant 0 : i32
    %c0_i32_1 = arith.constant 0 : i32
    return %c0_i32, %c0_i32_0 : i32, i32
  }
  func.func @transform_3(%arg0: i32) -> (i32, i32) {
    %c0_i32 = arith.constant 0 : i32
    %c0_i32_0 = arith.constant 0 : i32
    %c0_i32_1 = arith.constant 0 : i32
    return %c0_i32, %c0_i32_0 : i32, i32
  }
  func.func @transform_4(%arg0: i32) -> (i32, i32, i32) {
    %c0_i32 = arith.constant 0 : i32
    %c0_i32_0 = arith.constant 0 : i32
    %c0_i32_1 = arith.constant 0 : i32
    return %arg0, %c0_i32, %c0_i32_0 : i32, i32, i32
  }
}

</mosaic_0001>

<llo_original>
// kernel: tpu_custom_call.1
$region0: #{tpu_custom_call.1}
  #allocation0 [shape = 'u32[]', space=smem, size = 0x4, offset = 0x4, fixed_abs, tag = 'smem constant byte address 0x4 - core index']
  #allocation1 [shape = 'u32[144,128]{1,0:T(1,128)}', space=vmem, size = 0x12000, scoped, tag = 'internal scratch']
  %s0 = inlined_call_operand.hbm [shape: f32[2,8,1792], index: 0, kind: input, shape index: {}]
  %s1 = inlined_call_operand.hbm [shape: f32[5,16,40], index: 1, kind: input, shape index: {}]
  %s2 = inlined_call_operand.vmem [shape: f32[16,1], index: 2, kind: input, shape index: {}]
  %s3 = inlined_call_operand.vmem [shape: f32[1,1536], index: 3, kind: input, shape index: {}]
  %s4 = inlined_call_operand.hbm [shape: f32[2,16,1792], index: 4, kind: output, shape index: {}]
  %s5 = sld [smem:[#allocation0]]
  $region57: #{tpu_custom_call.1} parent=0
    _
  %s7 = ssub.s32 1, %s5
  %s8 = scalar_select 0, %s7, %s5
  $region1: #{tpu_custom_call.1} parent=0
    #allocation2 [shape = 'u8[114688]{0}', space=vmem, size = 0x1c000, scoped, tag = 'input window, operand 0']
    #allocation3 [shape = 's32[2]{0}', space=sflag, size = 0x8, scoped, tag = 'scoped memory for tpu_custom_call.1']
    #allocation4 [shape = 's32[2]{0}', space=sflag, size = 0x8, scoped, tag = 'scoped memory for tpu_custom_call.1']
    #allocation5 [shape = 'u8[40960]{0}', space=vmem, size = 0xa000, scoped, tag = 'input window, operand 1, single buffered']
    #allocation6 [shape = 's32[1]{0}', space=sflag, size = 0x4, scoped, tag = 'scoped memory for tpu_custom_call.1']
    #allocation7 [shape = 'u8[229376]{0}', space=vmem, size = 0x38000, scoped, tag = 'output window, operand 0']
    %9 = vsyncpa [#allocation3], 0
    %s10 = scalar_lea.sflag [#allocation3], 1
    %11 = vsyncpa %s10, 0
    %12 = vsyncpa [#allocation6], 0
    %13 = vsyncpa [#allocation4], 0
    %s14 = scalar_lea.sflag [#allocation4], 1
    %15 = vsyncpa %s14, 0
    loop: start=0, step=1, limit=4
    $region2: #{tpu_custom_call.1} parent=1 // loop_pre_header
      _
    $region3: #{tpu_custom_call.1} parent=1 // loop_header
      %s17 = sphi 0, %s21
      %p18 = scmp.ge.s32.totalorder %s17, 4
      %s27 = sphi 0, %s29
      %s30 = sphi 0, %s27
      %s31 = sphi 0, %s30
      %s47 = sphi 0, %s31
      %s51 = sphi 0, %s51
      %s53 = sphi 0, %s51
      %s54 = sphi 0, %s53
      %s68 = sphi 0, %s54
      %s72 = sphi 0, %s72
      %s74 = sphi 0, %s72
      %s75 = sphi 0, %s74
      %s89 = sphi 0, %s75
      %s93 = sphi 0, %s93
      %s95 = sphi 0, %s93
      %s96 = sphi 0, %s95
      %s110 = sphi 0, %s96
      %s116 = sphi 0, %s118
      %s119 = sphi 0, %s116
      %s120 = sphi 0, %s119
      %s136 = sphi 0, %s120
    $region4: #{tpu_custom_call.1} parent=1 // loop_header_branch
      %20 = sbr.rel (%p18) target = $region8
    $region5: #{tpu_custom_call.1} parent=1 // loop_body
      %s22 = ssub.s32 %s17, 1
      %s23 = ssub.s32 %s17, 2
      %s24 = sadd.s32 %s17, 1
      %s25 = ssub.s32 %s17, %s24
      %p26 = scmp.eq.s32.totalorder %s25, 0
      %s28 = sadd.s32 %s27, 1
      %s29 = scalar_select %p26, %s27, %s28
      %p32 = pneg %p26
      %p33 = scmp.eq.s32.totalorder %s17, 1
      %p34 = por %p32, %p33
      %p35 = scmp.ne.s32.totalorder %s27, %s30
      %p36 = scmp.eq.s32.totalorder %s17, 0
      %p37 = por %p35, %p36
      %p38 = scmp.ne.s32.totalorder %s27, %s30
      %p39 = scmp.eq.s32.totalorder %s22, 1
      %p40 = por %p38, %p39
      %p41 = scmp.ne.s32.totalorder %s30, %s31
      %p42 = scmp.eq.s32.totalorder %s22, 0
      %p43 = por %p41, %p42
      %p44 = scmp.ne.s32.totalorder %s30, %s31
      %p45 = scmp.eq.s32.totalorder %s23, 1
      %p46 = por %p44, %p45
      %p48 = scmp.ne.s32.totalorder %s31, %s47
      %p49 = scmp.eq.s32.totalorder %s23, 0
      %p50 = por %p48, %p49
      %s52 = sadd.s32 %s51, 1
      %p55 = scmp.eq.s32.totalorder %s17, 1
      %p56 = scmp.ne.s32.totalorder %s51, %s53
      %p57 = scmp.eq.s32.totalorder %s17, 0
      %p58 = por %p56, %p57
      %p59 = scmp.ne.s32.totalorder %s51, %s53
      %p60 = scmp.eq.s32.totalorder %s22, 1
      %p61 = por %p59, %p60
      %p62 = scmp.ne.s32.totalorder %s53, %s54
      %p63 = scmp.eq.s32.totalorder %s22, 0
      %p64 = por %p62, %p63
      %p65 = scmp.ne.s32.totalorder %s53, %s54
      %p66 = scmp.eq.s32.totalorder %s23, 1
      %p67 = por %p65, %p66
      %p69 = scmp.ne.s32.totalorder %s54, %s68
      %p70 = scmp.eq.s32.totalorder %s23, 0
      %p71 = por %p69, %p70
      %s73 = sadd.s32 %s72, 1
      %p76 = scmp.eq.s32.totalorder %s17, 1
      %p77 = scmp.ne.s32.totalorder %s72, %s74
      %p78 = scmp.eq.s32.totalorder %s17, 0
      %p79 = por %p77, %p78
      %p80 = scmp.ne.s32.totalorder %s72, %s74
      %p81 = scmp.eq.s32.totalorder %s22, 1
      %p82 = por %p80, %p81
      %p83 = scmp.ne.s32.totalorder %s74, %s75
      %p84 = scmp.eq.s32.totalorder %s22, 0
      %p85 = por %p83, %p84
      %p86 = scmp.ne.s32.totalorder %s74, %s75
      %p87 = scmp.eq.s32.totalorder %s23, 1
      %p88 = por %p86, %p87
      %p90 = scmp.ne.s32.totalorder %s75, %s89
      %p91 = scmp.eq.s32.totalorder %s23, 0
      %p92 = por %p90, %p91
      %s94 = sadd.s32 %s93, 1
      %p97 = scmp.eq.s32.totalorder %s17, 1
      %p98 = scmp.ne.s32.totalorder %s93, %s95
      %p99 = scmp.eq.s32.totalorder %s17, 0
      %p100 = por %p98, %p99
      %p101 = scmp.ne.s32.totalorder %s93, %s95
      %p102 = scmp.eq.s32.totalorder %s22, 1
      %p103 = por %p101, %p102
      %p104 = scmp.ne.s32.totalorder %s95, %s96
      %p105 = scmp.eq.s32.totalorder %s22, 0
      %p106 = por %p104, %p105
      %p107 = scmp.ne.s32.totalorder %s95, %s96
      %p108 = scmp.eq.s32.totalorder %s23, 1
      %p109 = por %p107, %p108
      %p111 = scmp.ne.s32.totalorder %s96, %s110
      %p112 = scmp.eq.s32.totalorder %s23, 0
      %p113 = por %p111, %p112
      %s114 = ssub.s32 %s17, %s24
      %p115 = scmp.eq.s32.totalorder %s114, 0
      %s117 = sadd.s32 %s116, 1
      %s118 = scalar_select %p115, %s116, %s117
      %p121 = pneg %p115
      %p122 = scmp.eq.s32.totalorder %s17, 1
      %p123 = por %p121, %p122
      %p124 = scmp.ne.s32.totalorder %s116, %s119
      %p125 = scmp.eq.s32.totalorder %s17, 0
      %p126 = por %p124, %p125
      %p127 = scmp.ne.s32.totalorder %s116, %s119
      %p128 = scmp.eq.s32.totalorder %s22, 1
      %p129 = por %p127, %p128
      %p130 = scmp.ne.s32.totalorder %s119, %s120
      %p131 = scmp.eq.s32.totalorder %s22, 0
      %p132 = por %p130, %p131
      %p133 = scmp.ne.s32.totalorder %s119, %s120
      %p134 = scmp.eq.s32.totalorder %s23, 1
      %p135 = por %p133, %p134
      %p137 = scmp.ne.s32.totalorder %s120, %s136
      %p138 = scmp.eq.s32.totalorder %s23, 0
      %p139 = por %p137, %p138
      %p140 = scmp.le.s32.totalorder 1, %s17
      %p141 = scmp.lt.s32.totalorder %s17, 3
      %p142 = pnand %p140, %p141
      %p143 = pneg %p142
      // Predicated region
      $region9: #{tpu_custom_call.1} parent=5 // pred_check
        _
      $region10: #{tpu_custom_call.1} parent=5 // pred_check_branch
        %145 = sbr.rel (%p142) target = $region12
      $region11: #{tpu_custom_call.1} parent=5 // pred_region
        %s146 = ssub.s32 %s17, 1
        // Predicated region
        $region13: #{tpu_custom_call.1} parent=11 // pred_check
          %p147 = pneg %p64
        $region14: #{tpu_custom_call.1} parent=11 // pred_check_branch
          %149 = sbr.rel (%p147) target = $region16
        $region15: #{tpu_custom_call.1} parent=11 // pred_region
          %s151 = ssub.s32 1280, 1280
          %152 = vsyncadd [#allocation6], %s151
          %s153 = sshll.u32 [#allocation5], 4
          %s154 = int_to_ptr.vmem [resolvable:$true] %s153
          %159 = dma.hbm_to_vmem [thread:$0]  %s1, 1280, %s154, [#allocation6], 128, 128, 8
        $region16: #{tpu_custom_call.1} parent=11 // pred_fallthru
          _
        // Predicated region
        $region17: #{tpu_custom_call.1} parent=11 // pred_check
          %p160 = pneg %p85
        $region18: #{tpu_custom_call.1} parent=11 // pred_check_branch
          %162 = sbr.rel (%p160) target = $region20
        $region19: #{tpu_custom_call.1} parent=11 // pred_region
          _
        $region20: #{tpu_custom_call.1} parent=11 // pred_fallthru
          _
        // Predicated region
        $region21: #{tpu_custom_call.1} parent=11 // pred_check
          %p163 = pneg %p106
        $region22: #{tpu_custom_call.1} parent=11 // pred_check_branch
          %165 = sbr.rel (%p163) target = $region24
        $region23: #{tpu_custom_call.1} parent=11 // pred_region
          _
        $region24: #{tpu_custom_call.1} parent=11 // pred_fallthru
          _
      $region12: #{tpu_custom_call.1} parent=5 // pred_fallthru
        _
      %p166 = scmp.lt.s32.totalorder %s17, 2
      // Predicated region
      $region25: #{tpu_custom_call.1} parent=5 // pred_check
        %p167 = pneg %p166
      $region26: #{tpu_custom_call.1} parent=5 // pred_check_branch
        %169 = sbr.rel (%p167) target = $region28
      $region27: #{tpu_custom_call.1} parent=5 // pred_region
        // Predicated region
        $region29: #{tpu_custom_call.1} parent=27 // pred_check
          %p170 = pneg %p37
        $region30: #{tpu_custom_call.1} parent=27 // pred_check_branch
          %172 = sbr.rel (%p170) target = $region32
        $region31: #{tpu_custom_call.1} parent=27 // pred_region
          %s173 = sand.u32 %s27, 1
          %s174 = scalar_lea.sflag [#allocation3], %s173
          %s175 = sand.u32 %s27, 1
          %s176 = smul.addr %s175, 112
          %s177 = scalar_lea.vmem [#allocation2], %s176
          %s179 = ssub.s32 1792, 1792
          %180 = vsyncadd %s174, %s179
          %s181 = smul.addr %s17, 14
          %s182 = smul.addr %s181, 128
          %s183 = scalar_lea.hbm %s0, %s182
          %s185 = sshll.u32 %s177, 4
          %s186 = int_to_ptr.vmem [resolvable:$true] %s185
          %188 = dma.hbm_to_vmem [thread:$0]  %s183, 1792, %s186, %s174
        $region32: #{tpu_custom_call.1} parent=27 // pred_fallthru
          _
      $region28: #{tpu_custom_call.1} parent=5 // pred_fallthru
        _
      %p189 = scmp.le.s32.totalorder 1, %s17
      %p190 = scmp.lt.s32.totalorder %s17, 3
      %p191 = pnand %p189, %p190
      %p192 = pneg %p191
      // Predicated region
      $region33: #{tpu_custom_call.1} parent=5 // pred_check
        _
      $region34: #{tpu_custom_call.1} parent=5 // pred_check_branch
        %194 = sbr.rel (%p191) target = $region36
      $region35: #{tpu_custom_call.1} parent=5 // pred_region
        %s195 = ssub.s32 %s17, 1
        %s196 = sand.u32 %s30, 1
        %s197 = scalar_lea.sflag [#allocation3], %s196
        %s198 = sand.u32 %s30, 1
        %s199 = smul.addr %s198, 112
        %s200 = scalar_lea.vmem [#allocation2], %s199
        // Predicated region
        $region37: #{tpu_custom_call.1} parent=35 // pred_check
          %p201 = pneg %p43
        $region38: #{tpu_custom_call.1} parent=35 // pred_check_branch
          %203 = sbr.rel (%p201) target = $region40
        $region39: #{tpu_custom_call.1} parent=35 // pred_region
          %204 = dma.done %s197, 1792
        $region40: #{tpu_custom_call.1} parent=35 // pred_fallthru
          _
        // Predicated region
        $region41: #{tpu_custom_call.1} parent=35 // pred_check
          %p205 = pneg %p64
        $region42: #{tpu_custom_call.1} parent=35 // pred_check_branch
          %207 = sbr.rel (%p205) target = $region44
        $region43: #{tpu_custom_call.1} parent=35 // pred_region
          %208 = dma.done [#allocation6], 1280
        $region44: #{tpu_custom_call.1} parent=35 // pred_fallthru
          _
        %s209 = sand.u32 %s30, 1
        %s210 = scalar_lea.sflag [#allocation3], %s209
        %s211 = sand.u32 %s30, 1
        %s212 = smul.addr %s211, 112
        %s213 = scalar_lea.vmem [#allocation2], %s212
        %p214 = pneg %p43
        %p215 = pneg %p40
        %p216 = pneg %p64
        %p217 = pneg %p61
        %p218 = pneg %p85
        %p219 = pneg %p82
        %p220 = pneg %p106
        %p221 = pneg %p103
        %p222 = pneg %p132
        %p223 = pneg %p129
        %s224 = sand.u32 %s119, 1
        %s225 = scalar_lea.sflag [#allocation4], %s224
        %s226 = sand.u32 %s119, 1
        %s227 = smul.addr %s226, 224
        %s228 = scalar_lea.vmem [#allocation7], %s227
        %229 = vst [vmem:[%s228] sm:$0xff] 0.0
        %230 = vst [vmem:[%s228 + $0x70] sm:$0xff] 0.0
        %231 = vst [vmem:[%s228 + $0x68] sm:$0xff] 0.0
        %232 = vst [vmem:[%s228 + $0xd8] sm:$0xff] 0.0
        %v233 = vld [vmem:[%s200] sm:$0xff]
        %v234 = vld [vmem:[%s200 + $0x8] sm:$0xff]
        %v235 = vld [vmem:[%s200 + $0x10] sm:$0xff]
        %239 = vrot.lane.b32.xlu0 %v233, 127
        %v240 = vpop.permute.xlu0 %239
        %241 = vrot.lane.b32.xlu0 %v234, 127
        %v242 = vpop.permute.xlu0 %241
        %243 = vrot.lane.b32.xlu0 %v235, 127
        %v244 = vpop.permute.xlu0 %243
        %vm245 = vcmask 1039360
        %v246 = vsel %vm245, %v240, %v242
        %v247 = vsel %vm245, %v242, %v244
        %248 = vrot.lane.b32.xlu0 %v233, 126
        %v249 = vpop.permute.xlu0 %248
        %250 = vrot.lane.b32.xlu0 %v234, 126
        %v251 = vpop.permute.xlu0 %250
        %252 = vrot.lane.b32.xlu0 %v235, 126
        %v253 = vpop.permute.xlu0 %252
        %vm254 = vcmask 1031168
        %v255 = vsel %vm254, %v249, %v251
        %v256 = vsel %vm254, %v251, %v253
        %257 = vrot.lane.b32.xlu0 %v233, 125
        %v258 = vpop.permute.xlu0 %257
        %259 = vrot.lane.b32.xlu0 %v234, 125
        %v260 = vpop.permute.xlu0 %259
        %261 = vrot.lane.b32.xlu0 %v235, 125
        %v262 = vpop.permute.xlu0 %261
        %vm263 = vcmask 1022976
        %v264 = vsel %vm263, %v258, %v260
        %v265 = vsel %vm263, %v260, %v262
        %266 = vrot.lane.b32.xlu0 %v233, 124
        %v267 = vpop.permute.xlu0 %266
        %268 = vrot.lane.b32.xlu0 %v234, 124
        %v269 = vpop.permute.xlu0 %268
        %270 = vrot.lane.b32.xlu0 %v235, 124
        %v271 = vpop.permute.xlu0 %270
        %vm272 = vcmask 1014784
        %v273 = vsel %vm272, %v267, %v269
        %v274 = vsel %vm272, %v269, %v271
        %v275 = vld [vmem:[#allocation5] sm:$0xff]
        %v276 = vld [vmem:[#allocation5 + $0x8] sm:$0xff]
        %s277 = scalar_lea.vmem [#allocation5], 16
        %v278 = vld [vmem:[%s277] sm:$0xff]
        %v279 = vld [vmem:[%s277 + $0x8] sm:$0xff]
        %280 = vrot.lane.b32.xlu0 %v233, 38
        %v281 = vpop.permute.xlu0 %280
        %282 = vrot.lane.b32.xlu0 %v234, 38
        %v283 = vpop.permute.xlu0 %282
        %284 = vrot.lane.b32.xlu0 %v235, 38
        %v285 = vpop.permute.xlu0 %284
        %286 = vrot.lane.b32.xlu0 %v246, 38
        %v287 = vpop.permute.xlu0 %286
        %288 = vrot.lane.b32.xlu0 %v247, 38
        %v289 = vpop.permute.xlu0 %288
        %290 = vrot.lane.b32.xlu0 %v244, 38
        %v291 = vpop.permute.xlu0 %290
        %292 = vrot.lane.b32.xlu0 %v255, 38
        %v293 = vpop.permute.xlu0 %292
        %294 = vrot.lane.b32.xlu0 %v256, 38
        %v295 = vpop.permute.xlu0 %294
        %296 = vrot.lane.b32.xlu0 %v253, 38
        %v297 = vpop.permute.xlu0 %296
        %298 = vrot.lane.b32.xlu0 %v264, 38
        %v299 = vpop.permute.xlu0 %298
        %300 = vrot.lane.b32.xlu0 %v265, 38
        %v301 = vpop.permute.xlu0 %300
        %302 = vrot.lane.b32.xlu0 %v262, 38
        %v303 = vpop.permute.xlu0 %302
        %304 = vrot.lane.b32.xlu0 %v273, 38
        %v305 = vpop.permute.xlu0 %304
        %306 = vrot.lane.b32.xlu0 %v274, 38
        %v307 = vpop.permute.xlu0 %306
        %308 = vrot.lane.b32.xlu0 %v271, 38
        %v309 = vpop.permute.xlu0 %308
        %vm310 = vcmask 310272
        %v311 = vsel %vm310, %v281, %v283
        %v312 = vsel %vm310, %v283, %v285
        %v313 = vsel %vm310, %v287, %v289
        %v314 = vsel %vm310, %v289, %v291
        %v315 = vsel %vm310, %v293, %v295
        %v316 = vsel %vm310, %v295, %v297
        %v317 = vsel %vm310, %v299, %v301
        %v318 = vsel %vm310, %v301, %v303
        %v319 = vsel %vm310, %v305, %v307
        %v320 = vsel %vm310, %v307, %v309
        %vm331 = vcmask 326656
        %v333 = vsel %vm331, %v278, 0
        %v336 = vsel %vm331, %v279, 0
        %338 = vmatprep.subr.mxu0 %v312
        %339 = vmatpush1.msra.mxu0 %v311
        %340 = vmatprep.subr.mxu0 %v314
        %341 = vmatpush1.msra.mxu0 %v313
        %342 = vmatprep.subr.mxu0 %v316
        %343 = vmatpush1.msra.mxu0 %v315
        %344 = vmatprep.subr.mxu0 %v318
        %345 = vmatpush1.msra.mxu0 %v317
        %346 = vmatprep.subr.mxu0 %v320
        %347 = vmatpush1.msra.mxu0 %v319
        %348 = vmatprep.subr.mxu0 0.0
        %349 = vmatpush1.msra.mxu0 0.0
        %350 = vmatprep.subr.mxu0 0.0
        %351 = vmatpush1.msra.mxu0 0.0
        %352 = vmatprep.subr.mxu0 0.0
        %353 = vmatpush1.msra.mxu0 0.0
        %354 = vmatprep.subr.mxu0 0.0
        %355 = vmatpush1.msra.mxu0 0.0
        %356 = vmatprep.subr.mxu0 0.0
        %357 = vmatpush1.msra.mxu0 0.0
        %358 = vmatprep.subr.mxu0 0.0
        %359 = vmatpush1.msra.mxu0 0.0
        %360 = vmatprep.subr.mxu0 0.0
        %361 = vmatpush1.msra.mxu0 0.0
        %362 = vmatprep.subr.mxu0 0.0
        %363 = vmatpush1.msra.mxu0 0.0
        %364 = vmatprep.subr.mxu0 0.0
        %365 = vmatpush1.msra.mxu0 0.0
        %366 = vmatprep.subr.mxu0 0.0
        %367 = vmatpush1.msra.mxu0 0.0
        %368 = vmatprep.subr.mxu0 0.0
        %369 = vmatpush1.msra.mxu0 0.0
        %370 = vmatprep.subr.mxu0 0.0
        %371 = vmatpush1.msra.mxu0 0.0
        %372 = vmatprep.subr.mxu0 0.0
        %373 = vmatpush1.msra.mxu0 0.0
        %374 = vmatprep.subr.mxu0 0.0
        %375 = vmatpush1.msra.mxu0 0.0
        %376 = vmatprep.subr.mxu0 0.0
        %377 = vmatpush1.msra.mxu0 0.0
        %378 = vmatprep.subr.mxu0 0.0
        %379 = vmatpush1.msra.mxu0 0.0
        %380 = vmatprep.subr.mxu0 0.0
        %381 = vmatpush1.msra.mxu0 0.0
        %382 = vmatprep.subr.mxu0 0.0
        %383 = vmatpush1.msra.mxu0 0.0
        %384 = vmatprep.subr.mxu0 0.0
        %385 = vmatpush1.msra.mxu0 0.0
        %386 = vmatprep.subr.mxu0 0.0
        %387 = vmatpush1.msra.mxu0 0.0
        %388 = vmatprep.subr.mxu0 0.0
        %389 = vmatpush1.msra.mxu0 0.0
        %390 = vmatprep.subr.mxu0 0.0
        %391 = vmatpush1.msra.mxu0 0.0
        %392 = vmatprep.subr.mxu0 0.0
        %393 = vmatpush1.msra.mxu0 0.0
        %394 = vmatprep.subr.mxu0 0.0
        %395 = vmatpush1.msra.mxu0 0.0
        %396 = vmatprep.subr.mxu0 0.0
        %397 = vmatpush1.msra.mxu0 0.0
        %398 = vmatprep.subr.mxu0 0.0
        %399 = vmatpush1.msra.mxu0 0.0
        %400 = vmatprep.subr.mxu0 0.0
        %401 = vmatpush1.msra.mxu0 0.0
        %402 = vmatprep.mubr.f32.mxu0 0.0
        %403 = vmatmul.mubr.f32.gmra.mrb[0].mxu0 %v333
        %v404 = vpop.f32.mrb[0].mxu0
        %v405 = vadd.f32 0.0, %v404
        %v406 = vpop.f32.mrb[0].mxu0
        %v407 = vadd.f32 0.0, %v406
        %408 = vmatprep.mubr.f32.mxu0 0.0
        %409 = vmatmul.mubr.f32.gmra.mrb[0].mxu0 %v336
        %v410 = vpop.f32.mrb[0].mxu0
        %v411 = vadd.f32 0.0, %v410
        %v412 = vpop.f32.mrb[0].mxu0
        %v413 = vadd.f32 0.0, %v412
        %414 = vdwg.mxu0
        %415 = vrot.lane.b32.xlu0 %v233, 74
        %v416 = vpop.permute.xlu0 %415
        %417 = vrot.lane.b32.xlu0 %v234, 74
        %v418 = vpop.permute.xlu0 %417
        %419 = vrot.lane.b32.xlu0 %v235, 74
        %v420 = vpop.permute.xlu0 %419
        %421 = vrot.lane.b32.xlu0 %v246, 74
        %v422 = vpop.permute.xlu0 %421
        %423 = vrot.lane.b32.xlu0 %v247, 74
        %v424 = vpop.permute.xlu0 %423
        %425 = vrot.lane.b32.xlu0 %v244, 74
        %v426 = vpop.permute.xlu0 %425
        %427 = vrot.lane.b32.xlu0 %v255, 74
        %v428 = vpop.permute.xlu0 %427
        %429 = vrot.lane.b32.xlu0 %v256, 74
        %v430 = vpop.permute.xlu0 %429
        %431 = vrot.lane.b32.xlu0 %v253, 74
        %v432 = vpop.permute.xlu0 %431
        %433 = vrot.lane.b32.xlu0 %v264, 74
        %v434 = vpop.permute.xlu0 %433
        %435 = vrot.lane.b32.xlu0 %v265, 74
        %v436 = vpop.permute.xlu0 %435
        %437 = vrot.lane.b32.xlu0 %v262, 74
        %v438 = vpop.permute.xlu0 %437
        %439 = vrot.lane.b32.xlu0 %v273, 74
        %v440 = vpop.permute.xlu0 %439
        %441 = vrot.lane.b32.xlu0 %v274, 74
        %v442 = vpop.permute.xlu0 %441
        %443 = vrot.lane.b32.xlu0 %v271, 74
        %v444 = vpop.permute.xlu0 %443
        %vm445 = vcmask 605184
        %v446 = vsel %vm445, %v416, %v418
        %v447 = vsel %vm445, %v418, %v420
        %v448 = vsel %vm445, %v422, %v424
        %v449 = vsel %vm445, %v424, %v426
        %v450 = vsel %vm445, %v428, %v430
        %v451 = vsel %vm445, %v430, %v432
        %v452 = vsel %vm445, %v434, %v436
        %v453 = vsel %vm445, %v436, %v438
        %v454 = vsel %vm445, %v440, %v442
        %v455 = vsel %vm445, %v442, %v444
        %v467 = vsel %vm331, %v275, 0
        %v470 = vsel %vm331, %v276, 0
        %472 = vmatprep.subr.mxu0 %v447
        %473 = vmatpush1.msra.mxu0 %v446
        %474 = vmatprep.subr.mxu0 %v449
        %475 = vmatpush1.msra.mxu0 %v448
        %476 = vmatprep.subr.mxu0 %v451
        %477 = vmatpush1.msra.mxu0 %v450
        %478 = vmatprep.subr.mxu0 %v453
        %479 = vmatpush1.msra.mxu0 %v452
        %480 = vmatprep.subr.mxu0 %v455
        %481 = vmatpush1.msra.mxu0 %v454
        %482 = vmatprep.subr.mxu0 0.0
        %483 = vmatpush1.msra.mxu0 0.0
        %484 = vmatprep.subr.mxu0 0.0
        %485 = vmatpush1.msra.mxu0 0.0
        %486 = vmatprep.subr.mxu0 0.0
        %487 = vmatpush1.msra.mxu0 0.0
        %488 = vmatprep.subr.mxu0 0.0
        %489 = vmatpush1.msra.mxu0 0.0
        %490 = vmatprep.subr.mxu0 0.0
        %491 = vmatpush1.msra.mxu0 0.0
        %492 = vmatprep.subr.mxu0 0.0
        %493 = vmatpush1.msra.mxu0 0.0
        %494 = vmatprep.subr.mxu0 0.0
        %495 = vmatpush1.msra.mxu0 0.0
        %496 = vmatprep.subr.mxu0 0.0
        %497 = vmatpush1.msra.mxu0 0.0
        %498 = vmatprep.subr.mxu0 0.0
        %499 = vmatpush1.msra.mxu0 0.0
        %500 = vmatprep.subr.mxu0 0.0
        %501 = vmatpush1.msra.mxu0 0.0
        %502 = vmatprep.subr.mxu0 0.0
        %503 = vmatpush1.msra.mxu0 0.0
        %504 = vmatprep.subr.mxu0 0.0
        %505 = vmatpush1.msra.mxu0 0.0
        %506 = vmatprep.subr.mxu0 0.0
        %507 = vmatpush1.msra.mxu0 0.0
        %508 = vmatprep.subr.mxu0 0.0
        %509 = vmatpush1.msra.mxu0 0.0
        %510 = vmatprep.subr.mxu0 0.0
        %511 = vmatpush1.msra.mxu0 0.0
        %512 = vmatprep.subr.mxu0 0.0
        %513 = vmatpush1.msra.mxu0 0.0
        %514 = vmatprep.subr.mxu0 0.0
        %515 = vmatpush1.msra.mxu0 0.0
        %516 = vmatprep.subr.mxu0 0.0
        %517 = vmatpush1.msra.mxu0 0.0
        %518 = vmatprep.subr.mxu0 0.0
        %519 = vmatpush1.msra.mxu0 0.0
        %520 = vmatprep.subr.mxu0 0.0
        %521 = vmatpush1.msra.mxu0 0.0
        %522 = vmatprep.subr.mxu0 0.0
        %523 = vmatpush1.msra.mxu0 0.0
        %524 = vmatprep.subr.mxu0 0.0
        %525 = vmatpush1.msra.mxu0 0.0
        %526 = vmatprep.subr.mxu0 0.0
        %527 = vmatpush1.msra.mxu0 0.0
        %528 = vmatprep.subr.mxu0 0.0
        %529 = vmatpush1.msra.mxu0 0.0
        %530 = vmatprep.subr.mxu0 0.0
        %531 = vmatpush1.msra.mxu0 0.0
        %532 = vmatprep.subr.mxu0 0.0
        %533 = vmatpush1.msra.mxu0 0.0
        %534 = vmatprep.subr.mxu0 0.0
        %535 = vmatpush1.msra.mxu0 0.0
        %536 = vmatprep.mubr.f32.mxu0 0.0
        %537 = vmatmul.mubr.f32.gmra.mrb[0].mxu0 %v467
        %v538 = vpop.f32.mrb[0].mxu0
        %v539 = vadd.f32 %v405, %v538
        %v540 = vpop.f32.mrb[0].mxu0
        %v541 = vadd.f32 %v407, %v540
        %542 = vmatprep.mubr.f32.mxu0 0.0
        %543 = vmatmul.mubr.f32.gmra.mrb[0].mxu0 %v470
        %v544 = vpop.f32.mrb[0].mxu0
        %v545 = vadd.f32 %v411, %v544
        %v546 = vpop.f32.mrb[0].mxu0
        %v547 = vadd.f32 %v413, %v546
        %548 = vdwg.mxu0
        %v549 = vld [vmem:[%s200] sm:$0xff]
        %v550 = vld [vmem:[%s200 + $0x8] sm:$0xff]
        %v551 = vld [vmem:[%s200 + $0x10] sm:$0xff]
        %v552 = vld [vmem:[%s200 + $0x18] sm:$0xff]
        %556 = vrot.lane.b32.xlu0 %v549, 127
        %v557 = vpop.permute.xlu0 %556
        %558 = vrot.lane.b32.xlu0 %v550, 127
        %v559 = vpop.permute.xlu0 %558
        %560 = vrot.lane.b32.xlu0 %v551, 127
        %v561 = vpop.permute.xlu0 %560
        %v562 = vsel %vm245, %v557, %v559
        %v563 = vsel %vm245, %v559, %v561
        %564 = vrot.lane.b32.xlu0 %v550, 126
        %v565 = vpop.permute.xlu0 %564
        %566 = vrot.lane.b32.xlu0 %v551, 126
        %v567 = vpop.permute.xlu0 %566
        %v568 = vsel %vm254, %v565, %v567
        %570 = vrot.lane.b32.xlu0 %v550, 125
        %v571 = vpop.permute.xlu0 %570
        %572 = vrot.lane.b32.xlu0 %v551, 125
        %v573 = vpop.permute.xlu0 %572
        %574 = vrot.lane.b32.xlu0 %v552, 125
        %v575 = vpop.permute.xlu0 %574
        %v576 = vsel %vm263, %v571, %v573
        %v577 = vsel %vm263, %v573, %v575
        %578 = vrot.lane.b32.xlu0 %v550, 124
        %v579 = vpop.permute.xlu0 %578
        %580 = vrot.lane.b32.xlu0 %v551, 124
        %v581 = vpop.permute.xlu0 %580
        %582 = vrot.lane.b32.xlu0 %v552, 124
        %v583 = vpop.permute.xlu0 %582
        %v584 = vsel %vm272, %v579, %v581
        %v585 = vsel %vm272, %v581, %v583
        %s586 = scalar_lea.vmem [#allocation5], 32
        %v587 = vld [vmem:[%s586] sm:$0xff]
        %v588 = vld [vmem:[%s586 + $0x8] sm:$0xff]
        %589 = vrot.lane.b32.xlu0 %v549, 2
        %v590 = vpop.permute.xlu0 %589
        %591 = vrot.lane.b32.xlu0 %v550, 2
        %v592 = vpop.permute.xlu0 %591
        %593 = vrot.lane.b32.xlu0 %v551, 2
        %v594 = vpop.permute.xlu0 %593
        %595 = vrot.lane.b32.xlu0 %v562, 2
        %v596 = vpop.permute.xlu0 %595
        %597 = vrot.lane.b32.xlu0 %v563, 2
        %v598 = vpop.permute.xlu0 %597
        %599 = vrot.lane.b32.xlu0 %v561, 2
        %v600 = vpop.permute.xlu0 %599
        %601 = vrot.lane.b32.xlu0 %v565, 2
        %v602 = vpop.permute.xlu0 %601
        %603 = vrot.lane.b32.xlu0 %v568, 2
        %v604 = vpop.permute.xlu0 %603
        %605 = vrot.lane.b32.xlu0 %v567, 2
        %v606 = vpop.permute.xlu0 %605
        %607 = vrot.lane.b32.xlu0 %v571, 2
        %v608 = vpop.permute.xlu0 %607
        %609 = vrot.lane.b32.xlu0 %v576, 2
        %v610 = vpop.permute.xlu0 %609
        %611 = vrot.lane.b32.xlu0 %v577, 2
        %v612 = vpop.permute.xlu0 %611
        %613 = vrot.lane.b32.xlu0 %v579, 2
        %v614 = vpop.permute.xlu0 %613
        %615 = vrot.lane.b32.xlu0 %v584, 2
        %v616 = vpop.permute.xlu0 %615
        %617 = vrot.lane.b32.xlu0 %v585, 2
        %v618 = vpop.permute.xlu0 %617
        %vm619 = vcmask 15360
        %v620 = vsel %vm619, %v590, %v592
        %v621 = vsel %vm619, %v592, %v594
        %v622 = vsel %vm619, %v596, %v598
        %v623 = vsel %vm619, %v598, %v600
        %v624 = vsel %vm619, %v602, %v604
        %v625 = vsel %vm619, %v604, %v606
        %v626 = vsel %vm619, %v608, %v610
        %v627 = vsel %vm619, %v610, %v612
        %v628 = vsel %vm619, %v614, %v616
        %v629 = vsel %vm619, %v616, %v618
        %v641 = vsel %vm331, %v587, 0
        %v644 = vsel %vm331, %v588, 0
        %646 = vmatprep.subr.mxu0 %v621
        %647 = vmatpush1.msra.mxu0 %v620
        %648 = vmatprep.subr.mxu0 %v623
        %649 = vmatpush1.msra.mxu0 %v622
        %650 = vmatprep.subr.mxu0 %v625
        %651 = vmatpush1.msra.mxu0 %v624
        %652 = vmatprep.subr.mxu0 %v627
        %653 = vmatpush1.msra.mxu0 %v626
        %654 = vmatprep.subr.mxu0 %v629
        %655 = vmatpush1.msra.mxu0 %v628
        %656 = vmatprep.subr.mxu0 0.0
        %657 = vmatpush1.msra.mxu0 0.0
        %658 = vmatprep.subr.mxu0 0.0
        %659 = vmatpush1.msra.mxu0 0.0
        %660 = vmatprep.subr.mxu0 0.0
        %661 = vmatpush1.msra.mxu0 0.0
        %662 = vmatprep.subr.mxu0 0.0
        %663 = vmatpush1.msra.mxu0 0.0
        %664 = vmatprep.subr.mxu0 0.0
        %665 = vmatpush1.msra.mxu0 0.0
        %666 = vmatprep.subr.mxu0 0.0
        %667 = vmatpush1.msra.mxu0 0.0
        %668 = vmatprep.subr.mxu0 0.0
        %669 = vmatpush1.msra.mxu0 0.0
        %670 = vmatprep.subr.mxu0 0.0
        %671 = vmatpush1.msra.mxu0 0.0
        %672 = vmatprep.subr.mxu0 0.0
        %673 = vmatpush1.msra.mxu0 0.0
        %674 = vmatprep.subr.mxu0 0.0
        %675 = vmatpush1.msra.mxu0 0.0
        %676 = vmatprep.subr.mxu0 0.0
        %677 = vmatpush1.msra.mxu0 0.0
        %678 = vmatprep.subr.mxu0 0.0
        %679 = vmatpush1.msra.mxu0 0.0
        %680 = vmatprep.subr.mxu0 0.0
        %681 = vmatpush1.msra.mxu0 0.0
        %682 = vmatprep.subr.mxu0 0.0
        %683 = vmatpush1.msra.mxu0 0.0
        %684 = vmatprep.subr.mxu0 0.0
        %685 = vmatpush1.msra.mxu0 0.0
        %686 = vmatprep.subr.mxu0 0.0
        %687 = vmatpush1.msra.mxu0 0.0
        %688 = vmatprep.subr.mxu0 0.0
        %689 = vmatpush1.msra.mxu0 0.0
        %690 = vmatprep.subr.mxu0 0.0
        %691 = vmatpush1.msra.mxu0 0.0
        %692 = vmatprep.subr.mxu0 0.0
        %693 = vmatpush1.msra.mxu0 0.0
        %694 = vmatprep.subr.mxu0 0.0
        %695 = vmatpush1.msra.mxu0 0.0
        %696 = vmatprep.subr.mxu0 0.0
        %697 = vmatpush1.msra.mxu0 0.0
        %698 = vmatprep.subr.mxu0 0.0
        %699 = vmatpush1.msra.mxu0 0.0
        %700 = vmatprep.subr.mxu0 0.0
        %701 = vmatpush1.msra.mxu0 0.0
        %702 = vmatprep.subr.mxu0 0.0
        %703 = vmatpush1.msra.mxu0 0.0
        %704 = vmatprep.subr.mxu0 0.0
        %705 = vmatpush1.msra.mxu0 0.0
        %706 = vmatprep.subr.mxu0 0.0
        %707 = vmatpush1.msra.mxu0 0.0
        %708 = vmatprep.subr.mxu0 0.0
        %709 = vmatpush1.msra.mxu0 0.0
        %710 = vmatprep.mubr.f32.mxu0 0.0
        %711 = vmatmul.mubr.f32.gmra.mrb[0].mxu0 %v641
        %v712 = vpop.f32.mrb[0].mxu0
        %v713 = vadd.f32 0.0, %v712
        %v714 = vpop.f32.mrb[0].mxu0
        %v715 = vadd.f32 0.0, %v714
        %716 = vmatprep.mubr.f32.mxu0 0.0
        %717 = vmatmul.mubr.f32.gmra.mrb[0].mxu0 %v644
        %v718 = vpop.f32.mrb[0].mxu0
        %v719 = vadd.f32 0.0, %v718
        %v720 = vpop.f32.mrb[0].mxu0
        %v721 = vadd.f32 0.0, %v720
        %722 = vdwg.mxu0
        %v723 = vadd.f32 %v539, %v713
        %v724 = vadd.f32 %v541, %v715
        %v725 = vadd.f32 %v545, %v719
        %v726 = vadd.f32 %v547, %v721
        %727 = vrot.lane.b32.xlu0 %v552, 127
        %v728 = vpop.permute.xlu0 %727
        %v729 = vsel %vm245, %v561, %v728
        %730 = vrot.lane.b32.xlu0 %v552, 126
        %v731 = vpop.permute.xlu0 %730
        %v732 = vsel %vm254, %v567, %v731
        %s733 = scalar_lea.vmem [#allocation5], 48
        %v734 = vld [vmem:[%s733] sm:$0xff]
        %v735 = vld [vmem:[%s733 + $0x8] sm:$0xff]
        %736 = vrot.lane.b32.xlu0 %v550, 94
        %v737 = vpop.permute.xlu0 %736
        %738 = vrot.lane.b32.xlu0 %v551, 94
        %v739 = vpop.permute.xlu0 %738
        %740 = vrot.lane.b32.xlu0 %v552, 94
        %v741 = vpop.permute.xlu0 %740
        %742 = vrot.lane.b32.xlu0 %v563, 94
        %v743 = vpop.permute.xlu0 %742
        %744 = vrot.lane.b32.xlu0 %v729, 94
        %v745 = vpop.permute.xlu0 %744
        %746 = vrot.lane.b32.xlu0 %v728, 94
        %v747 = vpop.permute.xlu0 %746
        %748 = vrot.lane.b32.xlu0 %v568, 94
        %v749 = vpop.permute.xlu0 %748
        %750 = vrot.lane.b32.xlu0 %v732, 94
        %v751 = vpop.permute.xlu0 %750
        %752 = vrot.lane.b32.xlu0 %v731, 94
        %v753 = vpop.permute.xlu0 %752
        %754 = vrot.lane.b32.xlu0 %v576, 94
        %v755 = vpop.permute.xlu0 %754
        %756 = vrot.lane.b32.xlu0 %v577, 94
        %v757 = vpop.permute.xlu0 %756
        %758 = vrot.lane.b32.xlu0 %v575, 94
        %v759 = vpop.permute.xlu0 %758
        %760 = vrot.lane.b32.xlu0 %v584, 94
        %v761 = vpop.permute.xlu0 %760
        %762 = vrot.lane.b32.xlu0 %v585, 94
        %v763 = vpop.permute.xlu0 %762
        %764 = vrot.lane.b32.xlu0 %v583, 94
        %v765 = vpop.permute.xlu0 %764
        %vm766 = vcmask 769024
        %v767 = vsel %vm766, %v737, %v739
        %v768 = vsel %vm766, %v739, %v741
        %v769 = vsel %vm766, %v743, %v745
        %v770 = vsel %vm766, %v745, %v747
        %v771 = vsel %vm766, %v749, %v751
        %v772 = vsel %vm766, %v751, %v753
        %v773 = vsel %vm766, %v755, %v757
        %v774 = vsel %vm766, %v757, %v759
        %v775 = vsel %vm766, %v761, %v763
        %v776 = vsel %vm766, %v763, %v765
        %v788 = vsel %vm331, %v734, 0
        %v791 = vsel %vm331, %v735, 0
        %793 = vmatprep.subr.mxu0 %v768
        %794 = vmatpush1.msra.mxu0 %v767
        %795 = vmatprep.subr.mxu0 %v770
        %796 = vmatpush1.msra.mxu0 %v769
        %797 = vmatprep.subr.mxu0 %v772
        %798 = vmatpush1.msra.mxu0 %v771
        %799 = vmatprep.subr.mxu0 %v774
        %800 = vmatpush1.msra.mxu0 %v773
        %801 = vmatprep.subr.mxu0 %v776
        %802 = vmatpush1.msra.mxu0 %v775
        %803 = vmatprep.subr.mxu0 0.0
        %804 = vmatpush1.msra.mxu0 0.0
        %805 = vmatprep.subr.mxu0 0.0
        %806 = vmatpush1.msra.mxu0 0.0
        %807 = vmatprep.subr.mxu0 0.0
        %808 = vmatpush1.msra.mxu0 0.0
        %809 = vmatprep.subr.mxu0 0.0
        %810 = vmatpush1.msra.mxu0 0.0
        %811 = vmatprep.subr.mxu0 0.0
        %812 = vmatpush1.msra.mxu0 0.0
        %813 = vmatprep.subr.mxu0 0.0
        %814 = vmatpush1.msra.mxu0 0.0
        %815 = vmatprep.subr.mxu0 0.0
        %816 = vmatpush1.msra.mxu0 0.0
        %817 = vmatprep.subr.mxu0 0.0
        %818 = vmatpush1.msra.mxu0 0.0
        %819 = vmatprep.subr.mxu0 0.0
        %820 = vmatpush1.msra.mxu0 0.0
        %821 = vmatprep.subr.mxu0 0.0
        %822 = vmatpush1.msra.mxu0 0.0
        %823 = vmatprep.subr.mxu0 0.0
        %824 = vmatpush1.msra.mxu0 0.0
        %825 = vmatprep.subr.mxu0 0.0
        %826 = vmatpush1.msra.mxu0 0.0
        %827 = vmatprep.subr.mxu0 0.0
        %828 = vmatpush1.msra.mxu0 0.0
        %829 = vmatprep.subr.mxu0 0.0
        %830 = vmatpush1.msra.mxu0 0.0
        %831 = vmatprep.subr.mxu0 0.0
        %832 = vmatpush1.msra.mxu0 0.0
        %833 = vmatprep.subr.mxu0 0.0
        %834 = vmatpush1.msra.mxu0 0.0
        %835 = vmatprep.subr.mxu0 0.0
        %836 = vmatpush1.msra.mxu0 0.0
        %837 = vmatprep.subr.mxu0 0.0
        %838 = vmatpush1.msra.mxu0 0.0
        %839 = vmatprep.subr.mxu0 0.0
        %840 = vmatpush1.msra.mxu0 0.0
        %841 = vmatprep.subr.mxu0 0.0
        %842 = vmatpush1.msra.mxu0 0.0
        %843 = vmatprep.subr.mxu0 0.0
        %844 = vmatpush1.msra.mxu0 0.0
        %845 = vmatprep.subr.mxu0 0.0
        %846 = vmatpush1.msra.mxu0 0.0
        %847 = vmatprep.subr.mxu0 0.0
        %848 = vmatpush1.msra.mxu0 0.0
        %849 = vmatprep.subr.mxu0 0.0
        %850 = vmatpush1.msra.mxu0 0.0
        %851 = vmatprep.subr.mxu0 0.0
        %852 = vmatpush1.msra.mxu0 0.0
        %853 = vmatprep.subr.mxu0 0.0
        %854 = vmatpush1.msra.mxu0 0.0
        %855 = vmatprep.subr.mxu0 0.0
        %856 = vmatpush1.msra.mxu0 0.0
        %857 = vmatprep.mubr.f32.mxu0 0.0
        %858 = vmatmul.mubr.f32.gmra.mrb[0].mxu0 %v788
        %v859 = vpop.f32.mrb[0].mxu0
        %v860 = vadd.f32 0.0, %v859
        %v861 = vpop.f32.mrb[0].mxu0
        %v862 = vadd.f32 0.0, %v861
        %863 = vmatprep.mubr.f32.mxu0 0.0
        %864 = vmatmul.mubr.f32.gmra.mrb[0].mxu0 %v791
        %v865 = vpop.f32.mrb[0].mxu0
        %v866 = vadd.f32 0.0, %v865
        %v867 = vpop.f32.mrb[0].mxu0
        %v868 = vadd.f32 0.0, %v867
        %869 = vdwg.mxu0
        %v870 = vadd.f32 %v723, %v860
        %v871 = vadd.f32 %v724, %v862
        %v872 = vadd.f32 %v725, %v866
        %v873 = vadd.f32 %v726, %v868
        %s874 = scalar_lea.vmem [#allocation5], 64
        %v875 = vld [vmem:[%s874] sm:$0xff]
        %v876 = vld [vmem:[%s874 + $0x8] sm:$0xff]
        %877 = vrot.lane.b32.xlu0 %v550, 58
        %v878 = vpop.permute.xlu0 %877
        %879 = vrot.lane.b32.xlu0 %v551, 58
        %v880 = vpop.permute.xlu0 %879
        %881 = vrot.lane.b32.xlu0 %v552, 58
        %v882 = vpop.permute.xlu0 %881
        %883 = vrot.lane.b32.xlu0 %v563, 58
        %v884 = vpop.permute.xlu0 %883
        %885 = vrot.lane.b32.xlu0 %v729, 58
        %v886 = vpop.permute.xlu0 %885
        %887 = vrot.lane.b32.xlu0 %v728, 58
        %v888 = vpop.permute.xlu0 %887
        %889 = vrot.lane.b32.xlu0 %v568, 58
        %v890 = vpop.permute.xlu0 %889
        %891 = vrot.lane.b32.xlu0 %v732, 58
        %v892 = vpop.permute.xlu0 %891
        %893 = vrot.lane.b32.xlu0 %v731, 58
        %v894 = vpop.permute.xlu0 %893
        %895 = vrot.lane.b32.xlu0 %v576, 58
        %v896 = vpop.permute.xlu0 %895
        %897 = vrot.lane.b32.xlu0 %v577, 58
        %v898 = vpop.permute.xlu0 %897
        %899 = vrot.lane.b32.xlu0 %v575, 58
        %v900 = vpop.permute.xlu0 %899
        %901 = vrot.lane.b32.xlu0 %v584, 58
        %v902 = vpop.permute.xlu0 %901
        %903 = vrot.lane.b32.xlu0 %v585, 58
        %v904 = vpop.permute.xlu0 %903
        %905 = vrot.lane.b32.xlu0 %v583, 58
        %v906 = vpop.permute.xlu0 %905
        %vm907 = vcmask 474112
        %v908 = vsel %vm907, %v878, %v880
        %v909 = vsel %vm907, %v880, %v882
        %v910 = vsel %vm907, %v884, %v886
        %v911 = vsel %vm907, %v886, %v888
        %v912 = vsel %vm907, %v890, %v892
        %v913 = vsel %vm907, %v892, %v894
        %v914 = vsel %vm907, %v896, %v898
        %v915 = vsel %vm907, %v898, %v900
        %v916 = vsel %vm907, %v902, %v904
        %v917 = vsel %vm907, %v904, %v906
        %v929 = vsel %vm331, %v875, 0
        %v932 = vsel %vm331, %v876, 0
        %934 = vmatprep.subr.mxu0 %v909
        %935 = vmatpush1.msra.mxu0 %v908
        %936 = vmatprep.subr.mxu0 %v911
        %937 = vmatpush1.msra.mxu0 %v910
        %938 = vmatprep.subr.mxu0 %v913
        %939 = vmatpush1.msra.mxu0 %v912
        %940 = vmatprep.subr.mxu0 %v915
        %941 = vmatpush1.msra.mxu0 %v914
        %942 = vmatprep.subr.mxu0 %v917
        %943 = vmatpush1.msra.mxu0 %v916
        %944 = vmatprep.subr.mxu0 0.0
        %945 = vmatpush1.msra.mxu0 0.0
        %946 = vmatprep.subr.mxu0 0.0
        %947 = vmatpush1.msra.mxu0 0.0
        %948 = vmatprep.subr.mxu0 0.0
        %949 = vmatpush1.msra.mxu0 0.0
        %950 = vmatprep.subr.mxu0 0.0
        %951 = vmatpush1.msra.mxu0 0.0
        %952 = vmatprep.subr.mxu0 0.0
        %953 = vmatpush1.msra.mxu0 0.0
        %954 = vmatprep.subr.mxu0 0.0
        %955 = vmatpush1.msra.mxu0 0.0
        %956 = vmatprep.subr.mxu0 0.0
        %957 = vmatpush1.msra.mxu0 0.0
        %958 = vmatprep.subr.mxu0 0.0
        %959 = vmatpush1.msra.mxu0 0.0
        %960 = vmatprep.subr.mxu0 0.0
        %961 = vmatpush1.msra.mxu0 0.0
        %962 = vmatprep.subr.mxu0 0.0
        %963 = vmatpush1.msra.mxu0 0.0
        %964 = vmatprep.subr.mxu0 0.0
        %965 = vmatpush1.msra.mxu0 0.0
        %966 = vmatprep.subr.mxu0 0.0
        %967 = vmatpush1.msra.mxu0 0.0
        %968 = vmatprep.subr.mxu0 0.0
        %969 = vmatpush1.msra.mxu0 0.0
        %970 = vmatprep.subr.mxu0 0.0
        %971 = vmatpush1.msra.mxu0 0.0
        %972 = vmatprep.subr.mxu0 0.0
        %973 = vmatpush1.msra.mxu0 0.0
        %974 = vmatprep.subr.mxu0 0.0
        %975 = vmatpush1.msra.mxu0 0.0
        %976 = vmatprep.subr.mxu0 0.0
        %977 = vmatpush1.msra.mxu0 0.0
        %978 = vmatprep.subr.mxu0 0.0
        %979 = vmatpush1.msra.mxu0 0.0
        %980 = vmatprep.subr.mxu0 0.0
        %981 = vmatpush1.msra.mxu0 0.0
        %982 = vmatprep.subr.mxu0 0.0
        %983 = vmatpush1.msra.mxu0 0.0
        %984 = vmatprep.subr.mxu0 0.0
        %985 = vmatpush1.msra.mxu0 0.0
        %986 = vmatprep.subr.mxu0 0.0
        %987 = vmatpush1.msra.mxu0 0.0
        %988 = vmatprep.subr.mxu0 0.0
        %989 = vmatpush1.msra.mxu0 0.0
        %990 = vmatprep.subr.mxu0 0.0
        %991 = vmatpush1.msra.mxu0 0.0
        %992 = vmatprep.subr.mxu0 0.0
        %993 = vmatpush1.msra.mxu0 0.0
        %994 = vmatprep.subr.mxu0 0.0
        %995 = vmatpush1.msra.mxu0 0.0
        %996 = vmatprep.subr.mxu0 0.0
        %997 = vmatpush1.msra.mxu0 0.0
        %998 = vmatprep.mubr.f32.mxu0 0.0
        %999 = vmatmul.mubr.f32.gmra.mrb[0].mxu0 %v929
        %v1000 = vpop.f32.mrb[0].mxu0
        %v1001 = vadd.f32 0.0, %v1000
        %v1002 = vpop.f32.mrb[0].mxu0
        %v1003 = vadd.f32 0.0, %v1002
        %1004 = vmatprep.mubr.f32.mxu0 0.0
        %1005 = vmatmul.mubr.f32.gmra.mrb[0].mxu0 %v932
        %v1006 = vpop.f32.mrb[0].mxu0
        %v1007 = vadd.f32 0.0, %v1006
        %v1008 = vpop.f32.mrb[0].mxu0
        %v1009 = vadd.f32 0.0, %v1008
        %1010 = vdwg.mxu0
        %v1011 = vadd.f32 %v870, %v1001
        %v1012 = vadd.f32 %v871, %v1003
        %v1013 = vadd.f32 %v872, %v1007
        %v1014 = vadd.f32 %v873, %v1009
        %v1015 = vld [vmem:[%s2] sm:$0xff]
        %v1016 = vld [vmem:[%s2 + $0x8] sm:$0xff]
        %1018 = vset.pattern.permute.xlu0 0
        %1019 = vperm.xlu0 %1018, %v1015
        %v1020 = vpop.permute.xlu0 %1019
        %1023 = vset.pattern.permute.xlu0 0
        %1024 = vperm.xlu0 %1023, %v1016
        %v1025 = vpop.permute.xlu0 %1024
        %v1027 = vadd.f32 %v1011, %v1020
        %v1028 = vadd.f32 %v1012, %v1020
        %v1029 = vadd.f32 %v1013, %v1025
        %v1030 = vadd.f32 %v1014, %v1025
        %v1031 = vmax.f32 %v1027, 0.0
        %v1032 = vmax.f32 %v1028, 0.0
        %v1033 = vmax.f32 %v1029, 0.0
        %v1034 = vmax.f32 %v1030, 0.0
        %v1035 = vld [vmem:[%s3] sm:$0x3]
        %v1037 = vlaneseq
        %v1038 = vshrl.u32 %v1037, 7
        %v1039 = vsub.s32 0, %v1038
        %v1040 = vrot.slane %v1035, %v1039
        %v1041 = vlaneseq
        %v1042 = vshrl.u32 %v1041, 7
        %v1043 = vsub.s32 1, %v1042
        %v1044 = vrot.slane %v1035, %v1043
        %v1047 = vmul.f32 %v1031, %v1040
        %v1048 = vmul.f32 %v1032, %v1044
        %v1049 = vmul.f32 %v1033, %v1040
        %v1050 = vmul.f32 %v1034, %v1044
        %1051 = vst [vmem:[%s228 + $0x8] sm:$0xff] %v1047
        %1052 = vst [vmem:[%s228 + $0x10] sm:$0xff] %v1048
        %1053 = vst [vmem:[%s228 + $0x78] sm:$0xff] %v1049
        %1054 = vst [vmem:[%s228 + $0x80] sm:$0xff] %v1050
        %v1055 = vld [vmem:[%s200 + $0x10] sm:$0xff]
        %v1056 = vld [vmem:[%s200 + $0x18] sm:$0xff]
        %v1057 = vld [vmem:[%s200 + $0x20] sm:$0xff]
        %1061 = vrot.lane.b32.xlu0 %v1055, 127
        %v1062 = vpop.permute.xlu0 %1061
        %1063 = vrot.lane.b32.xlu0 %v1056, 127
        %v1064 = vpop.permute.xlu0 %1063
        %1065 = vrot.lane.b32.xlu0 %v1057, 127
        %v1066 = vpop.permute.xlu0 %1065
        %v1067 = vsel %vm245, %v1062, %v1064
        %v1068 = vsel %vm245, %v1064, %v1066
        %1069 = vrot.lane.b32.xlu0 %v1055, 126
        %v1070 = vpop.permute.xlu0 %1069
        %1071 = vrot.lane.b32.xlu0 %v1056, 126
        %v1072 = vpop.permute.xlu0 %1071
        %1073 = vrot.lane.b32.xlu0 %v1057, 126
        %v1074 = vpop.permute.xlu0 %1073
        %v1075 = vsel %vm254, %v1070, %v1072
        %v1076 = vsel %vm254, %v1072, %v1074
        %1077 = vrot.lane.b32.xlu0 %v1055, 125
        %v1078 = vpop.permute.xlu0 %1077
        %1079 = vrot.lane.b32.xlu0 %v1056, 125
        %v1080 = vpop.permute.xlu0 %1079
        %1081 = vrot.lane.b32.xlu0 %v1057, 125
        %v1082 = vpop.permute.xlu0 %1081
        %v1083 = vsel %vm263, %v1078, %v1080
        %v1084 = vsel %vm263, %v1080, %v1082
        %1085 = vrot.lane.b32.xlu0 %v1055, 124
        %v1086 = vpop.permute.xlu0 %1085
        %1087 = vrot.lane.b32.xlu0 %v1056, 124
        %v1088 = vpop.permute.xlu0 %1087
        %1089 = vrot.lane.b32.xlu0 %v1057, 124
        %v1090 = vpop.permute.xlu0 %1089
        %v1091 = vsel %vm272, %v1086, %v1088
        %v1092 = vsel %vm272, %v1088, %v1090
        %v1093 = vld [vmem:[#allocation5] sm:$0xff]
        %v1094 = vld [vmem:[#allocation5 + $0x8] sm:$0xff]
        %v1095 = vld [vmem:[%s277] sm:$0xff]
        %v1096 = vld [vmem:[%s277 + $0x8] sm:$0xff]
        %1097 = vrot.lane.b32.xlu0 %v1055, 38
        %v1098 = vpop.permute.xlu0 %1097
        %1099 = vrot.lane.b32.xlu0 %v1056, 38
        %v1100 = vpop.permute.xlu0 %1099
        %1101 = vrot.lane.b32.xlu0 %v1057, 38
        %v1102 = vpop.permute.xlu0 %1101
        %1103 = vrot.lane.b32.xlu0 %v1067, 38
        %v1104 = vpop.permute.xlu0 %1103
        %1105 = vrot.lane.b32.xlu0 %v1068, 38
        %v1106 = vpop.permute.xlu0 %1105
        %1107 = vrot.lane.b32.xlu0 %v1066, 38
        %v1108 = vpop.permute.xlu0 %1107
        %1109 = vrot.lane.b32.xlu0 %v1075, 38
        %v1110 = vpop.permute.xlu0 %1109
        %1111 = vrot.lane.b32.xlu0 %v1076, 38
        %v1112 = vpop.permute.xlu0 %1111
        %1113 = vrot.lane.b32.xlu0 %v1074, 38
        %v1114 = vpop.permute.xlu0 %1113
        %1115 = vrot.lane.b32.xlu0 %v1083, 38
        %v1116 = vpop.permute.xlu0 %1115
        %1117 = vrot.lane.b32.xlu0 %v1084, 38
        %v1118 = vpop.permute.xlu0 %1117
        %1119 = vrot.lane.b32.xlu0 %v1082, 38
        %v1120 = vpop.permute.xlu0 %1119
        %1121 = vrot.lane.b32.xlu0 %v1091, 38
        %v1122 = vpop.permute.xlu0 %1121
        %1123 = vrot.lane.b32.xlu0 %v1092, 38
        %v1124 = vpop.permute.xlu0 %1123
        %1125 = vrot.lane.b32.xlu0 %v1090, 38
        %v1126 = vpop.permute.xlu0 %1125
        %v1127 = vsel %vm310, %v1098, %v1100
        %v1128 = vsel %vm310, %v1100, %v1102
        %v1129 = vsel %vm310, %v1104, %v1106
        %v1130 = vsel %vm310, %v1106, %v1108
        %v1131 = vsel %vm310, %v1110, %v1112
        %v1132 = vsel %vm310, %v1112, %v1114
        %v1133 = vsel %vm310, %v1116, %v1118
        %v1134 = vsel %vm310, %v1118, %v1120
        %v1135 = vsel %vm310, %v1122, %v1124
        %v1136 = vsel %vm310, %v1124, %v1126
        %v1148 = vsel %vm331, %v1095, 0
        %v1151 = vsel %vm331, %v1096, 0
        %1153 = vmatprep.subr.mxu0 %v1128
        %1154 = vmatpush1.msra.mxu0 %v1127
        %1155 = vmatprep.subr.mxu0 %v1130
        %1156 = vmatpush1.msra.mxu0 %v1129
        %1157 = vmatprep.subr.mxu0 %v1132
        %1158 = vmatpush1.msra.mxu0 %v1131
        %1159 = vmatprep.subr.mxu0 %v1134
        %1160 = vmatpush1.msra.mxu0 %v1133
        %1161 = vmatprep.subr.mxu0 %v1136
        %1162 = vmatpush1.msra.mxu0 %v1135
        %1163 = vmatprep.subr.mxu0 0.0
        %1164 = vmatpush1.msra.mxu0 0.0
        %1165 = vmatprep.subr.mxu0 0.0
        %1166 = vmatpush1.msra.mxu0 0.0
        %1167 = vmatprep.subr.mxu0 0.0
        %1168 = vmatpush1.msra.mxu0 0.0
        %1169 = vmatprep.subr.mxu0 0.0
        %1170 = vmatpush1.msra.mxu0 0.0
        %1171 = vmatprep.subr.mxu0 0.0
        %1172 = vmatpush1.msra.mxu0 0.0
        %1173 = vmatprep.subr.mxu0 0.0
        %1174 = vmatpush1.msra.mxu0 0.0
        %1175 = vmatprep.subr.mxu0 0.0
        %1176 = vmatpush1.msra.mxu0 0.0
        %1177 = vmatprep.subr.mxu0 0.0
        %1178 = vmatpush1.msra.mxu0 0.0
        %1179 = vmatprep.subr.mxu0 0.0
        %1180 = vmatpush1.msra.mxu0 0.0
        %1181 = vmatprep.subr.mxu0 0.0
        %1182 = vmatpush1.msra.mxu0 0.0
        %1183 = vmatprep.subr.mxu0 0.0
        %1184 = vmatpush1.msra.mxu0 0.0
        %1185 = vmatprep.subr.mxu0 0.0
        %1186 = vmatpush1.msra.mxu0 0.0
        %1187 = vmatprep.subr.mxu0 0.0
        %1188 = vmatpush1.msra.mxu0 0.0
        %1189 = vmatprep.subr.mxu0 0.0
        %1190 = vmatpush1.msra.mxu0 0.0
        %1191 = vmatprep.subr.mxu0 0.0
        %1192 = vmatpush1.msra.mxu0 0.0
        %1193 = vmatprep.subr.mxu0 0.0
        %1194 = vmatpush1.msra.mxu0 0.0
        %1195 = vmatprep.subr.mxu0 0.0
        %1196 = vmatpush1.msra.mxu0 0.0
        %1197 = vmatprep.subr.mxu0 0.0
        %1198 = vmatpush1.msra.mxu0 0.0
        %1199 = vmatprep.subr.mxu0 0.0
        %1200 = vmatpush1.msra.mxu0 0.0
        %1201 = vmatprep.subr.mxu0 0.0
        %1202 = vmatpush1.msra.mxu0 0.0
        %1203 = vmatprep.subr.mxu0 0.0
        %1204 = vmatpush1.msra.mxu0 0.0
        %1205 = vmatprep.subr.mxu0 0.0
        %1206 = vmatpush1.msra.mxu0 0.0
        %1207 = vmatprep.subr.mxu0 0.0
        %1208 = vmatpush1.msra.mxu0 0.0
        %1209 = vmatprep.subr.mxu0 0.0
        %1210 = vmatpush1.msra.mxu0 0.0
        %1211 = vmatprep.subr.mxu0 0.0
        %1212 = vmatpush1.msra.mxu0 0.0
        %1213 = vmatprep.subr.mxu0 0.0
        %1214 = vmatpush1.msra.mxu0 0.0
        %1215 = vmatprep.subr.mxu0 0.0
        %1216 = vmatpush1.msra.mxu0 0.0
        %1217 = vmatprep.mubr.f32.mxu0 0.0
        %1218 = vmatmul.mubr.f32.gmra.mrb[0].mxu0 %v1148
        %v1219 = vpop.f32.mrb[0].mxu0
        %v1220 = vadd.f32 0.0, %v1219
        %v1221 = vpop.f32.mrb[0].mxu0
        %v1222 = vadd.f32 0.0, %v1221
        %1223 = vmatprep.mubr.f32.mxu0 0.0
        %1224 = vmatmul.mubr.f32.gmra.mrb[0].mxu0 %v1151
        %v1225 = vpop.f32.mrb[0].mxu0
        %v1226 = vadd.f32 0.0, %v1225
        %v1227 = vpop.f32.mrb[0].mxu0
        %v1228 = vadd.f32 0.0, %v1227
        %1229 = vdwg.mxu0
        %1230 = vrot.lane.b32.xlu0 %v1055, 74
        %v1231 = vpop.permute.xlu0 %1230
        %1232 = vrot.lane.b32.xlu0 %v1056, 74
        %v1233 = vpop.permute.xlu0 %1232
        %1234 = vrot.lane.b32.xlu0 %v1057, 74
        %v1235 = vpop.permute.xlu0 %1234
        %1236 = vrot.lane.b32.xlu0 %v1067, 74
        %v1237 = vpop.permute.xlu0 %1236
        %1238 = vrot.lane.b32.xlu0 %v1068, 74
        %v1239 = vpop.permute.xlu0 %1238
        %1240 = vrot.lane.b32.xlu0 %v1066, 74
        %v1241 = vpop.permute.xlu0 %1240
        %1242 = vrot.lane.b32.xlu0 %v1075, 74
        %v1243 = vpop.permute.xlu0 %1242
        %1244 = vrot.lane.b32.xlu0 %v1076, 74
        %v1245 = vpop.permute.xlu0 %1244
        %1246 = vrot.lane.b32.xlu0 %v1074, 74
        %v1247 = vpop.permute.xlu0 %1246
        %1248 = vrot.lane.b32.xlu0 %v1083, 74
        %v1249 = vpop.permute.xlu0 %1248
        %1250 = vrot.lane.b32.xlu0 %v1084, 74
        %v1251 = vpop.permute.xlu0 %1250
        %1252 = vrot.lane.b32.xlu0 %v1082, 74
        %v1253 = vpop.permute.xlu0 %1252
        %1254 = vrot.lane.b32.xlu0 %v1091, 74
        %v1255 = vpop.permute.xlu0 %1254
        %1256 = vrot.lane.b32.xlu0 %v1092, 74
        %v1257 = vpop.permute.xlu0 %1256
        %1258 = vrot.lane.b32.xlu0 %v1090, 74
        %v1259 = vpop.permute.xlu0 %1258
        %v1260 = vsel %vm445, %v1231, %v1233
        %v1261 = vsel %vm445, %v1233, %v1235
        %v1262 = vsel %vm445, %v1237, %v1239
        %v1263 = vsel %vm445, %v1239, %v1241
        %v1264 = vsel %vm445, %v1243, %v1245
        %v1265 = vsel %vm445, %v1245, %v1247
        %v1266 = vsel %vm445, %v1249, %v1251
        %v1267 = vsel %vm445, %v1251, %v1253
        %v1268 = vsel %vm445, %v1255, %v1257
        %v1269 = vsel %vm445, %v1257, %v1259
        %v1281 = vsel %vm331, %v1093, 0
        %v1284 = vsel %vm331, %v1094, 0
        %1286 = vmatprep.subr.mxu0 %v1261
        %1287 = vmatpush1.msra.mxu0 %v1260
        %1288 = vmatprep.subr.mxu0 %v1263
        %1289 = vmatpush1.msra.mxu0 %v1262
        %1290 = vmatprep.subr.mxu0 %v1265
        %1291 = vmatpush1.msra.mxu0 %v1264
        %1292 = vmatprep.subr.mxu0 %v1267
        %1293 = vmatpush1.msra.mxu0 %v1266
        %1294 = vmatprep.subr.mxu0 %v1269
        %1295 = vmatpush1.msra.mxu0 %v1268
        %1296 = vmatprep.subr.mxu0 0.0
        %1297 = vmatpush1.msra.mxu0 0.0
        %1298 = vmatprep.subr.mxu0 0.0
        %1299 = vmatpush1.msra.mxu0 0.0
        %1300 = vmatprep.subr.mxu0 0.0
        %1301 = vmatpush1.msra.mxu0 0.0
        %1302 = vmatprep.subr.mxu0 0.0
        %1303 = vmatpush1.msra.mxu0 0.0
        %1304 = vmatprep.subr.mxu0 0.0
        %1305 = vmatpush1.msra.mxu0 0.0
        %1306 = vmatprep.subr.mxu0 0.0
        %1307 = vmatpush1.msra.mxu0 0.0
        %1308 = vmatprep.subr.mxu0 0.0
        %1309 = vmatpush1.msra.mxu0 0.0
        %1310 = vmatprep.subr.mxu0 0.0
        %1311 = vmatpush1.msra.mxu0 0.0
        %1312 = vmatprep.subr.mxu0 0.0
        %1313 = vmatpush1.msra.mxu0 0.0
        %1314 = vmatprep.subr.mxu0 0.0
        %1315 = vmatpush1.msra.mxu0 0.0
        %1316 = vmatprep.subr.mxu0 0.0
        %1317 = vmatpush1.msra.mxu0 0.0
        %1318 = vmatprep.subr.mxu0 0.0
        %1319 = vmatpush1.msra.mxu0 0.0
        %1320 = vmatprep.subr.mxu0 0.0
        %1321 = vmatpush1.msra.mxu0 0.0
        %1322 = vmatprep.subr.mxu0 0.0
        %1323 = vmatpush1.msra.mxu0 0.0
        %1324 = vmatprep.subr.mxu0 0.0
        %1325 = vmatpush1.msra.mxu0 0.0
        %1326 = vmatprep.subr.mxu0 0.0
        %1327 = vmatpush1.msra.mxu0 0.0
        %1328 = vmatprep.subr.mxu0 0.0
        %1329 = vmatpush1.msra.mxu0 0.0
        %1330 = vmatprep.subr.mxu0 0.0
        %1331 = vmatpush1.msra.mxu0 0.0
        %1332 = vmatprep.subr.mxu0 0.0
        %1333 = vmatpush1.msra.mxu0 0.0
        %1334 = vmatprep.subr.mxu0 0.0
        %1335 = vmatpush1.msra.mxu0 0.0
        %1336 = vmatprep.subr.mxu0 0.0
        %1337 = vmatpush1.msra.mxu0 0.0
        %1338 = vmatprep.subr.mxu0 0.0
        %1339 = vmatpush1.msra.mxu0 0.0
        %1340 = vmatprep.subr.mxu0 0.0
        %1341 = vmatpush1.msra.mxu0 0.0
        %1342 = vmatprep.subr.mxu0 0.0
        %1343 = vmatpush1.msra.mxu0 0.0
        %1344 = vmatprep.subr.mxu0 0.0
        %1345 = vmatpush1.msra.mxu0 0.0
        %1346 = vmatprep.subr.mxu0 0.0
        %1347 = vmatpush1.msra.mxu0 0.0
        %1348 = vmatprep.subr.mxu0 0.0
        %1349 = vmatpush1.msra.mxu0 0.0
        %1350 = vmatprep.mubr.f32.mxu0 0.0
        %1351 = vmatmul.mubr.f32.gmra.mrb[0].mxu0 %v1281
        %v1352 = vpop.f32.mrb[0].mxu0
        %v1353 = vadd.f32 %v1220, %v1352
        %v1354 = vpop.f32.mrb[0].mxu0
        %v1355 = vadd.f32 %v1222, %v1354
        %1356 = vmatprep.mubr.f32.mxu0 0.0
        %1357 = vmatmul.mubr.f32.gmra.mrb[0].mxu0 %v1284
        %v1358 = vpop.f32.mrb[0].mxu0
        %v1359 = vadd.f32 %v1226, %v1358
        %v1360 = vpop.f32.mrb[0].mxu0
        %v1361 = vadd.f32 %v1228, %v1360
        %1362 = vdwg.mxu0
        %v1363 = vld [vmem:[%s200 + $0x10] sm:$0xff]
        %v1364 = vld [vmem:[%s200 + $0x18] sm:$0xff]
        %v1365 = vld [vmem:[%s200 + $0x20] sm:$0xff]
        %v1366 = vld [vmem:[%s200 + $0x28] sm:$0xff]
        %1370 = vrot.lane.b32.xlu0 %v1363, 127
        %v1371 = vpop.permute.xlu0 %1370
        %1372 = vrot.lane.b32.xlu0 %v1364, 127
        %v1373 = vpop.permute.xlu0 %1372
        %1374 = vrot.lane.b32.xlu0 %v1365, 127
        %v1375 = vpop.permute.xlu0 %1374
        %v1376 = vsel %vm245, %v1371, %v1373
        %v1377 = vsel %vm245, %v1373, %v1375
        %1378 = vrot.lane.b32.xlu0 %v1364, 126
        %v1379 = vpop.permute.xlu0 %1378
        %1380 = vrot.lane.b32.xlu0 %v1365, 126
        %v1381 = vpop.permute.xlu0 %1380
        %v1382 = vsel %vm254, %v1379, %v1381
        %1384 = vrot.lane.b32.xlu0 %v1364, 125
        %v1385 = vpop.permute.xlu0 %1384
        %1386 = vrot.lane.b32.xlu0 %v1365, 125
        %v1387 = vpop.permute.xlu0 %1386
        %1388 = vrot.lane.b32.xlu0 %v1366, 125
        %v1389 = vpop.permute.xlu0 %1388
        %v1390 = vsel %vm263, %v1385, %v1387
        %v1391 = vsel %vm263, %v1387, %v1389
        %1392 = vrot.lane.b32.xlu0 %v1364, 124
        %v1393 = vpop.permute.xlu0 %1392
        %1394 = vrot.lane.b32.xlu0 %v1365, 124
        %v1395 = vpop.permute.xlu0 %1394
        %1396 = vrot.lane.b32.xlu0 %v1366, 124
        %v1397 = vpop.permute.xlu0 %1396
        %v1398 = vsel %vm272, %v1393, %v1395
        %v1399 = vsel %vm272, %v1395, %v1397
        %v1400 = vld [vmem:[%s586] sm:$0xff]
        %v1401 = vld [vmem:[%s586 + $0x8] sm:$0xff]
        %1402 = vrot.lane.b32.xlu0 %v1363, 2
        %v1403 = vpop.permute.xlu0 %1402
        %1404 = vrot.lane.b32.xlu0 %v1364, 2
        %v1405 = vpop.permute.xlu0 %1404
        %1406 = vrot.lane.b32.xlu0 %v1365, 2
        %v1407 = vpop.permute.xlu0 %1406
        %1408 = vrot.lane.b32.xlu0 %v1376, 2
        %v1409 = vpop.permute.xlu0 %1408
        %1410 = vrot.lane.b32.xlu0 %v1377, 2
        %v1411 = vpop.permute.xlu0 %1410
        %1412 = vrot.lane.b32.xlu0 %v1375, 2
        %v1413 = vpop.permute.xlu0 %1412
        %1414 = vrot.lane.b32.xlu0 %v1379, 2
        %v1415 = vpop.permute.xlu0 %1414
        %1416 = vrot.lane.b32.xlu0 %v1382, 2
        %v1417 = vpop.permute.xlu0 %1416
        %1418 = vrot.lane.b32.xlu0 %v1381, 2
        %v1419 = vpop.permute.xlu0 %1418
        %1420 = vrot.lane.b32.xlu0 %v1385, 2
        %v1421 = vpop.permute.xlu0 %1420
        %1422 = vrot.lane.b32.xlu0 %v1390, 2
        %v1423 = vpop.permute.xlu0 %1422
        %1424 = vrot.lane.b32.xlu0 %v1391, 2
        %v1425 = vpop.permute.xlu0 %1424
        %1426 = vrot.lane.b32.xlu0 %v1393, 2
        %v1427 = vpop.permute.xlu0 %1426
        %1428 = vrot.lane.b32.xlu0 %v1398, 2
        %v1429 = vpop.permute.xlu0 %1428
        %1430 = vrot.lane.b32.xlu0 %v1399, 2
        %v1431 = vpop.permute.xlu0 %1430
        %v1432 = vsel %vm619, %v1403, %v1405
        %v1433 = vsel %vm619, %v1405, %v1407
        %v1434 = vsel %vm619, %v1409, %v1411
        %v1435 = vsel %vm619, %v1411, %v1413
        %v1436 = vsel %vm619, %v1415, %v1417
        %v1437 = vsel %vm619, %v1417, %v1419
        %v1438 = vsel %vm619, %v1421, %v1423
        %v1439 = vsel %vm619, %v1423, %v1425
        %v1440 = vsel %vm619, %v1427, %v1429
        %v1441 = vsel %vm619, %v1429, %v1431
        %v1453 = vsel %vm331, %v1400, 0
        %v1456 = vsel %vm331, %v1401, 0
        %1458 = vmatprep.subr.mxu0 %v1433
        %1459 = vmatpush1.msra.mxu0 %v1432
        %1460 = vmatprep.subr.mxu0 %v1435
        %1461 = vmatpush1.msra.mxu0 %v1434
        %1462 = vmatprep.subr.mxu0 %v1437
        %1463 = vmatpush1.msra.mxu0 %v1436
        %1464 = vmatprep.subr.mxu0 %v1439
        %1465 = vmatpush1.msra.mxu0 %v1438
        %1466 = vmatprep.subr.mxu0 %v1441
        %1467 = vmatpush1.msra.mxu0 %v1440
        %1468 = vmatprep.subr.mxu0 0.0
        %1469 = vmatpush1.msra.mxu0 0.0
        %1470 = vmatprep.subr.mxu0 0.0
        %1471 = vmatpush1.msra.mxu0 0.0
        %1472 = vmatprep.subr.mxu0 0.0
        %1473 = vmatpush1.msra.mxu0 0.0
        %1474 = vmatprep.subr.mxu0 0.0
        %1475 = vmatpush1.msra.mxu0 0.0
        %1476 = vmatprep.subr.mxu0 0.0
        %1477 = vmatpush1.msra.mxu0 0.0
        %1478 = vmatprep.subr.mxu0 0.0
        %1479 = vmatpush1.msra.mxu0 0.0
        %1480 = vmatprep.subr.mxu0 0.0
        %1481 = vmatpush1.msra.mxu0 0.0
        %1482 = vmatprep.subr.mxu0 0.0
        %1483 = vmatpush1.msra.mxu0 0.0
        %1484 = vmatprep.subr.mxu0 0.0
        %1485 = vmatpush1.msra.mxu0 0.0
        %1486 = vmatprep.subr.mxu0 0.0
        %1487 = vmatpush1.msra.mxu0 0.0
        %1488 = vmatprep.subr.mxu0 0.0
        %1489 = vmatpush1.msra.mxu0 0.0
        %1490 = vmatprep.subr.mxu0 0.0
        %1491 = vmatpush1.msra.mxu0 0.0
        %1492 = vmatprep.subr.mxu0 0.0
        %1493 = vmatpush1.msra.mxu0 0.0
        %1494 = vmatprep.subr.mxu0 0.0
        %1495 = vmatpush1.msra.mxu0 0.0
        %1496 = vmatprep.subr.mxu0 0.0
        %1497 = vmatpush1.msra.mxu0 0.0
        %1498 = vmatprep.subr.mxu0 0.0
        %1499 = vmatpush1.msra.mxu0 0.0
        %1500 = vmatprep.subr.mxu0 0.0
        %1501 = vmatpush1.msra.mxu0 0.0
        %1502 = vmatprep.subr.mxu0 0.0
        %1503 = vmatpush1.msra.mxu0 0.0
        %1504 = vmatprep.subr.mxu0 0.0
        %1505 = vmatpush1.msra.mxu0 0.0
        %1506 = vmatprep.subr.mxu0 0.0
        %1507 = vmatpush1.msra.mxu0 0.0
        %1508 = vmatprep.subr.mxu0 0.0
        %1509 = vmatpush1.msra.mxu0 0.0
        %1510 = vmatprep.subr.mxu0 0.0
        %1511 = vmatpush1.msra.mxu0 0.0
        %1512 = vmatprep.subr.mxu0 0.0
        %1513 = vmatpush1.msra.mxu0 0.0
        %1514 = vmatprep.subr.mxu0 0.0
        %1515 = vmatpush1.msra.mxu0 0.0
        %1516 = vmatprep.subr.mxu0 0.0
        %1517 = vmatpush1.msra.mxu0 0.0
        %1518 = vmatprep.subr.mxu0 0.0
        %1519 = vmatpush1.msra.mxu0 0.0
        %1520 = vmatprep.subr.mxu0 0.0
        %1521 = vmatpush1.msra.mxu0 0.0
        %1522 = vmatprep.mubr.f32.mxu0 0.0
        %1523 = vmatmul.mubr.f32.gmra.mrb[0].mxu0 %v1453
        %v1524 = vpop.f32.mrb[0].mxu0
        %v1525 = vadd.f32 0.0, %v1524
        %v1526 = vpop.f32.mrb[0].mxu0
        %v1527 = vadd.f32 0.0, %v1526
        %1528 = vmatprep.mubr.f32.mxu0 0.0
        %1529 = vmatmul.mubr.f32.gmra.mrb[0].mxu0 %v1456
        %v1530 = vpop.f32.mrb[0].mxu0
        %v1531 = vadd.f32 0.0, %v1530
        %v1532 = vpop.f32.mrb[0].mxu0
        %v1533 = vadd.f32 0.0, %v1532
        %1534 = vdwg.mxu0
        %v1535 = vadd.f32 %v1353, %v1525
        %v1536 = vadd.f32 %v1355, %v1527
        %v1537 = vadd.f32 %v1359, %v1531
        %v1538 = vadd.f32 %v1361, %v1533
        %1539 = vrot.lane.b32.xlu0 %v1366, 127
        %v1540 = vpop.permute.xlu0 %1539
        %v1541 = vsel %vm245, %v1375, %v1540
        %1542 = vrot.lane.b32.xlu0 %v1366, 126
        %v1543 = vpop.permute.xlu0 %1542
        %v1544 = vsel %vm254, %v1381, %v1543
        %v1545 = vld [vmem:[%s733] sm:$0xff]
        %v1546 = vld [vmem:[%s733 + $0x8] sm:$0xff]
        %1547 = vrot.lane.b32.xlu0 %v1364, 94
        %v1548 = vpop.permute.xlu0 %1547
        %1549 = vrot.lane.b32.xlu0 %v1365, 94
        %v1550 = vpop.permute.xlu0 %1549
        %1551 = vrot.lane.b32.xlu0 %v1366, 94
        %v1552 = vpop.permute.xlu0 %1551
        %1553 = vrot.lane.b32.xlu0 %v1377, 94
        %v1554 = vpop.permute.xlu0 %1553
        %1555 = vrot.lane.b32.xlu0 %v1541, 94
        %v1556 = vpop.permute.xlu0 %1555
        %1557 = vrot.lane.b32.xlu0 %v1540, 94
        %v1558 = vpop.permute.xlu0 %1557
        %1559 = vrot.lane.b32.xlu0 %v1382, 94
        %v1560 = vpop.permute.xlu0 %1559
        %1561 = vrot.lane.b32.xlu0 %v1544, 94
        %v1562 = vpop.permute.xlu0 %1561
        %1563 = vrot.lane.b32.xlu0 %v1543, 94
        %v1564 = vpop.permute.xlu0 %1563
        %1565 = vrot.lane.b32.xlu0 %v1390, 94
        %v1566 = vpop.permute.xlu0 %1565
        %1567 = vrot.lane.b32.xlu0 %v1391, 94
        %v1568 = vpop.permute.xlu0 %1567
        %1569 = vrot.lane.b32.xlu0 %v1389, 94
        %v1570 = vpop.permute.xlu0 %1569
        %1571 = vrot.lane.b32.xlu0 %v1398, 94
        %v1572 = vpop.permute.xlu0 %1571
        %1573 = vrot.lane.b32.xlu0 %v1399, 94
        %v1574 = vpop.permute.xlu0 %1573
        %1575 = vrot.lane.b32.xlu0 %v1397, 94
        %v1576 = vpop.permute.xlu0 %1575
        %v1577 = vsel %vm766, %v1548, %v1550
        %v1578 = vsel %vm766, %v1550, %v1552
        %v1579 = vsel %vm766, %v1554, %v1556
        %v1580 = vsel %vm766, %v1556, %v1558
        %v1581 = vsel %vm766, %v1560, %v1562
        %v1582 = vsel %vm766, %v1562, %v1564
        %v1583 = vsel %vm766, %v1566, %v1568
        %v1584 = vsel %vm766, %v1568, %v1570
        %v1585 = vsel %vm766, %v1572, %v1574
        %v1586 = vsel %vm766, %v1574, %v1576
        %v1598 = vsel %vm331, %v1545, 0
        %v1601 = vsel %vm331, %v1546, 0
        %1603 = vmatprep.subr.mxu0 %v1578
        %1604 = vmatpush1.msra.mxu0 %v1577
        %1605 = vmatprep.subr.mxu0 %v1580
        %1606 = vmatpush1.msra.mxu0 %v1579
        %1607 = vmatprep.subr.mxu0 %v1582
        %1608 = vmatpush1.msra.mxu0 %v1581
        %1609 = vmatprep.subr.mxu0 %v1584
        %1610 = vmatpush1.msra.mxu0 %v1583
        %1611 = vmatprep.subr.mxu0 %v1586
        %1612 = vmatpush1.msra.mxu0 %v1585
        %1613 = vmatprep.subr.mxu0 0.0
        %1614 = vmatpush1.msra.mxu0 0.0
        %1615 = vmatprep.subr.mxu0 0.0
        %1616 = vmatpush1.msra.mxu0 0.0
        %1617 = vmatprep.subr.mxu0 0.0
        %1618 = vmatpush1.msra.mxu0 0.0
        %1619 = vmatprep.subr.mxu0 0.0
        %1620 = vmatpush1.msra.mxu0 0.0
        %1621 = vmatprep.subr.mxu0 0.0
        %1622 = vmatpush1.msra.mxu0 0.0
        %1623 = vmatprep.subr.mxu0 0.0
        %1624 = vmatpush1.msra.mxu0 0.0
        %1625 = vmatprep.subr.mxu0 0.0
        %1626 = vmatpush1.msra.mxu0 0.0
        %1627 = vmatprep.subr.mxu0 0.0
        %1628 = vmatpush1.msra.mxu0 0.0
        %1629 = vmatprep.subr.mxu0 0.0
        %1630 = vmatpush1.msra.mxu0 0.0
        %1631 = vmatprep.subr.mxu0 0.0
        %1632 = vmatpush1.msra.mxu0 0.0
        %1633 = vmatprep.subr.mxu0 0.0
        %1634 = vmatpush1.msra.mxu0 0.0
        %1635 = vmatprep.subr.mxu0 0.0
        %1636 = vmatpush1.msra.mxu0 0.0
        %1637 = vmatprep.subr.mxu0 0.0
        %1638 = vmatpush1.msra.mxu0 0.0
        %1639 = vmatprep.subr.mxu0 0.0
        %1640 = vmatpush1.msra.mxu0 0.0
        %1641 = vmatprep.subr.mxu0 0.0
        %1642 = vmatpush1.msra.mxu0 0.0
        %1643 = vmatprep.subr.mxu0 0.0
        %1644 = vmatpush1.msra.mxu0 0.0
        %1645 = vmatprep.subr.mxu0 0.0
        %1646 = vmatpush1.msra.mxu0 0.0
        %1647 = vmatprep.subr.mxu0 0.0
        %1648 = vmatpush1.msra.mxu0 0.0
        %1649 = vmatprep.subr.mxu0 0.0
        %1650 = vmatpush1.msra.mxu0 0.0
        %1651 = vmatprep.subr.mxu0 0.0
        %1652 = vmatpush1.msra.mxu0 0.0
        %1653 = vmatprep.subr.mxu0 0.0
        %1654 = vmatpush1.msra.mxu0 0.0
        %1655 = vmatprep.subr.mxu0 0.0
        %1656 = vmatpush1.msra.mxu0 0.0
        %1657 = vmatprep.subr.mxu0 0.0
        %1658 = vmatpush1.msra.mxu0 0.0
        %1659 = vmatprep.subr.mxu0 0.0
        %1660 = vmatpush1.msra.mxu0 0.0
        %1661 = vmatprep.subr.mxu0 0.0
        %1662 = vmatpush1.msra.mxu0 0.0
        %1663 = vmatprep.subr.mxu0 0.0
        %1664 = vmatpush1.msra.mxu0 0.0
        %1665 = vmatprep.subr.mxu0 0.0
        %1666 = vmatpush1.msra.mxu0 0.0
        %1667 = vmatprep.mubr.f32.mxu0 0.0
        %1668 = vmatmul.mubr.f32.gmra.mrb[0].mxu0 %v1598
        %v1669 = vpop.f32.mrb[0].mxu0
        %v1670 = vadd.f32 0.0, %v1669
        %v1671 = vpop.f32.mrb[0].mxu0
        %v1672 = vadd.f32 0.0, %v1671
        %1673 = vmatprep.mubr.f32.mxu0 0.0
        %1674 = vmatmul.mubr.f32.gmra.mrb[0].mxu0 %v1601
        %v1675 = vpop.f32.mrb[0].mxu0
        %v1676 = vadd.f32 0.0, %v1675
        %v1677 = vpop.f32.mrb[0].mxu0
        %v1678 = vadd.f32 0.0, %v1677
        %1679 = vdwg.mxu0
        %v1680 = vadd.f32 %v1535, %v1670
        %v1681 = vadd.f32 %v1536, %v1672
        %v1682 = vadd.f32 %v1537, %v1676
        %v1683 = vadd.f32 %v1538, %v1678
        %v1684 = vld [vmem:[%s874] sm:$0xff]
        %v1685 = vld [vmem:[%s874 + $0x8] sm:$0xff]
        %1686 = vrot.lane.b32.xlu0 %v1364, 58
        %v1687 = vpop.permute.xlu0 %1686
        %1688 = vrot.lane.b32.xlu0 %v1365, 58
        %v1689 = vpop.permute.xlu0 %1688
        %1690 = vrot.lane.b32.xlu0 %v1366, 58
        %v1691 = vpop.permute.xlu0 %1690
        %1692 = vrot.lane.b32.xlu0 %v1377, 58
        %v1693 = vpop.permute.xlu0 %1692
        %1694 = vrot.lane.b32.xlu0 %v1541, 58
        %v1695 = vpop.permute.xlu0 %1694
        %1696 = vrot.lane.b32.xlu0 %v1540, 58
        %v1697 = vpop.permute.xlu0 %1696
        %1698 = vrot.lane.b32.xlu0 %v1382, 58
        %v1699 = vpop.permute.xlu0 %1698
        %1700 = vrot.lane.b32.xlu0 %v1544, 58
        %v1701 = vpop.permute.xlu0 %1700
        %1702 = vrot.lane.b32.xlu0 %v1543, 58
        %v1703 = vpop.permute.xlu0 %1702
        %1704 = vrot.lane.b32.xlu0 %v1390, 58
        %v1705 = vpop.permute.xlu0 %1704
        %1706 = vrot.lane.b32.xlu0 %v1391, 58
        %v1707 = vpop.permute.xlu0 %1706
        %1708 = vrot.lane.b32.xlu0 %v1389, 58
        %v1709 = vpop.permute.xlu0 %1708
        %1710 = vrot.lane.b32.xlu0 %v1398, 58
        %v1711 = vpop.permute.xlu0 %1710
        %1712 = vrot.lane.b32.xlu0 %v1399, 58
        %v1713 = vpop.permute.xlu0 %1712
        %1714 = vrot.lane.b32.xlu0 %v1397, 58
        %v1715 = vpop.permute.xlu0 %1714
        %v1716 = vsel %vm907, %v1687, %v1689
        %v1717 = vsel %vm907, %v1689, %v1691
        %v1718 = vsel %vm907, %v1693, %v1695
        %v1719 = vsel %vm907, %v1695, %v1697
        %v1720 = vsel %vm907, %v1699, %v1701
        %v1721 = vsel %vm907, %v1701, %v1703
        %v1722 = vsel %vm907, %v1705, %v1707
        %v1723 = vsel %vm907, %v1707, %v1709
        %v1724 = vsel %vm907, %v1711, %v1713
        %v1725 = vsel %vm907, %v1713, %v1715
        %v1737 = vsel %vm331, %v1684, 0
        %v1740 = vsel %vm331, %v1685, 0
        %1742 = vmatprep.subr.mxu0 %v1717
        %1743 = vmatpush1.msra.mxu0 %v1716
        %1744 = vmatprep.subr.mxu0 %v1719
        %1745 = vmatpush1.msra.mxu0 %v1718
        %1746 = vmatprep.subr.mxu0 %v1721
        %1747 = vmatpush1.msra.mxu0 %v1720
        %1748 = vmatprep.subr.mxu0 %v1723
        %1749 = vmatpush1.msra.mxu0 %v1722
        %1750 = vmatprep.subr.mxu0 %v1725
        %1751 = vmatpush1.msra.mxu0 %v1724
        %1752 = vmatprep.subr.mxu0 0.0
        %1753 = vmatpush1.msra.mxu0 0.0
        %1754 = vmatprep.subr.mxu0 0.0
        %1755 = vmatpush1.msra.mxu0 0.0
        %1756 = vmatprep.subr.mxu0 0.0
        %1757 = vmatpush1.msra.mxu0 0.0
        %1758 = vmatprep.subr.mxu0 0.0
        %1759 = vmatpush1.msra.mxu0 0.0
        %1760 = vmatprep.subr.mxu0 0.0
        %1761 = vmatpush1.msra.mxu0 0.0
        %1762 = vmatprep.subr.mxu0 0.0
        %1763 = vmatpush1.msra.mxu0 0.0
        %1764 = vmatprep.subr.mxu0 0.0
        %1765 = vmatpush1.msra.mxu0 0.0
        %1766 = vmatprep.subr.mxu0 0.0
        %1767 = vmatpush1.msra.mxu0 0.0
        %1768 = vmatprep.subr.mxu0 0.0
        %1769 = vmatpush1.msra.mxu0 0.0
        %1770 = vmatprep.subr.mxu0 0.0
        %1771 = vmatpush1.msra.mxu0 0.0
        %1772 = vmatprep.subr.mxu0 0.0
        %1773 = vmatpush1.msra.mxu0 0.0
        %1774 = vmatprep.subr.mxu0 0.0
        %1775 = vmatpush1.msra.mxu0 0.0
        %1776 = vmatprep.subr.mxu0 0.0
        %1777 = vmatpush1.msra.mxu0 0.0
        %1778 = vmatprep.subr.mxu0 0.0
        %1779 = vmatpush1.msra.mxu0 0.0
        %1780 = vmatprep.subr.mxu0 0.0
        %1781 = vmatpush1.msra.mxu0 0.0
        %1782 = vmatprep.subr.mxu0 0.0
        %1783 = vmatpush1.msra.mxu0 0.0
        %1784 = vmatprep.subr.mxu0 0.0
        %1785 = vmatpush1.msra.mxu0 0.0
        %1786 = vmatprep.subr.mxu0 0.0
        %1787 = vmatpush1.msra.mxu0 0.0
        %1788 = vmatprep.subr.mxu0 0.0
        %1789 = vmatpush1.msra.mxu0 0.0
        %1790 = vmatprep.subr.mxu0 0.0
        %1791 = vmatpush1.msra.mxu0 0.0
        %1792 = vmatprep.subr.mxu0 0.0
        %1793 = vmatpush1.msra.mxu0 0.0
        %1794 = vmatprep.subr.mxu0 0.0
        %1795 = vmatpush1.msra.mxu0 0.0
        %1796 = vmatprep.subr.mxu0 0.0
        %1797 = vmatpush1.msra.mxu0 0.0
        %1798 = vmatprep.subr.mxu0 0.0
        %1799 = vmatpush1.msra.mxu0 0.0
        %1800 = vmatprep.subr.mxu0 0.0
        %1801 = vmatpush1.msra.mxu0 0.0
        %1802 = vmatprep.subr.mxu0 0.0
        %1803 = vmatpush1.msra.mxu0 0.0
        %1804 = vmatprep.subr.mxu0 0.0
        %1805 = vmatpush1.msra.mxu0 0.0
        %1806 = vmatprep.mubr.f32.mxu0 0.0
        %1807 = vmatmul.mubr.f32.gmra.mrb[0].mxu0 %v1737
        %v1808 = vpop.f32.mrb[0].mxu0
        %v1809 = vadd.f32 0.0, %v1808
        %v1810 = vpop.f32.mrb[0].mxu0
        %v1811 = vadd.f32 0.0, %v1810
        %1812 = vmatprep.mubr.f32.mxu0 0.0
        %1813 = vmatmul.mubr.f32.gmra.mrb[0].mxu0 %v1740
        %v1814 = vpop.f32.mrb[0].mxu0
        %v1815 = vadd.f32 0.0, %v1814
        %v1816 = vpop.f32.mrb[0].mxu0
        %v1817 = vadd.f32 0.0, %v1816
        %1818 = vdwg.mxu0
        %v1819 = vadd.f32 %v1680, %v1809
        %v1820 = vadd.f32 %v1681, %v1811
        %v1821 = vadd.f32 %v1682, %v1815
        %v1822 = vadd.f32 %v1683, %v1817
        %v1823 = vld [vmem:[%s2] sm:$0xff]
        %v1824 = vld [vmem:[%s2 + $0x8] sm:$0xff]
        %1826 = vset.pattern.permute.xlu0 0
        %1827 = vperm.xlu0 %1826, %v1823
        %v1828 = vpop.permute.xlu0 %1827
        %1831 = vset.pattern.permute.xlu0 0
        %1832 = vperm.xlu0 %1831, %v1824
        %v1833 = vpop.permute.xlu0 %1832
        %v1835 = vadd.f32 %v1819, %v1828
        %v1836 = vadd.f32 %v1820, %v1828
        %v1837 = vadd.f32 %v1821, %v1833
        %v1838 = vadd.f32 %v1822, %v1833
        %v1839 = vmax.f32 %v1835, 0.0
        %v1840 = vmax.f32 %v1836, 0.0
        %v1841 = vmax.f32 %v1837, 0.0
        %v1842 = vmax.f32 %v1838, 0.0
        %v1843 = vld [vmem:[%s3 + $0x2] sm:$0x3]
        %v1845 = vlaneseq
        %v1846 = vshrl.u32 %v1845, 7
        %v1847 = vsub.s32 0, %v1846
        %v1848 = vrot.slane %v1843, %v1847
        %v1849 = vlaneseq
        %v1850 = vshrl.u32 %v1849, 7
        %v1851 = vsub.s32 1, %v1850
        %v1852 = vrot.slane %v1843, %v1851
        %v1855 = vmul.f32 %v1839, %v1848
        %v1856 = vmul.f32 %v1840, %v1852
        %v1857 = vmul.f32 %v1841, %v1848
        %v1858 = vmul.f32 %v1842, %v1852
        %1859 = vst [vmem:[%s228 + $0x18] sm:$0xff] %v1855
        %1860 = vst [vmem:[%s228 + $0x20] sm:$0xff] %v1856
        %1861 = vst [vmem:[%s228 + $0x88] sm:$0xff] %v1857
        %1862 = vst [vmem:[%s228 + $0x90] sm:$0xff] %v1858
        %v1863 = vld [vmem:[%s200 + $0x20] sm:$0xff]
        %v1864 = vld [vmem:[%s200 + $0x28] sm:$0xff]
        %v1865 = vld [vmem:[%s200 + $0x30] sm:$0xff]
        %1869 = vrot.lane.b32.xlu0 %v1863, 127
        %v1870 = vpop.permute.xlu0 %1869
        %1871 = vrot.lane.b32.xlu0 %v1864, 127
        %v1872 = vpop.permute.xlu0 %1871
        %1873 = vrot.lane.b32.xlu0 %v1865, 127
        %v1874 = vpop.permute.xlu0 %1873
        %v1875 = vsel %vm245, %v1870, %v1872
        %v1876 = vsel %vm245, %v1872, %v1874
        %1877 = vrot.lane.b32.xlu0 %v1863, 126
        %v1878 = vpop.permute.xlu0 %1877
        %1879 = vrot.lane.b32.xlu0 %v1864, 126
        %v1880 = vpop.permute.xlu0 %1879
        %1881 = vrot.lane.b32.xlu0 %v1865, 126
        %v1882 = vpop.permute.xlu0 %1881
        %v1883 = vsel %vm254, %v1878, %v1880
        %v1884 = vsel %vm254, %v1880, %v1882
        %1885 = vrot.lane.b32.xlu0 %v1863, 125
        %v1886 = vpop.permute.xlu0 %1885
        %1887 = vrot.lane.b32.xlu0 %v1864, 125
        %v1888 = vpop.permute.xlu0 %1887
        %1889 = vrot.lane.b32.xlu0 %v1865, 125
        %v1890 = vpop.permute.xlu0 %1889
        %v1891 = vsel %vm263, %v1886, %v1888
        %v1892 = vsel %vm263, %v1888, %v1890
        %1893 = vrot.lane.b32.xlu0 %v1863, 124
        %v1894 = vpop.permute.xlu0 %1893
        %1895 = vrot.lane.b32.xlu0 %v1864, 124
        %v1896 = vpop.permute.xlu0 %1895
        %1897 = vrot.lane.b32.xlu0 %v1865, 124
        %v1898 = vpop.permute.xlu0 %1897
        %v1899 = vsel %vm272, %v1894, %v1896
        %v1900 = vsel %vm272, %v1896, %v1898
        %v1901 = vld [vmem:[#allocation5] sm:$0xff]
        %v1902 = vld [vmem:[#allocation5 + $0x8] sm:$0xff]
        %v1903 = vld [vmem:[%s277] sm:$0xff]
        %v1904 = vld [vmem:[%s277 + $0x8] sm:$0xff]
        %1905 = vrot.lane.b32.xlu0 %v1863, 38
        %v1906 = vpop.permute.xlu0 %1905
        %1907 = vrot.lane.b32.xlu0 %v1864, 38
        %v1908 = vpop.permute.xlu0 %1907
        %1909 = vrot.lane.b32.xlu0 %v1865, 38
        %v1910 = vpop.permute.xlu0 %1909
        %1911 = vrot.lane.b32.xlu0 %v1875, 38
        %v1912 = vpop.permute.xlu0 %1911
        %1913 = vrot.lane.b32.xlu0 %v1876, 38
        %v1914 = vpop.permute.xlu0 %1913
        %1915 = vrot.lane.b32.xlu0 %v1874, 38
        %v1916 = vpop.permute.xlu0 %1915
        %1917 = vrot.lane.b32.xlu0 %v1883, 38
        %v1918 = vpop.permute.xlu0 %1917
        %1919 = vrot.lane.b32.xlu0 %v1884, 38
        %v1920 = vpop.permute.xlu0 %1919
        %1921 = vrot.lane.b32.xlu0 %v1882, 38
        %v1922 = vpop.permute.xlu0 %1921
        %1923 = vrot.lane.b32.xlu0 %v1891, 38
        %v1924 = vpop.permute.xlu0 %1923
        %1925 = vrot.lane.b32.xlu0 %v1892, 38
        %v1926 = vpop.permute.xlu0 %1925
        %1927 = vrot.lane.b32.xlu0 %v1890, 38
        %v1928 = vpop.permute.xlu0 %1927
        %1929 = vrot.lane.b32.xlu0 %v1899, 38
        %v1930 = vpop.permute.xlu0 %1929
        %1931 = vrot.lane.b32.xlu0 %v1900, 38
        %v1932 = vpop.permute.xlu0 %1931
        %1933 = vrot.lane.b32.xlu0 %v1898, 38
        %v1934 = vpop.permute.xlu0 %1933
        %v1935 = vsel %vm310, %v1906, %v1908
        %v1936 = vsel %vm310, %v1908, %v1910
        %v1937 = vsel %vm310, %v1912, %v1914
        %v1938 = vsel %vm310, %v1914, %v1916
        %v1939 = vsel %vm310, %v1918, %v1920
        %v1940 = vsel %vm310, %v1920, %v1922
        %v1941 = vsel %vm310, %v1924, %v1926
        %v1942 = vsel %vm310, %v1926, %v1928
        %v1943 = vsel %vm310, %v1930, %v1932
        %v1944 = vsel %vm310, %v1932, %v1934
        %v1956 = vsel %vm331, %v1903, 0
        %v1959 = vsel %vm331, %v1904, 0
        %1961 = vmatprep.subr.mxu0 %v1936
        %1962 = vmatpush1.msra.mxu0 %v1935
        %1963 = vmatprep.subr.mxu0 %v1938
        %1964 = vmatpush1.msra.mxu0 %v1937
        %1965 = vmatprep.subr.mxu0 %v1940
        %1966 = vmatpush1.msra.mxu0 %v1939
        %1967 = vmatprep.subr.mxu0 %v1942
        %1968 = vmatpush1.msra.mxu0 %v1941
        %1969 = vmatprep.subr.mxu0 %v1944
        %1970 = vmatpush1.msra.mxu0 %v1943
        %1971 = vmatprep.subr.mxu0 0.0
        %1972 = vmatpush1.msra.mxu0 0.0
        %1973 = vmatprep.subr.mxu0 0.0
        %1974 = vmatpush1.msra.mxu0 0.0
        %1975 = vmatprep.subr.mxu0 0.0
        %1976 = vmatpush1.msra.mxu0 0.0
        %1977 = vmatprep.subr.mxu0 0.0
        %1978 = vmatpush1.msra.mxu0 0.0
        %1979 = vmatprep.subr.mxu0 0.0
        %1980 = vmatpush1.msra.mxu0 0.0
        %1981 = vmatprep.subr.mxu0 0.0
        %1982 = vmatpush1.msra.mxu0 0.0
        %1983 = vmatprep.subr.mxu0 0.0
        %1984 = vmatpush1.msra.mxu0 0.0
        %1985 = vmatprep.subr.mxu0 0.0
        %1986 = vmatpush1.msra.mxu0 0.0
        %1987 = vmatprep.subr.mxu0 0.0
        %1988 = vmatpush1.msra.mxu0 0.0
        %1989 = vmatprep.subr.mxu0 0.0
        %1990 = vmatpush1.msra.mxu0 0.0
        %1991 = vmatprep.subr.mxu0 0.0
        %1992 = vmatpush1.msra.mxu0 0.0
        %1993 = vmatprep.subr.mxu0 0.0
        %1994 = vmatpush1.msra.mxu0 0.0
        %1995 = vmatprep.subr.mxu0 0.0
        %1996 = vmatpush1.msra.mxu0 0.0
        %1997 = vmatprep.subr.mxu0 0.0
        %1998 = vmatpush1.msra.mxu0 0.0
        %1999 = vmatprep.subr.mxu0 0.0
        %2000 = vmatpush1.msra.mxu0 0.0
        %2001 = vmatprep.subr.mxu0 0.0
        %2002 = vmatpush1.msra.mxu0 0.0
        %2003 = vmatprep.subr.mxu0 0.0
        %2004 = vmatpush1.msra.mxu0 0.0
        %2005 = vmatprep.subr.mxu0 0.0
        %2006 = vmatpush1.msra.mxu0 0.0
        %2007 = vmatprep.subr.mxu0 0.0
        %2008 = vmatpush1.msra.mxu0 0.0
        %2009 = vmatprep.subr.mxu0 0.0
        %2010 = vmatpush1.msra.mxu0 0.0
        %2011 = vmatprep.subr.mxu0 0.0
        %2012 = vmatpush1.msra.mxu0 0.0
        %2013 = vmatprep.subr.mxu0 0.0
        %2014 = vmatpush1.msra.mxu0 0.0
        %2015 = vmatprep.subr.mxu0 0.0
        %2016 = vmatpush1.msra.mxu0 0.0
        %2017 = vmatprep.subr.mxu0 0.0
        %2018 = vmatpush1.msra.mxu0 0.0
        %2019 = vmatprep.subr.mxu0 0.0
        %2020 = vmatpush1.msra.mxu0 0.0
        %2021 = vmatprep.subr.mxu0 0.0
        %2022 = vmatpush1.msra.mxu0 0.0
        %2023 = vmatprep.subr.mxu0 0.0
        %2024 = vmatpush1.msra.mxu0 0.0
        %2025 = vmatprep.mubr.f32.mxu0 0.0
        %2026 = vmatmul.mubr.f32.gmra.mrb[0].mxu0 %v1956
        %v2027 = vpop.f32.mrb[0].mxu0
        %v2028 = vadd.f32 0.0, %v2027
        %v2029 = vpop.f32.mrb[0].mxu0
        %v2030 = vadd.f32 0.0, %v2029
        %2031 = vmatprep.mubr.f32.mxu0 0.0
        %2032 = vmatmul.mubr.f32.gmra.mrb[0].mxu0 %v1959
        %v2033 = vpop.f32.mrb[0].mxu0
        %v2034 = vadd.f32 0.0, %v2033
        %v2035 = vpop.f32.mrb[0].mxu0
        %v2036 = vadd.f32 0.0, %v2035
        %2037 = vdwg.mxu0
        %2038 = vrot.lane.b32.xlu0 %v1863, 74
        %v2039 = vpop.permute.xlu0 %2038
        %2040 = vrot.lane.b32.xlu0 %v1864, 74
        %v2041 = vpop.permute.xlu0 %2040
        %2042 = vrot.lane.b32.xlu0 %v1865, 74
        %v2043 = vpop.permute.xlu0 %2042
        %2044 = vrot.lane.b32.xlu0 %v1875, 74
        %v2045 = vpop.permute.xlu0 %2044
        %2046 = vrot.lane.b32.xlu0 %v1876, 74
        %v2047 = vpop.permute.xlu0 %2046
        %2048 = vrot.lane.b32.xlu0 %v1874, 74
        %v2049 = vpop.permute.xlu0 %2048
        %2050 = vrot.lane.b32.xlu0 %v1883, 74
        %v2051 = vpop.permute.xlu0 %2050
        %2052 = vrot.lane.b32.xlu0 %v1884, 74
        %v2053 = vpop.permute.xlu0 %2052
        %2054 = vrot.lane.b32.xlu0 %v1882, 74
        %v2055 = vpop.permute.xlu0 %2054
        %2056 = vrot.lane.b32.xlu0 %v1891, 74
        %v2057 = vpop.permute.xlu0 %2056
        %2058 = vrot.lane.b32.xlu0 %v1892, 74
        %v2059 = vpop.permute.xlu0 %2058
        %2060 = vrot.lane.b32.xlu0 %v1890, 74
        %v2061 = vpop.permute.xlu0 %2060
        %2062 = vrot.lane.b32.xlu0 %v1899, 74
        %v2063 = vpop.permute.xlu0 %2062
        %2064 = vrot.lane.b32.xlu0 %v1900, 74
        %v2065 = vpop.permute.xlu0 %2064
        %2066 = vrot.lane.b32.xlu0 %v1898, 74
        %v2067 = vpop.permute.xlu0 %2066
        %v2068 = vsel %vm445, %v2039, %v2041
        %v2069 = vsel %vm445, %v2041, %v2043
        %v2070 = vsel %vm445, %v2045, %v2047
        %v2071 = vsel %vm445, %v2047, %v2049
        %v2072 = vsel %vm445, %v2051, %v2053
        %v2073 = vsel %vm445, %v2053, %v2055
        %v2074 = vsel %vm445, %v2057, %v2059
        %v2075 = vsel %vm445, %v2059, %v2061
        %v2076 = vsel %vm445, %v2063, %v2065
        %v2077 = vsel %vm445, %v2065, %v2067
        %v2089 = vsel %vm331, %v1901, 0
        %v2092 = vsel %vm331, %v1902, 0
        %2094 = vmatprep.subr.mxu0 %v2069
        %2095 = vmatpush1.msra.mxu0 %v2068
        %2096 = vmatprep.subr.mxu0 %v2071
        %2097 = vmatpush1.msra.mxu0 %v2070
        %2098 = vmatprep.subr.mxu0 %v2073
        %2099 = vmatpush1.msra.mxu0 %v2072
        %2100 = vmatprep.subr.mxu0 %v2075
        %2101 = vmatpush1.msra.mxu0 %v2074
        %2102 = vmatprep.subr.mxu0 %v2077
        %2103 = vmatpush1.msra.mxu0 %v2076
        %2104 = vmatprep.subr.mxu0 0.0
        %2105 = vmatpush1.msra.mxu0 0.0
        %2106 = vmatprep.subr.mxu0 0.0
        %2107 = vmatpush1.msra.mxu0 0.0
        %2108 = vmatprep.subr.mxu0 0.0
        %2109 = vmatpush1.msra.mxu0 0.0
        %2110 = vmatprep.subr.mxu0 0.0
        %2111 = vmatpush1.msra.mxu0 0.0
        %2112 = vmatprep.subr.mxu0 0.0
        %2113 = vmatpush1.msra.mxu0 0.0
        %2114 = vmatprep.subr.mxu0 0.0
        %2115 = vmatpush1.msra.mxu0 0.0
        %2116 = vmatprep.subr.mxu0 0.0
        %2117 = vmatpush1.msra.mxu0 0.0
        %2118 = vmatprep.subr.mxu0 0.0
        %2119 = vmatpush1.msra.mxu0 0.0
        %2120 = vmatprep.subr.mxu0 0.0
        %2121 = vmatpush1.msra.mxu0 0.0
        %2122 = vmatprep.subr.mxu0 0.0
        %2123 = vmatpush1.msra.mxu0 0.0
        %2124 = vmatprep.subr.mxu0 0.0
        %2125 = vmatpush1.msra.mxu0 0.0
        %2126 = vmatprep.subr.mxu0 0.0
        %2127 = vmatpush1.msra.mxu0 0.0
        %2128 = vmatprep.subr.mxu0 0.0
        %2129 = vmatpush1.msra.mxu0 0.0
        %2130 = vmatprep.subr.mxu0 0.0
        %2131 = vmatpush1.msra.mxu0 0.0
        %2132 = vmatprep.subr.mxu0 0.0
        %2133 = vmatpush1.msra.mxu0 0.0
        %2134 = vmatprep.subr.mxu0 0.0
        %2135 = vmatpush1.msra.mxu0 0.0
        %2136 = vmatprep.subr.mxu0 0.0
        %2137 = vmatpush1.msra.mxu0 0.0
        %2138 = vmatprep.subr.mxu0 0.0
        %2139 = vmatpush1.msra.mxu0 0.0
        %2140 = vmatprep.subr.mxu0 0.0
        %2141 = vmatpush1.msra.mxu0 0.0
        %2142 = vmatprep.subr.mxu0 0.0
        %2143 = vmatpush1.msra.mxu0 0.0
        %2144 = vmatprep.subr.mxu0 0.0
        %2145 = vmatpush1.msra.mxu0 0.0
        %2146 = vmatprep.subr.mxu0 0.0
        %2147 = vmatpush1.msra.mxu0 0.0
        %2148 = vmatprep.subr.mxu0 0.0
        %2149 = vmatpush1.msra.mxu0 0.0
        %2150 = vmatprep.subr.mxu0 0.0
        %2151 = vmatpush1.msra.mxu0 0.0
        %2152 = vmatprep.subr.mxu0 0.0
        %2153 = vmatpush1.msra.mxu0 0.0
        %2154 = vmatprep.subr.mxu0 0.0
        %2155 = vmatpush1.msra.mxu0 0.0
        %2156 = vmatprep.subr.mxu0 0.0
        %2157 = vmatpush1.msra.mxu0 0.0
        %2158 = vmatprep.mubr.f32.mxu0 0.0
        %2159 = vmatmul.mubr.f32.gmra.mrb[0].mxu0 %v2089
        %v2160 = vpop.f32.mrb[0].mxu0
        %v2161 = vadd.f32 %v2028, %v2160
        %v2162 = vpop.f32.mrb[0].mxu0
        %v2163 = vadd.f32 %v2030, %v2162
        %2164 = vmatprep.mubr.f32.mxu0 0.0
        %2165 = vmatmul.mubr.f32.gmra.mrb[0].mxu0 %v2092
        %v2166 = vpop.f32.mrb[0].mxu0
        %v2167 = vadd.f32 %v2034, %v2166
        %v2168 = vpop.f32.mrb[0].mxu0
        %v2169 = vadd.f32 %v2036, %v2168
        %2170 = vdwg.mxu0
        %v2171 = vld [vmem:[%s200 + $0x20] sm:$0xff]
        %v2172 = vld [vmem:[%s200 + $0x28] sm:$0xff]
        %v2173 = vld [vmem:[%s200 + $0x30] sm:$0xff]
        %v2174 = vld [vmem:[%s200 + $0x38] sm:$0xff]
        %2178 = vrot.lane.b32.xlu0 %v2171, 127
        %v2179 = vpop.permute.xlu0 %2178
        %2180 = vrot.lane.b32.xlu0 %v2172, 127
        %v2181 = vpop.permute.xlu0 %2180
        %2182 = vrot.lane.b32.xlu0 %v2173, 127
        %v2183 = vpop.permute.xlu0 %2182
        %v2184 = vsel %vm245, %v2179, %v2181
        %v2185 = vsel %vm245, %v2181, %v2183
        %2186 = vrot.lane.b32.xlu0 %v2172, 126
        %v2187 = vpop.permute.xlu0 %2186
        %2188 = vrot.lane.b32.xlu0 %v2173, 126
        %v2189 = vpop.permute.xlu0 %2188
        %v2190 = vsel %vm254, %v2187, %v2189
        %2192 = vrot.lane.b32.xlu0 %v2172, 125
        %v2193 = vpop.permute.xlu0 %2192
        %2194 = vrot.lane.b32.xlu0 %v2173, 125
        %v2195 = vpop.permute.xlu0 %2194
        %2196 = vrot.lane.b32.xlu0 %v2174, 125
        %v2197 = vpop.permute.xlu0 %2196
        %v2198 = vsel %vm263, %v2193, %v2195
        %v2199 = vsel %vm263, %v2195, %v2197
        %2200 = vrot.lane.b32.xlu0 %v2172, 124
        %v2201 = vpop.permute.xlu0 %2200
        %2202 = vrot.lane.b32.xlu0 %v2173, 124
        %v2203 = vpop.permute.xlu0 %2202
        %2204 = vrot.lane.b32.xlu0 %v2174, 124
        %v2205 = vpop.permute.xlu0 %2204
        %v2206 = vsel %vm272, %v2201, %v2203
        %v2207 = vsel %vm272, %v2203, %v2205
        %v2208 = vld [vmem:[%s586] sm:$0xff]
        %v2209 = vld [vmem:[%s586 + $0x8] sm:$0xff]
        %2210 = vrot.lane.b32.xlu0 %v2171, 2
        %v2211 = vpop.permute.xlu0 %2210
        %2212 = vrot.lane.b32.xlu0 %v2172, 2
        %v2213 = vpop.permute.xlu0 %2212
        %2214 = vrot.lane.b32.xlu0 %v2173, 2
        %v2215 = vpop.permute.xlu0 %2214
        %2216 = vrot.lane.b32.xlu0 %v2184, 2
        %v2217 = vpop.permute.xlu0 %2216
        %2218 = vrot.lane.b32.xlu0 %v2185, 2
        %v2219 = vpop.permute.xlu0 %2218
        %2220 = vrot.lane.b32.xlu0 %v2183, 2
        %v2221 = vpop.permute.xlu0 %2220
        %2222 = vrot.lane.b32.xlu0 %v2187, 2
        %v2223 = vpop.permute.xlu0 %2222
        %2224 = vrot.lane.b32.xlu0 %v2190, 2
        %v2225 = vpop.permute.xlu0 %2224
        %2226 = vrot.lane.b32.xlu0 %v2189, 2
        %v2227 = vpop.permute.xlu0 %2226
        %2228 = vrot.lane.b32.xlu0 %v2193, 2
        %v2229 = vpop.permute.xlu0 %2228
        %2230 = vrot.lane.b32.xlu0 %v2198, 2
        %v2231 = vpop.permute.xlu0 %2230
        %2232 = vrot.lane.b32.xlu0 %v2199, 2
        %v2233 = vpop.permute.xlu0 %2232
        %2234 = vrot.lane.b32.xlu0 %v2201, 2
        %v2235 = vpop.permute.xlu0 %2234
        %2236 = vrot.lane.b32.xlu0 %v2206, 2
        %v2237 = vpop.permute.xlu0 %2236
        %2238 = vrot.lane.b32.xlu0 %v2207, 2
        %v2239 = vpop.permute.xlu0 %2238
        %v2240 = vsel %vm619, %v2211, %v2213
        %v2241 = vsel %vm619, %v2213, %v2215
        %v2242 = vsel %vm619, %v2217, %v2219
        %v2243 = vsel %vm619, %v2219, %v2221
        %v2244 = vsel %vm619, %v2223, %v2225
        %v2245 = vsel %vm619, %v2225, %v2227
        %v2246 = vsel %vm619, %v2229, %v2231
        %v2247 = vsel %vm619, %v2231, %v2233
        %v2248 = vsel %vm619, %v2235, %v2237
        %v2249 = vsel %vm619, %v2237, %v2239
        %v2261 = vsel %vm331, %v2208, 0
        %v2264 = vsel %vm331, %v2209, 0
        %2266 = vmatprep.subr.mxu0 %v2241
        %2267 = vmatpush1.msra.mxu0 %v2240
        %2268 = vmatprep.subr.mxu0 %v2243
        %2269 = vmatpush1.msra.mxu0 %v2242
        %2270 = vmatprep.subr.mxu0 %v2245
        %2271 = vmatpush1.msra.mxu0 %v2244
        %2272 = vmatprep.subr.mxu0 %v2247
        %2273 = vmatpush1.msra.mxu0 %v2246
        %2274 = vmatprep.subr.mxu0 %v2249
        %2275 = vmatpush1.msra.mxu0 %v2248
        %2276 = vmatprep.subr.mxu0 0.0
        %2277 = vmatpush1.msra.mxu0 0.0
        %2278 = vmatprep.subr.mxu0 0.0
        %2279 = vmatpush1.msra.mxu0 0.0
        %2280 = vmatprep.subr.mxu0 0.0
        %2281 = vmatpush1.msra.mxu0 0.0
        %2282 = vmatprep.subr.mxu0 0.0
        %2283 = vmatpush1.msra.mxu0 0.0
        %2284 = vmatprep.subr.mxu0 0.0
        %2285 = vmatpush1.msra.mxu0 0.0
        %2286 = vmatprep.subr.mxu0 0.0
        %2287 = vmatpush1.msra.mxu0 0.0
        %2288 = vmatprep.subr.mxu0 0.0
        %2289 = vmatpush1.msra.mxu0 0.0
        %2290 = vmatprep.subr.mxu0 0.0
        %2291 = vmatpush1.msra.mxu0 0.0
        %2292 = vmatprep.subr.mxu0 0.0
        %2293 = vmatpush1.msra.mxu0 0.0
        %2294 = vmatprep.subr.mxu0 0.0
        %2295 = vmatpush1.msra.mxu0 0.0
        %2296 = vmatprep.subr.mxu0 0.0
        %2297 = vmatpush1.msra.mxu0 0.0
        %2298 = vmatprep.subr.mxu0 0.0
        %2299 = vmatpush1.msra.mxu0 0.0
        %2300 = vmatprep.subr.mxu0 0.0
        %2301 = vmatpush1.msra.mxu0 0.0
        %2302 = vmatprep.subr.mxu0 0.0
        %2303 = vmatpush1.msra.mxu0 0.0
        %2304 = vmatprep.subr.mxu0 0.0
        %2305 = vmatpush1.msra.mxu0 0.0
        %2306 = vmatprep.subr.mxu0 0.0
        %2307 = vmatpush1.msra.mxu0 0.0
        %2308 = vmatprep.subr.mxu0 0.0
        %2309 = vmatpush1.msra.mxu0 0.0
        %2310 = vmatprep.subr.mxu0 0.0
        %2311 = vmatpush1.msra.mxu0 0.0
        %2312 = vmatprep.subr.mxu0 0.0
        %2313 = vmatpush1.msra.mxu0 0.0
        %2314 = vmatprep.subr.mxu0 0.0
        %2315 = vmatpush1.msra.mxu0 0.0
        %2316 = vmatprep.subr.mxu0 0.0
        %2317 = vmatpush1.msra.mxu0 0.0
        %2318 = vmatprep.subr.mxu0 0.0
        %2319 = vmatpush1.msra.mxu0 0.0
        %2320 = vmatprep.subr.mxu0 0.0
        %2321 = vmatpush1.msra.mxu0 0.0
        %2322 = vmatprep.subr.mxu0 0.0
        %2323 = vmatpush1.msra.mxu0 0.0
        %2324 = vmatprep.subr.mxu0 0.0
        %2325 = vmatpush1.msra.mxu0 0.0
        %2326 = vmatprep.subr.mxu0 0.0
        %2327 = vmatpush1.msra.mxu0 0.0
        %2328 = vmatprep.subr.mxu0 0.0
        %2329 = vmatpush1.msra.mxu0 0.0
        %2330 = vmatprep.mubr.f32.mxu0 0.0
        %2331 = vmatmul.mubr.f32.gmra.mrb[0].mxu0 %v2261
        %v2332 = vpop.f32.mrb[0].mxu0
        %v2333 = vadd.f32 0.0, %v2332
        %v2334 = vpop.f32.mrb[0].mxu0
        %v2335 = vadd.f32 0.0, %v2334
        %2336 = vmatprep.mubr.f32.mxu0 0.0
        %2337 = vmatmul.mubr.f32.gmra.mrb[0].mxu0 %v2264
        %v2338 = vpop.f32.mrb[0].mxu0
        %v2339 = vadd.f32 0.0, %v2338
        %v2340 = vpop.f32.mrb[0].mxu0
        %v2341 = vadd.f32 0.0, %v2340
        %2342 = vdwg.mxu0
        %v2343 = vadd.f32 %v2161, %v2333
        %v2344 = vadd.f32 %v2163, %v2335
        %v2345 = vadd.f32 %v2167, %v2339
        %v2346 = vadd.f32 %v2169, %v2341
        %2347 = vrot.lane.b32.xlu0 %v2174, 127
        %v2348 = vpop.permute.xlu0 %2347
        %v2349 = vsel %vm245, %v2183, %v2348
        %2350 = vrot.lane.b32.xlu0 %v2174, 126
        %v2351 = vpop.permute.xlu0 %2350
        %v2352 = vsel %vm254, %v2189, %v2351
        %v2353 = vld [vmem:[%s733] sm:$0xff]
        %v2354 = vld [vmem:[%s733 + $0x8] sm:$0xff]
        %2355 = vrot.lane.b32.xlu0 %v2172, 94
        %v2356 = vpop.permute.xlu0 %2355
        %2357 = vrot.lane.b32.xlu0 %v2173, 94
        %v2358 = vpop.permute.xlu0 %2357
        %2359 = vrot.lane.b32.xlu0 %v2174, 94
        %v2360 = vpop.permute.xlu0 %2359
        %2361 = vrot.lane.b32.xlu0 %v2185, 94
        %v2362 = vpop.permute.xlu0 %2361
        %2363 = vrot.lane.b32.xlu0 %v2349, 94
        %v2364 = vpop.permute.xlu0 %2363
        %2365 = vrot.lane.b32.xlu0 %v2348, 94
        %v2366 = vpop.permute.xlu0 %2365
        %2367 = vrot.lane.b32.xlu0 %v2190, 94
        %v2368 = vpop.permute.xlu0 %2367
        %2369 = vrot.lane.b32.xlu0 %v2352, 94
        %v2370 = vpop.permute.xlu0 %2369
        %2371 = vrot.lane.b32.xlu0 %v2351, 94
        %v2372 = vpop.permute.xlu0 %2371
        %2373 = vrot.lane.b32.xlu0 %v2198, 94
        %v2374 = vpop.permute.xlu0 %2373
        %2375 = vrot.lane.b32.xlu0 %v2199, 94
        %v2376 = vpop.permute.xlu0 %2375
        %2377 = vrot.lane.b32.xlu0 %v2197, 94
        %v2378 = vpop.permute.xlu0 %2377
        %2379 = vrot.lane.b32.xlu0 %v2206, 94
        %v2380 = vpop.permute.xlu0 %2379
        %2381 = vrot.lane.b32.xlu0 %v2207, 94
        %v2382 = vpop.permute.xlu0 %2381
        %2383 = vrot.lane.b32.xlu0 %v2205, 94
        %v2384 = vpop.permute.xlu0 %2383
        %v2385 = vsel %vm766, %v2356, %v2358
        %v2386 = vsel %vm766, %v2358, %v2360
        %v2387 = vsel %vm766, %v2362, %v2364
        %v2388 = vsel %vm766, %v2364, %v2366
        %v2389 = vsel %vm766, %v2368, %v2370
        %v2390 = vsel %vm766, %v2370, %v2372
        %v2391 = vsel %vm766, %v2374, %v2376
        %v2392 = vsel %vm766, %v2376, %v2378
        %v2393 = vsel %vm766, %v2380, %v2382
        %v2394 = vsel %vm766, %v2382, %v2384
        %v2406 = vsel %vm331, %v2353, 0
        %v2409 = vsel %vm331, %v2354, 0
        %2411 = vmatprep.subr.mxu0 %v2386
        %2412 = vmatpush1.msra.mxu0 %v2385
        %2413 = vmatprep.subr.mxu0 %v2388
        %2414 = vmatpush1.msra.mxu0 %v2387
        %2415 = vmatprep.subr.mxu0 %v2390
        %2416 = vmatpush1.msra.mxu0 %v2389
        %2417 = vmatprep.subr.mxu0 %v2392
        %2418 = vmatpush1.msra.mxu0 %v2391
        %2419 = vmatprep.subr.mxu0 %v2394
        %2420 = vmatpush1.msra.mxu0 %v2393
        %2421 = vmatprep.subr.mxu0 0.0
        %2422 = vmatpush1.msra.mxu0 0.0
        %2423 = vmatprep.subr.mxu0 0.0
        %2424 = vmatpush1.msra.mxu0 0.0
        %2425 = vmatprep.subr.mxu0 0.0
        %2426 = vmatpush1.msra.mxu0 0.0
        %2427 = vmatprep.subr.mxu0 0.0
        %2428 = vmatpush1.msra.mxu0 0.0
        %2429 = vmatprep.subr.mxu0 0.0
        %2430 = vmatpush1.msra.mxu0 0.0
        %2431 = vmatprep.subr.mxu0 0.0
        %2432 = vmatpush1.msra.mxu0 0.0
        %2433 = vmatprep.subr.mxu0 0.0
        %2434 = vmatpush1.msra.mxu0 0.0
        %2435 = vmatprep.subr.mxu0 0.0
        %2436 = vmatpush1.msra.mxu0 0.0
        %2437 = vmatprep.subr.mxu0 0.0
        %2438 = vmatpush1.msra.mxu0 0.0
        %2439 = vmatprep.subr.mxu0 0.0
        %2440 = vmatpush1.msra.mxu0 0.0
        %2441 = vmatprep.subr.mxu0 0.0
        %2442 = vmatpush1.msra.mxu0 0.0
        %2443 = vmatprep.subr.mxu0 0.0
        %2444 = vmatpush1.msra.mxu0 0.0
        %2445 = vmatprep.subr.mxu0 0.0
        %2446 = vmatpush1.msra.mxu0 0.0
        %2447 = vmatprep.subr.mxu0 0.0
        %2448 = vmatpush1.msra.mxu0 0.0
        %2449 = vmatprep.subr.mxu0 0.0
        %2450 = vmatpush1.msra.mxu0 0.0
        %2451 = vmatprep.subr.mxu0 0.0
        %2452 = vmatpush1.msra.mxu0 0.0
        %2453 = vmatprep.subr.mxu0 0.0
        %2454 = vmatpush1.msra.mxu0 0.0
        %2455 = vmatprep.subr.mxu0 0.0
        %2456 = vmatpush1.msra.mxu0 0.0
        %2457 = vmatprep.subr.mxu0 0.0
        %2458 = vmatpush1.msra.mxu0 0.0
        %2459 = vmatprep.subr.mxu0 0.0
        %2460 = vmatpush1.msra.mxu0 0.0
        %2461 = vmatprep.subr.mxu0 0.0
        %2462 = vmatpush1.msra.mxu0 0.0
        %2463 = vmatprep.subr.mxu0 0.0
        %2464 = vmatpush1.msra.mxu0 0.0
        %2465 = vmatprep.subr.mxu0 0.0
        %2466 = vmatpush1.msra.mxu0 0.0
        %2467 = vmatprep.subr.mxu0 0.0
        %2468 = vmatpush1.msra.mxu0 0.0
        %2469 = vmatprep.subr.mxu0 0.0
        %2470 = vmatpush1.msra.mxu0 0.0
        %2471 = vmatprep.subr.mxu0 0.0
        %2472 = vmatpush1.msra.mxu0 0.0
        %2473 = vmatprep.subr.mxu0 0.0
        %2474 = vmatpush1.msra.mxu0 0.0
        %2475 = vmatprep.mubr.f32.mxu0 0.0
        %2476 = vmatmul.mubr.f32.gmra.mrb[0].mxu0 %v2406
        %v2477 = vpop.f32.mrb[0].mxu0
        %v2478 = vadd.f32 0.0, %v2477
        %v2479 = vpop.f32.mrb[0].mxu0
        %v2480 = vadd.f32 0.0, %v2479
        %2481 = vmatprep.mubr.f32.mxu0 0.0
        %2482 = vmatmul.mubr.f32.gmra.mrb[0].mxu0 %v2409
        %v2483 = vpop.f32.mrb[0].mxu0
        %v2484 = vadd.f32 0.0, %v2483
        %v2485 = vpop.f32.mrb[0].mxu0
        %v2486 = vadd.f32 0.0, %v2485
        %2487 = vdwg.mxu0
        %v2488 = vadd.f32 %v2343, %v2478
        %v2489 = vadd.f32 %v2344, %v2480
        %v2490 = vadd.f32 %v2345, %v2484
        %v2491 = vadd.f32 %v2346, %v2486
        %v2492 = vld [vmem:[%s874] sm:$0xff]
        %v2493 = vld [vmem:[%s874 + $0x8] sm:$0xff]
        %2494 = vrot.lane.b32.xlu0 %v2172, 58
        %v2495 = vpop.permute.xlu0 %2494
        %2496 = vrot.lane.b32.xlu0 %v2173, 58
        %v2497 = vpop.permute.xlu0 %2496
        %2498 = vrot.lane.b32.xlu0 %v2174, 58
        %v2499 = vpop.permute.xlu0 %2498
        %2500 = vrot.lane.b32.xlu0 %v2185, 58
        %v2501 = vpop.permute.xlu0 %2500
        %2502 = vrot.lane.b32.xlu0 %v2349, 58
        %v2503 = vpop.permute.xlu0 %2502
        %2504 = vrot.lane.b32.xlu0 %v2348, 58
        %v2505 = vpop.permute.xlu0 %2504
        %2506 = vrot.lane.b32.xlu0 %v2190, 58
        %v2507 = vpop.permute.xlu0 %2506
        %2508 = vrot.lane.b32.xlu0 %v2352, 58
        %v2509 = vpop.permute.xlu0 %2508
        %2510 = vrot.lane.b32.xlu0 %v2351, 58
        %v2511 = vpop.permute.xlu0 %2510
        %2512 = vrot.lane.b32.xlu0 %v2198, 58
        %v2513 = vpop.permute.xlu0 %2512
        %2514 = vrot.lane.b32.xlu0 %v2199, 58
        %v2515 = vpop.permute.xlu0 %2514
        %2516 = vrot.lane.b32.xlu0 %v2197, 58
        %v2517 = vpop.permute.xlu0 %2516
        %2518 = vrot.lane.b32.xlu0 %v2206, 58
        %v2519 = vpop.permute.xlu0 %2518
        %2520 = vrot.lane.b32.xlu0 %v2207, 58
        %v2521 = vpop.permute.xlu0 %2520
        %2522 = vrot.lane.b32.xlu0 %v2205, 58
        %v2523 = vpop.permute.xlu0 %2522
        %v2524 = vsel %vm907, %v2495, %v2497
        %v2525 = vsel %vm907, %v2497, %v2499
        %v2526 = vsel %vm907, %v2501, %v2503
        %v2527 = vsel %vm907, %v2503, %v2505
        %v2528 = vsel %vm907, %v2507, %v2509
        %v2529 = vsel %vm907, %v2509, %v2511
        %v2530 = vsel %vm907, %v2513, %v2515
        %v2531 = vsel %vm907, %v2515, %v2517
        %v2532 = vsel %vm907, %v2519, %v2521
        %v2533 = vsel %vm907, %v2521, %v2523
        %v2545 = vsel %vm331, %v2492, 0
        %v2548 = vsel %vm331, %v2493, 0
        %2550 = vmatprep.subr.mxu0 %v2525
        %2551 = vmatpush1.msra.mxu0 %v2524
        %2552 = vmatprep.subr.mxu0 %v2527
        %2553 = vmatpush1.msra.mxu0 %v2526
        %2554 = vmatprep.subr.mxu0 %v2529
        %2555 = vmatpush1.msra.mxu0 %v2528
        %2556 = vmatprep.subr.mxu0 %v2531
        %2557 = vmatpush1.msra.mxu0 %v2530
        %2558 = vmatprep.subr.mxu0 %v2533
        %2559 = vmatpush1.msra.mxu0 %v2532
        %2560 = vmatprep.subr.mxu0 0.0
        %2561 = vmatpush1.msra.mxu0 0.0
        %2562 = vmatprep.subr.mxu0 0.0
        %2563 = vmatpush1.msra.mxu0 0.0
        %2564 = vmatprep.subr.mxu0 0.0
        %2565 = vmatpush1.msra.mxu0 0.0
        %2566 = vmatprep.subr.mxu0 0.0
        %2567 = vmatpush1.msra.mxu0 0.0
        %2568 = vmatprep.subr.mxu0 0.0
        %2569 = vmatpush1.msra.mxu0 0.0
        %2570 = vmatprep.subr.mxu0 0.0
        %2571 = vmatpush1.msra.mxu0 0.0
        %2572 = vmatprep.subr.mxu0 0.0
        %2573 = vmatpush1.msra.mxu0 0.0
        %2574 = vmatprep.subr.mxu0 0.0
        %2575 = vmatpush1.msra.mxu0 0.0
        %2576 = vmatprep.subr.mxu0 0.0
        %2577 = vmatpush1.msra.mxu0 0.0
        %2578 = vmatprep.subr.mxu0 0.0
        %2579 = vmatpush1.msra.mxu0 0.0
        %2580 = vmatprep.subr.mxu0 0.0
        %2581 = vmatpush1.msra.mxu0 0.0
        %2582 = vmatprep.subr.mxu0 0.0
        %2583 = vmatpush1.msra.mxu0 0.0
        %2584 = vmatprep.subr.mxu0 0.0
        %2585 = vmatpush1.msra.mxu0 0.0
        %2586 = vmatprep.subr.mxu0 0.0
        %2587 = vmatpush1.msra.mxu0 0.0
        %2588 = vmatprep.subr.mxu0 0.0
        %2589 = vmatpush1.msra.mxu0 0.0
        %2590 = vmatprep.subr.mxu0 0.0
        %2591 = vmatpush1.msra.mxu0 0.0
        %2592 = vmatprep.subr.mxu0 0.0
        %2593 = vmatpush1.msra.mxu0 0.0
        %2594 = vmatprep.subr.mxu0 0.0
        %2595 = vmatpush1.msra.mxu0 0.0
        %2596 = vmatprep.subr.mxu0 0.0
        %2597 = vmatpush1.msra.mxu0 0.0
        %2598 = vmatprep.subr.mxu0 0.0
        %2599 = vmatpush1.msra.mxu0 0.0
        %2600 = vmatprep.subr.mxu0 0.0
        %2601 = vmatpush1.msra.mxu0 0.0
        %2602 = vmatprep.subr.mxu0 0.0
        %2603 = vmatpush1.msra.mxu0 0.0
        %2604 = vmatprep.subr.mxu0 0.0
        %2605 = vmatpush1.msra.mxu0 0.0
        %2606 = vmatprep.subr.mxu0 0.0
        %2607 = vmatpush1.msra.mxu0 0.0
        %2608 = vmatprep.subr.mxu0 0.0
        %2609 = vmatpush1.msra.mxu0 0.0
        %2610 = vmatprep.subr.mxu0 0.0
        %2611 = vmatpush1.msra.mxu0 0.0
        %2612 = vmatprep.subr.mxu0 0.0
        %2613 = vmatpush1.msra.mxu0 0.0
        %2614 = vmatprep.mubr.f32.mxu0 0.0
        %2615 = vmatmul.mubr.f32.gmra.mrb[0].mxu0 %v2545
        %v2616 = vpop.f32.mrb[0].mxu0
        %v2617 = vadd.f32 0.0, %v2616
        %v2618 = vpop.f32.mrb[0].mxu0
        %v2619 = vadd.f32 0.0, %v2618
        %2620 = vmatprep.mubr.f32.mxu0 0.0
        %2621 = vmatmul.mubr.f32.gmra.mrb[0].mxu0 %v2548
        %v2622 = vpop.f32.mrb[0].mxu0
        %v2623 = vadd.f32 0.0, %v2622
        %v2624 = vpop.f32.mrb[0].mxu0
        %v2625 = vadd.f32 0.0, %v2624
        %2626 = vdwg.mxu0
        %v2627 = vadd.f32 %v2488, %v2617
        %v2628 = vadd.f32 %v2489, %v2619
        %v2629 = vadd.f32 %v2490, %v2623
        %v2630 = vadd.f32 %v2491, %v2625
        %v2631 = vld [vmem:[%s2] sm:$0xff]
        %v2632 = vld [vmem:[%s2 + $0x8] sm:$0xff]
        %2634 = vset.pattern.permute.xlu0 0
        %2635 = vperm.xlu0 %2634, %v2631
        %v2636 = vpop.permute.xlu0 %2635
        %2639 = vset.pattern.permute.xlu0 0
        %2640 = vperm.xlu0 %2639, %v2632
        %v2641 = vpop.permute.xlu0 %2640
        %v2643 = vadd.f32 %v2627, %v2636
        %v2644 = vadd.f32 %v2628, %v2636
        %v2645 = vadd.f32 %v2629, %v2641
        %v2646 = vadd.f32 %v2630, %v2641
        %v2647 = vmax.f32 %v2643, 0.0
        %v2648 = vmax.f32 %v2644, 0.0
        %v2649 = vmax.f32 %v2645, 0.0
        %v2650 = vmax.f32 %v2646, 0.0
        %v2651 = vld [vmem:[%s3 + $0x4] sm:$0x3]
        %v2653 = vlaneseq
        %v2654 = vshrl.u32 %v2653, 7
        %v2655 = vsub.s32 0, %v2654
        %v2656 = vrot.slane %v2651, %v2655
        %v2657 = vlaneseq
        %v2658 = vshrl.u32 %v2657, 7
        %v2659 = vsub.s32 1, %v2658
        %v2660 = vrot.slane %v2651, %v2659
        %v2663 = vmul.f32 %v2647, %v2656
        %v2664 = vmul.f32 %v2648, %v2660
        %v2665 = vmul.f32 %v2649, %v2656
        %v2666 = vmul.f32 %v2650, %v2660
        %2667 = vst [vmem:[%s228 + $0x28] sm:$0xff] %v2663
        %2668 = vst [vmem:[%s228 + $0x30] sm:$0xff] %v2664
        %2669 = vst [vmem:[%s228 + $0x98] sm:$0xff] %v2665
        %2670 = vst [vmem:[%s228 + $0xa0] sm:$0xff] %v2666
        %v2671 = vld [vmem:[%s200 + $0x30] sm:$0xff]
        %v2672 = vld [vmem:[%s200 + $0x38] sm:$0xff]
        %v2673 = vld [vmem:[%s200 + $0x40] sm:$0xff]
        %2677 = vrot.lane.b32.xlu0 %v2671, 127
        %v2678 = vpop.permute.xlu0 %2677
        %2679 = vrot.lane.b32.xlu0 %v2672, 127
        %v2680 = vpop.permute.xlu0 %2679
        %2681 = vrot.lane.b32.xlu0 %v2673, 127
        %v2682 = vpop.permute.xlu0 %2681
        %v2683 = vsel %vm245, %v2678, %v2680
        %v2684 = vsel %vm245, %v2680, %v2682
        %2685 = vrot.lane.b32.xlu0 %v2671, 126
        %v2686 = vpop.permute.xlu0 %2685
        %2687 = vrot.lane.b32.xlu0 %v2672, 126
        %v2688 = vpop.permute.xlu0 %2687
        %2689 = vrot.lane.b32.xlu0 %v2673, 126
        %v2690 = vpop.permute.xlu0 %2689
        %v2691 = vsel %vm254, %v2686, %v2688
        %v2692 = vsel %vm254, %v2688, %v2690
        %2693 = vrot.lane.b32.xlu0 %v2671, 125
        %v2694 = vpop.permute.xlu0 %2693
        %2695 = vrot.lane.b32.xlu0 %v2672, 125
        %v2696 = vpop.permute.xlu0 %2695
        %2697 = vrot.lane.b32.xlu0 %v2673, 125
        %v2698 = vpop.permute.xlu0 %2697
        %v2699 = vsel %vm263, %v2694, %v2696
        %v2700 = vsel %vm263, %v2696, %v2698
        %2701 = vrot.lane.b32.xlu0 %v2671, 124
        %v2702 = vpop.permute.xlu0 %2701
        %2703 = vrot.lane.b32.xlu0 %v2672, 124
        %v2704 = vpop.permute.xlu0 %2703
        %2705 = vrot.lane.b32.xlu0 %v2673, 124
        %v2706 = vpop.permute.xlu0 %2705
        %v2707 = vsel %vm272, %v2702, %v2704
        %v2708 = vsel %vm272, %v2704, %v2706
        %v2709 = vld [vmem:[#allocation5] sm:$0xff]
        %v2710 = vld [vmem:[#allocation5 + $0x8] sm:$0xff]
        %v2711 = vld [vmem:[%s277] sm:$0xff]
        %v2712 = vld [vmem:[%s277 + $0x8] sm:$0xff]
        %2713 = vrot.lane.b32.xlu0 %v2671, 38
        %v2714 = vpop.permute.xlu0 %2713
        %2715 = vrot.lane.b32.xlu0 %v2672, 38
        %v2716 = vpop.permute.xlu0 %2715
        %2717 = vrot.lane.b32.xlu0 %v2673, 38
        %v2718 = vpop.permute.xlu0 %2717
        %2719 = vrot.lane.b32.xlu0 %v2683, 38
        %v2720 = vpop.permute.xlu0 %2719
        %2721 = vrot.lane.b32.xlu0 %v2684, 38
        %v2722 = vpop.permute.xlu0 %2721
        %2723 = vrot.lane.b32.xlu0 %v2682, 38
        %v2724 = vpop.permute.xlu0 %2723
        %2725 = vrot.lane.b32.xlu0 %v2691, 38
        %v2726 = vpop.permute.xlu0 %2725
        %2727 = vrot.lane.b32.xlu0 %v2692, 38
        %v2728 = vpop.permute.xlu0 %2727
        %2729 = vrot.lane.b32.xlu0 %v2690, 38
        %v2730 = vpop.permute.xlu0 %2729
        %2731 = vrot.lane.b32.xlu0 %v2699, 38
        %v2732 = vpop.permute.xlu0 %2731
        %2733 = vrot.lane.b32.xlu0 %v2700, 38
        %v2734 = vpop.permute.xlu0 %2733
        %2735 = vrot.lane.b32.xlu0 %v2698, 38
        %v2736 = vpop.permute.xlu0 %2735
        %2737 = vrot.lane.b32.xlu0 %v2707, 38
        %v2738 = vpop.permute.xlu0 %2737
        %2739 = vrot.lane.b32.xlu0 %v2708, 38
        %v2740 = vpop.permute.xlu0 %2739
        %2741 = vrot.lane.b32.xlu0 %v2706, 38
        %v2742 = vpop.permute.xlu0 %2741
        %v2743 = vsel %vm310, %v2714, %v2716
        %v2744 = vsel %vm310, %v2716, %v2718
        %v2745 = vsel %vm310, %v2720, %v2722
        %v2746 = vsel %vm310, %v2722, %v2724
        %v2747 = vsel %vm310, %v2726, %v2728
        %v2748 = vsel %vm310, %v2728, %v2730
        %v2749 = vsel %vm310, %v2732, %v2734
        %v2750 = vsel %vm310, %v2734, %v2736
        %v2751 = vsel %vm310, %v2738, %v2740
        %v2752 = vsel %vm310, %v2740, %v2742
        %v2764 = vsel %vm331, %v2711, 0
        %v2767 = vsel %vm331, %v2712, 0
        %2769 = vmatprep.subr.mxu0 %v2744
        %2770 = vmatpush1.msra.mxu0 %v2743
        %2771 = vmatprep.subr.mxu0 %v2746
        %2772 = vmatpush1.msra.mxu0 %v2745
        %2773 = vmatprep.subr.mxu0 %v2748
        %2774 = vmatpush1.msra.mxu0 %v2747
        %2775 = vmatprep.subr.mxu0 %v2750
        %2776 = vmatpush1.msra.mxu0 %v2749
        %2777 = vmatprep.subr.mxu0 %v2752
        %2778 = vmatpush1.msra.mxu0 %v2751
        %2779 = vmatprep.subr.mxu0 0.0
        %2780 = vmatpush1.msra.mxu0 0.0
        %2781 = vmatprep.subr.mxu0 0.0
        %2782 = vmatpush1.msra.mxu0 0.0
        %2783 = vmatprep.subr.mxu0 0.0
        %2784 = vmatpush1.msra.mxu0 0.0
        %2785 = vmatprep.subr.mxu0 0.0
        %2786 = vmatpush1.msra.mxu0 0.0
        %2787 = vmatprep.subr.mxu0 0.0
        %2788 = vmatpush1.msra.mxu0 0.0
        %2789 = vmatprep.subr.mxu0 0.0
        %2790 = vmatpush1.msra.mxu0 0.0
        %2791 = vmatprep.subr.mxu0 0.0
        %2792 = vmatpush1.msra.mxu0 0.0
        %2793 = vmatprep.subr.mxu0 0.0
        %2794 = vmatpush1.msra.mxu0 0.0
        %2795 = vmatprep.subr.mxu0 0.0
        %2796 = vmatpush1.msra.mxu0 0.0
        %2797 = vmatprep.subr.mxu0 0.0
        %2798 = vmatpush1.msra.mxu0 0.0
        %2799 = vmatprep.subr.mxu0 0.0
        %2800 = vmatpush1.msra.mxu0 0.0
        %2801 = vmatprep.subr.mxu0 0.0
        %2802 = vmatpush1.msra.mxu0 0.0
        %2803 = vmatprep.subr.mxu0 0.0
        %2804 = vmatpush1.msra.mxu0 0.0
        %2805 = vmatprep.subr.mxu0 0.0
        %2806 = vmatpush1.msra.mxu0 0.0
        %2807 = vmatprep.subr.mxu0 0.0
        %2808 = vmatpush1.msra.mxu0 0.0
        %2809 = vmatprep.subr.mxu0 0.0
        %2810 = vmatpush1.msra.mxu0 0.0
        %2811 = vmatprep.subr.mxu0 0.0
        %2812 = vmatpush1.msra.mxu0 0.0
        %2813 = vmatprep.subr.mxu0 0.0
        %2814 = vmatpush1.msra.mxu0 0.0
        %2815 = vmatprep.subr.mxu0 0.0
        %2816 = vmatpush1.msra.mxu0 0.0
        %2817 = vmatprep.subr.mxu0 0.0
        %2818 = vmatpush1.msra.mxu0 0.0
        %2819 = vmatprep.subr.mxu0 0.0
        %2820 = vmatpush1.msra.mxu0 0.0
        %2821 = vmatprep.subr.mxu0 0.0
        %2822 = vmatpush1.msra.mxu0 0.0
        %2823 = vmatprep.subr.mxu0 0.0
        %2824 = vmatpush1.msra.mxu0 0.0
        %2825 = vmatprep.subr.mxu0 0.0
        %2826 = vmatpush1.msra.mxu0 0.0
        %2827 = vmatprep.subr.mxu0 0.0
        %2828 = vmatpush1.msra.mxu0 0.0
        %2829 = vmatprep.subr.mxu0 0.0
        %2830 = vmatpush1.msra.mxu0 0.0
        %2831 = vmatprep.subr.mxu0 0.0
        %2832 = vmatpush1.msra.mxu0 0.0
        %2833 = vmatprep.mubr.f32.mxu0 0.0
        %2834 = vmatmul.mubr.f32.gmra.mrb[0].mxu0 %v2764
        %v2835 = vpop.f32.mrb[0].mxu0
        %v2836 = vadd.f32 0.0, %v2835
        %v2837 = vpop.f32.mrb[0].mxu0
        %v2838 = vadd.f32 0.0, %v2837
        %2839 = vmatprep.mubr.f32.mxu0 0.0
        %2840 = vmatmul.mubr.f32.gmra.mrb[0].mxu0 %v2767
        %v2841 = vpop.f32.mrb[0].mxu0
        %v2842 = vadd.f32 0.0, %v2841
        %v2843 = vpop.f32.mrb[0].mxu0
        %v2844 = vadd.f32 0.0, %v2843
        %2845 = vdwg.mxu0
        %2846 = vrot.lane.b32.xlu0 %v2671, 74
        %v2847 = vpop.permute.xlu0 %2846
        %2848 = vrot.lane.b32.xlu0 %v2672, 74
        %v2849 = vpop.permute.xlu0 %2848
        %2850 = vrot.lane.b32.xlu0 %v2673, 74
        %v2851 = vpop.permute.xlu0 %2850
        %2852 = vrot.lane.b32.xlu0 %v2683, 74
        %v2853 = vpop.permute.xlu0 %2852
        %2854 = vrot.lane.b32.xlu0 %v2684, 74
        %v2855 = vpop.permute.xlu0 %2854
        %2856 = vrot.lane.b32.xlu0 %v2682, 74
        %v2857 = vpop.permute.xlu0 %2856
        %2858 = vrot.lane.b32.xlu0 %v2691, 74
        %v2859 = vpop.permute.xlu0 %2858
        %2860 = vrot.lane.b32.xlu0 %v2692, 74
        %v2861 = vpop.permute.xlu0 %2860
        %2862 = vrot.lane.b32.xlu0 %v2690, 74
        %v2863 = vpop.permute.xlu0 %2862
        %2864 = vrot.lane.b32.xlu0 %v2699, 74
        %v2865 = vpop.permute.xlu0 %2864
        %2866 = vrot.lane.b32.xlu0 %v2700, 74
        %v2867 = vpop.permute.xlu0 %2866
        %2868 = vrot.lane.b32.xlu0 %v2698, 74
        %v2869 = vpop.permute.xlu0 %2868
        %2870 = vrot.lane.b32.xlu0 %v2707, 74
        %v2871 = vpop.permute.xlu0 %2870
        %2872 = vrot.lane.b32.xlu0 %v2708, 74
        %v2873 = vpop.permute.xlu0 %2872
        %2874 = vrot.lane.b32.xlu0 %v2706, 74
        %v2875 = vpop.permute.xlu0 %2874
        %v2876 = vsel %vm445, %v2847, %v2849
        %v2877 = vsel %vm445, %v2849, %v2851
        %v2878 = vsel %vm445, %v2853, %v2855
        %v2879 = vsel %vm445, %v2855, %v2857
        %v2880 = vsel %vm445, %v2859, %v2861
        %v2881 = vsel %vm445, %v2861, %v2863
        %v2882 = vsel %vm445, %v2865, %v2867
        %v2883 = vsel %vm445, %v2867, %v2869
        %v2884 = vsel %vm445, %v2871, %v2873
        %v2885 = vsel %vm445, %v2873, %v2875
        %v2897 = vsel %vm331, %v2709, 0
        %v2900 = vsel %vm331, %v2710, 0
        %2902 = vmatprep.subr.mxu0 %v2877
        %2903 = vmatpush1.msra.mxu0 %v2876
        %2904 = vmatprep.subr.mxu0 %v2879
        %2905 = vmatpush1.msra.mxu0 %v2878
        %2906 = vmatprep.subr.mxu0 %v2881
        %2907 = vmatpush1.msra.mxu0 %v2880
        %2908 = vmatprep.subr.mxu0 %v2883
        %2909 = vmatpush1.msra.mxu0 %v2882
        %2910 = vmatprep.subr.mxu0 %v2885
        %2911 = vmatpush1.msra.mxu0 %v2884
        %2912 = vmatprep.subr.mxu0 0.0
        %2913 = vmatpush1.msra.mxu0 0.0
        %2914 = vmatprep.subr.mxu0 0.0
        %2915 = vmatpush1.msra.mxu0 0.0
        %2916 = vmatprep.subr.mxu0 0.0
        %2917 = vmatpush1.msra.mxu0 0.0
        %2918 = vmatprep.subr.mxu0 0.0
        %2919 = vmatpush1.msra.mxu0 0.0
        %2920 = vmatprep.subr.mxu0 0.0
        %2921 = vmatpush1.msra.mxu0 0.0
        %2922 = vmatprep.subr.mxu0 0.0
        %2923 = vmatpush1.msra.mxu0 0.0
        %2924 = vmatprep.subr.mxu0 0.0
        %2925 = vmatpush1.msra.mxu0 0.0
        %2926 = vmatprep.subr.mxu0 0.0
        %2927 = vmatpush1.msra.mxu0 0.0
        %2928 = vmatprep.subr.mxu0 0.0
        %2929 = vmatpush1.msra.mxu0 0.0
        %2930 = vmatprep.subr.mxu0 0.0
        %2931 = vmatpush1.msra.mxu0 0.0
        %2932 = vmatprep.subr.mxu0 0.0
        %2933 = vmatpush1.msra.mxu0 0.0
        %2934 = vmatprep.subr.mxu0 0.0
        %2935 = vmatpush1.msra.mxu0 0.0
        %2936 = vmatprep.subr.mxu0 0.0
        %2937 = vmatpush1.msra.mxu0 0.0
        %2938 = vmatprep.subr.mxu0 0.0
        %2939 = vmatpush1.msra.mxu0 0.0
        %2940 = vmatprep.subr.mxu0 0.0
        %2941 = vmatpush1.msra.mxu0 0.0
        %2942 = vmatprep.subr.mxu0 0.0
        %2943 = vmatpush1.msra.mxu0 0.0
        %2944 = vmatprep.subr.mxu0 0.0
        %2945 = vmatpush1.msra.mxu0 0.0
        %2946 = vmatprep.subr.mxu0 0.0
        %2947 = vmatpush1.msra.mxu0 0.0
        %2948 = vmatprep.subr.mxu0 0.0
        %2949 = vmatpush1.msra.mxu0 0.0
        %2950 = vmatprep.subr.mxu0 0.0
        %2951 = vmatpush1.msra.mxu0 0.0
        %2952 = vmatprep.subr.mxu0 0.0
        %2953 = vmatpush1.msra.mxu0 0.0
        %2954 = vmatprep.subr.mxu0 0.0
        %2955 = vmatpush1.msra.mxu0 0.0
        %2956 = vmatprep.subr.mxu0 0.0
        %2957 = vmatpush1.msra.mxu0 0.0
        %2958 = vmatprep.subr.mxu0 0.0
        %2959 = vmatpush1.msra.mxu0 0.0
        %2960 = vmatprep.subr.mxu0 0.0
        %2961 = vmatpush1.msra.mxu0 0.0
        %2962 = vmatprep.subr.mxu0 0.0
        %2963 = vmatpush1.msra.mxu0 0.0
        %2964 = vmatprep.subr.mxu0 0.0
        %2965 = vmatpush1.msra.mxu0 0.0
        %2966 = vmatprep.mubr.f32.mxu0 0.0
        %2967 = vmatmul.mubr.f32.gmra.mrb[0].mxu0 %v2897
        %v2968 = vpop.f32.mrb[0].mxu0
        %v2969 = vadd.f32 %v2836, %v2968
        %v2970 = vpop.f32.mrb[0].mxu0
        %v2971 = vadd.f32 %v2838, %v2970
        %2972 = vmatprep.mubr.f32.mxu0 0.0
        %2973 = vmatmul.mubr.f32.gmra.mrb[0].mxu0 %v2900
        %v2974 = vpop.f32.mrb[0].mxu0
        %v2975 = vadd.f32 %v2842, %v2974
        %v2976 = vpop.f32.mrb[0].mxu0
        %v2977 = vadd.f32 %v2844, %v2976
        %2978 = vdwg.mxu0
        %v2979 = vld [vmem:[%s200 + $0x30] sm:$0xff]
        %v2980 = vld [vmem:[%s200 + $0x38] sm:$0xff]
        %v2981 = vld [vmem:[%s200 + $0x40] sm:$0xff]
        %v2982 = vld [vmem:[%s200 + $0x48] sm:$0xff]
        %2986 = vrot.lane.b32.xlu0 %v2979, 127
        %v2987 = vpop.permute.xlu0 %2986
        %2988 = vrot.lane.b32.xlu0 %v2980, 127
        %v2989 = vpop.permute.xlu0 %2988
        %2990 = vrot.lane.b32.xlu0 %v2981, 127
        %v2991 = vpop.permute.xlu0 %2990
        %v2992 = vsel %vm245, %v2987, %v2989
        %v2993 = vsel %vm245, %v2989, %v2991
        %2994 = vrot.lane.b32.xlu0 %v2980, 126
        %v2995 = vpop.permute.xlu0 %2994
        %2996 = vrot.lane.b32.xlu0 %v2981, 126
        %v2997 = vpop.permute.xlu0 %2996
        %v2998 = vsel %vm254, %v2995, %v2997
        %3000 = vrot.lane.b32.xlu0 %v2980, 125
        %v3001 = vpop.permute.xlu0 %3000
        %3002 = vrot.lane.b32.xlu0 %v2981, 125
        %v3003 = vpop.permute.xlu0 %3002
        %3004 = vrot.lane.b32.xlu0 %v2982, 125
        %v3005 = vpop.permute.xlu0 %3004
        %v3006 = vsel %vm263, %v3001, %v3003
        %v3007 = vsel %vm263, %v3003, %v3005
        %3008 = vrot.lane.b32.xlu0 %v2980, 124
        %v3009 = vpop.permute.xlu0 %3008
        %3010 = vrot.lane.b32.xlu0 %v2981, 124
        %v3011 = vpop.permute.xlu0 %3010
        %3012 = vrot.lane.b32.xlu0 %v2982, 124
        %v3013 = vpop.permute.xlu0 %3012
        %v3014 = vsel %vm272, %v3009, %v3011
        %v3015 = vsel %vm272, %v3011, %v3013
        %v3016 = vld [vmem:[%s586] sm:$0xff]
        %v3017 = vld [vmem:[%s586 + $0x8] sm:$0xff]
        %3018 = vrot.lane.b32.xlu0 %v2979, 2
        %v3019 = vpop.permute.xlu0 %3018
        %3020 = vrot.lane.b32.xlu0 %v2980, 2
        %v3021 = vpop.permute.xlu0 %3020
        %3022 = vrot.lane.b32.xlu0 %v2981, 2
        %v3023 = vpop.permute.xlu0 %3022
        %3024 = vrot.lane.b32.xlu0 %v2992, 2
        %v3025 = vpop.permute.xlu0 %3024
        %3026 = vrot.lane.b32.xlu0 %v2993, 2
        %v3027 = vpop.permute.xlu0 %3026
        %3028 = vrot.lane.b32.xlu0 %v2991, 2
        %v3029 = vpop.permute.xlu0 %3028
        %3030 = vrot.lane.b32.xlu0 %v2995, 2
        %v3031 = vpop.permute.xlu0 %3030
        %3032 = vrot.lane.b32.xlu0 %v2998, 2
        %v3033 = vpop.permute.xlu0 %3032
        %3034 = vrot.lane.b32.xlu0 %v2997, 2
        %v3035 = vpop.permute.xlu0 %3034
        %3036 = vrot.lane.b32.xlu0 %v3001, 2
        %v3037 = vpop.permute.xlu0 %3036
        %3038 = vrot.lane.b32.xlu0 %v3006, 2
        %v3039 = vpop.permute.xlu0 %3038
        %3040 = vrot.lane.b32.xlu0 %v3007, 2
        %v3041 = vpop.permute.xlu0 %3040
        %3042 = vrot.lane.b32.xlu0 %v3009, 2
        %v3043 = vpop.permute.xlu0 %3042
        %3044 = vrot.lane.b32.xlu0 %v3014, 2
        %v3045 = vpop.permute.xlu0 %3044
        %3046 = vrot.lane.b32.xlu0 %v3015, 2
        %v3047 = vpop.permute.xlu0 %3046
        %v3048 = vsel %vm619, %v3019, %v3021
        %v3049 = vsel %vm619, %v3021, %v3023
        %v3050 = vsel %vm619, %v3025, %v3027
        %v3051 = vsel %vm619, %v3027, %v3029
        %v3052 = vsel %vm619, %v3031, %v3033
        %v3053 = vsel %vm619, %v3033, %v3035
        %v3054 = vsel %vm619, %v3037, %v3039
        %v3055 = vsel %vm619, %v3039, %v3041
        %v3056 = vsel %vm619, %v3043, %v3045
        %v3057 = vsel %vm619, %v3045, %v3047
        %v3069 = vsel %vm331, %v3016, 0
        %v3072 = vsel %vm331, %v3017, 0
        %3074 = vmatprep.subr.mxu0 %v3049
        %3075 = vmatpush1.msra.mxu0 %v3048
        %3076 = vmatprep.subr.mxu0 %v3051
        %3077 = vmatpush1.msra.mxu0 %v3050
        %3078 = vmatprep.subr.mxu0 %v3053
        %3079 = vmatpush1.msra.mxu0 %v3052
        %3080 = vmatprep.subr.mxu0 %v3055
        %3081 = vmatpush1.msra.mxu0 %v3054
        %3082 = vmatprep.subr.mxu0 %v3057
        %3083 = vmatpush1.msra.mxu0 %v3056
        %3084 = vmatprep.subr.mxu0 0.0
        %3085 = vmatpush1.msra.mxu0 0.0
        %3086 = vmatprep.subr.mxu0 0.0
        %3087 = vmatpush1.msra.mxu0 0.0
        %3088 = vmatprep.subr.mxu0 0.0
        %3089 = vmatpush1.msra.mxu0 0.0
        %3090 = vmatprep.subr.mxu0 0.0
        %3091 = vmatpush1.msra.mxu0 0.0
        %3092 = vmatprep.subr.mxu0 0.0
        %3093 = vmatpush1.msra.mxu0 0.0
        %3094 = vmatprep.subr.mxu0 0.0
        %3095 = vmatpush1.msra.mxu0 0.0
        %3096 = vmatprep.subr.mxu0 0.0
        %3097 = vmatpush1.msra.mxu0 0.0
        %3098 = vmatprep.subr.mxu0 0.0
        %3099 = vmatpush1.msra.mxu0 0.0
        %3100 = vmatprep.subr.mxu0 0.0
        %3101 = vmatpush1.msra.mxu0 0.0
        %3102 = vmatprep.subr.mxu0 0.0
        %3103 = vmatpush1.msra.mxu0 0.0
        %3104 = vmatprep.subr.mxu0 0.0
        %3105 = vmatpush1.msra.mxu0 0.0
        %3106 = vmatprep.subr.mxu0 0.0
        %3107 = vmatpush1.msra.mxu0 0.0
        %3108 = vmatprep.subr.mxu0 0.0
        %3109 = vmatpush1.msra.mxu0 0.0
        %3110 = vmatprep.subr.mxu0 0.0
        %3111 = vmatpush1.msra.mxu0 0.0
        %3112 = vmatprep.subr.mxu0 0.0
        %3113 = vmatpush1.msra.mxu0 0.0
        %3114 = vmatprep.subr.mxu0 0.0
        %3115 = vmatpush1.msra.mxu0 0.0
        %3116 = vmatprep.subr.mxu0 0.0
        %3117 = vmatpush1.msra.mxu0 0.0
        %3118 = vmatprep.subr.mxu0 0.0
        %3119 = vmatpush1.msra.mxu0 0.0
        %3120 = vmatprep.subr.mxu0 0.0
        %3121 = vmatpush1.msra.mxu0 0.0
        %3122 = vmatprep.subr.mxu0 0.0
        %3123 = vmatpush1.msra.mxu0 0.0
        %3124 = vmatprep.subr.mxu0 0.0
        %3125 = vmatpush1.msra.mxu0 0.0
        %3126 = vmatprep.subr.mxu0 0.0
        %3127 = vmatpush1.msra.mxu0 0.0
        %3128 = vmatprep.subr.mxu0 0.0
        %3129 = vmatpush1.msra.mxu0 0.0
        %3130 = vmatprep.subr.mxu0 0.0
        %3131 = vmatpush1.msra.mxu0 0.0
        %3132 = vmatprep.subr.mxu0 0.0
        %3133 = vmatpush1.msra.mxu0 0.0
        %3134 = vmatprep.subr.mxu0 0.0
        %3135 = vmatpush1.msra.mxu0 0.0
        %3136 = vmatprep.subr.mxu0 0.0
        %3137 = vmatpush1.msra.mxu0 0.0
        %3138 = vmatprep.mubr.f32.mxu0 0.0
        %3139 = vmatmul.mubr.f32.gmra.mrb[0].mxu0 %v3069
        %v3140 = vpop.f32.mrb[0].mxu0
        %v3141 = vadd.f32 0.0, %v3140
        %v3142 = vpop.f32.mrb[0].mxu0
        %v3143 = vadd.f32 0.0, %v3142
        %3144 = vmatprep.mubr.f32.mxu0 0.0
        %3145 = vmatmul.mubr.f32.gmra.mrb[0].mxu0 %v3072
        %v3146 = vpop.f32.mrb[0].mxu0
        %v3147 = vadd.f32 0.0, %v3146
        %v3148 = vpop.f32.mrb[0].mxu0
        %v3149 = vadd.f32 0.0, %v3148
        %3150 = vdwg.mxu0
        %v3151 = vadd.f32 %v2969, %v3141
        %v3152 = vadd.f32 %v2971, %v3143
        %v3153 = vadd.f32 %v2975, %v3147
        %v3154 = vadd.f32 %v2977, %v3149
        %3155 = vrot.lane.b32.xlu0 %v2982, 127
        %v3156 = vpop.permute.xlu0 %3155
        %v3157 = vsel %vm245, %v2991, %v3156
        %3158 = vrot.lane.b32.xlu0 %v2982, 126
        %v3159 = vpop.permute.xlu0 %3158
        %v3160 = vsel %vm254, %v2997, %v3159
        %v3161 = vld [vmem:[%s733] sm:$0xff]
        %v3162 = vld [vmem:[%s733 + $0x8] sm:$0xff]
        %3163 = vrot.lane.b32.xlu0 %v2980, 94
        %v3164 = vpop.permute.xlu0 %3163
        %3165 = vrot.lane.b32.xlu0 %v2981, 94
        %v3166 = vpop.permute.xlu0 %3165
        %3167 = vrot.lane.b32.xlu0 %v2982, 94
        %v3168 = vpop.permute.xlu0 %3167
        %3169 = vrot.lane.b32.xlu0 %v2993, 94
        %v3170 = vpop.permute.xlu0 %3169
        %3171 = vrot.lane.b32.xlu0 %v3157, 94
        %v3172 = vpop.permute.xlu0 %3171
        %3173 = vrot.lane.b32.xlu0 %v3156, 94
        %v3174 = vpop.permute.xlu0 %3173
        %3175 = vrot.lane.b32.xlu0 %v2998, 94
        %v3176 = vpop.permute.xlu0 %3175
        %3177 = vrot.lane.b32.xlu0 %v3160, 94
        %v3178 = vpop.permute.xlu0 %3177
        %3179 = vrot.lane.b32.xlu0 %v3159, 94
        %v3180 = vpop.permute.xlu0 %3179
        %3181 = vrot.lane.b32.xlu0 %v3006, 94
        %v3182 = vpop.permute.xlu0 %3181
        %3183 = vrot.lane.b32.xlu0 %v3007, 94
        %v3184 = vpop.permute.xlu0 %3183
        %3185 = vrot.lane.b32.xlu0 %v3005, 94
        %v3186 = vpop.permute.xlu0 %3185
        %3187 = vrot.lane.b32.xlu0 %v3014, 94
        %v3188 = vpop.permute.xlu0 %3187
        %3189 = vrot.lane.b32.xlu0 %v3015, 94
        %v3190 = vpop.permute.xlu0 %3189
        %3191 = vrot.lane.b32.xlu0 %v3013, 94
        %v3192 = vpop.permute.xlu0 %3191
        %v3193 = vsel %vm766, %v3164, %v3166
        %v3194 = vsel %vm766, %v3166, %v3168
        %v3195 = vsel %vm766, %v3170, %v3172
        %v3196 = vsel %vm766, %v3172, %v3174
        %v3197 = vsel %vm766, %v3176, %v3178
        %v3198 = vsel %vm766, %v3178, %v3180
        %v3199 = vsel %vm766, %v3182, %v3184
        %v3200 = vsel %vm766, %v3184, %v3186
        %v3201 = vsel %vm766, %v3188, %v3190
        %v3202 = vsel %vm766, %v3190, %v3192
        %v3214 = vsel %vm331, %v3161, 0
        %v3217 = vsel %vm331, %v3162, 0
        %3219 = vmatprep.subr.mxu0 %v3194
        %3220 = vmatpush1.msra.mxu0 %v3193
        %3221 = vmatprep.subr.mxu0 %v3196
        %3222 = vmatpush1.msra.mxu0 %v3195
        %3223 = vmatprep.subr.mxu0 %v3198
        %3224 = vmatpush1.msra.mxu0 %v3197
        %3225 = vmatprep.subr.mxu0 %v3200
        %3226 = vmatpush1.msra.mxu0 %v3199
        %3227 = vmatprep.subr.mxu0 %v3202
        %3228 = vmatpush1.msra.mxu0 %v3201
        %3229 = vmatprep.subr.mxu0 0.0
        %3230 = vmatpush1.msra.mxu0 0.0
        %3231 = vmatprep.subr.mxu0 0.0
        %3232 = vmatpush1.msra.mxu0 0.0
        %3233 = vmatprep.subr.mxu0 0.0
        %3234 = vmatpush1.msra.mxu0 0.0
        %3235 = vmatprep.subr.mxu0 0.0
        %3236 = vmatpush1.msra.mxu0 0.0
        %3237 = vmatprep.subr.mxu0 0.0
        %3238 = vmatpush1.msra.mxu0 0.0
        %3239 = vmatprep.subr.mxu0 0.0
        %3240 = vmatpush1.msra.mxu0 0.0
        %3241 = vmatprep.subr.mxu0 0.0
        %3242 = vmatpush1.msra.mxu0 0.0
        %3243 = vmatprep.subr.mxu0 0.0
        %3244 = vmatpush1.msra.mxu0 0.0
        %3245 = vmatprep.subr.mxu0 0.0
        %3246 = vmatpush1.msra.mxu0 0.0
        %3247 = vmatprep.subr.mxu0 0.0
        %3248 = vmatpush1.msra.mxu0 0.0
        %3249 = vmatprep.subr.mxu0 0.0
        %3250 = vmatpush1.msra.mxu0 0.0
        %3251 = vmatprep.subr.mxu0 0.0
        %3252 = vmatpush1.msra.mxu0 0.0
        %3253 = vmatprep.subr.mxu0 0.0
        %3254 = vmatpush1.msra.mxu0 0.0
        %3255 = vmatprep.subr.mxu0 0.0
        %3256 = vmatpush1.msra.mxu0 0.0
        %3257 = vmatprep.subr.mxu0 0.0
        %3258 = vmatpush1.msra.mxu0 0.0
        %3259 = vmatprep.subr.mxu0 0.0
        %3260 = vmatpush1.msra.mxu0 0.0
        %3261 = vmatprep.subr.mxu0 0.0
        %3262 = vmatpush1.msra.mxu0 0.0
        %3263 = vmatprep.subr.mxu0 0.0
        %3264 = vmatpush1.msra.mxu0 0.0
        %3265 = vmatprep.subr.mxu0 0.0
        %3266 = vmatpush1.msra.mxu0 0.0
        %3267 = vmatprep.subr.mxu0 0.0
        %3268 = vmatpush1.msra.mxu0 0.0
        %3269 = vmatprep.subr.mxu0 0.0
        %3270 = vmatpush1.msra.mxu0 0.0
        %3271 = vmatprep.subr.mxu0 0.0
        %3272 = vmatpush1.msra.mxu0 0.0
        %3273 = vmatprep.subr.mxu0 0.0
        %3274 = vmatpush1.msra.mxu0 0.0
        %3275 = vmatprep.subr.mxu0 0.0
        %3276 = vmatpush1.msra.mxu0 0.0
        %3277 = vmatprep.subr.mxu0 0.0
        %3278 = vmatpush1.msra.mxu0 0.0
        %3279 = vmatprep.subr.mxu0 0.0
        %3280 = vmatpush1.msra.mxu0 0.0
        %3281 = vmatprep.subr.mxu0 0.0
        %3282 = vmatpush1.msra.mxu0 0.0
        %3283 = vmatprep.mubr.f32.mxu0 0.0
        %3284 = vmatmul.mubr.f32.gmra.mrb[0].mxu0 %v3214
        %v3285 = vpop.f32.mrb[0].mxu0
        %v3286 = vadd.f32 0.0, %v3285
        %v3287 = vpop.f32.mrb[0].mxu0
        %v3288 = vadd.f32 0.0, %v3287
        %3289 = vmatprep.mubr.f32.mxu0 0.0
        %3290 = vmatmul.mubr.f32.gmra.mrb[0].mxu0 %v3217
        %v3291 = vpop.f32.mrb[0].mxu0
        %v3292 = vadd.f32 0.0, %v3291
        %v3293 = vpop.f32.mrb[0].mxu0
        %v3294 = vadd.f32 0.0, %v3293
        %3295 = vdwg.mxu0
        %v3296 = vadd.f32 %v3151, %v3286
        %v3297 = vadd.f32 %v3152, %v3288
        %v3298 = vadd.f32 %v3153, %v3292
        %v3299 = vadd.f32 %v3154, %v3294
        %v3300 = vld [vmem:[%s874] sm:$0xff]
        %v3301 = vld [vmem:[%s874 + $0x8] sm:$0xff]
        %3302 = vrot.lane.b32.xlu0 %v2980, 58
        %v3303 = vpop.permute.xlu0 %3302
        %3304 = vrot.lane.b32.xlu0 %v2981, 58
        %v3305 = vpop.permute.xlu0 %3304
        %3306 = vrot.lane.b32.xlu0 %v2982, 58
        %v3307 = vpop.permute.xlu0 %3306
        %3308 = vrot.lane.b32.xlu0 %v2993, 58
        %v3309 = vpop.permute.xlu0 %3308
        %3310 = vrot.lane.b32.xlu0 %v3157, 58
        %v3311 = vpop.permute.xlu0 %3310
        %3312 = vrot.lane.b32.xlu0 %v3156, 58
        %v3313 = vpop.permute.xlu0 %3312
        %3314 = vrot.lane.b32.xlu0 %v2998, 58
        %v3315 = vpop.permute.xlu0 %3314
        %3316 = vrot.lane.b32.xlu0 %v3160, 58
        %v3317 = vpop.permute.xlu0 %3316
        %3318 = vrot.lane.b32.xlu0 %v3159, 58
        %v3319 = vpop.permute.xlu0 %3318
        %3320 = vrot.lane.b32.xlu0 %v3006, 58
        %v3321 = vpop.permute.xlu0 %3320
        %3322 = vrot.lane.b32.xlu0 %v3007, 58
        %v3323 = vpop.permute.xlu0 %3322
        %3324 = vrot.lane.b32.xlu0 %v3005, 58
        %v3325 = vpop.permute.xlu0 %3324
        %3326 = vrot.lane.b32.xlu0 %v3014, 58
        %v3327 = vpop.permute.xlu0 %3326
        %3328 = vrot.lane.b32.xlu0 %v3015, 58
        %v3329 = vpop.permute.xlu0 %3328
        %3330 = vrot.lane.b32.xlu0 %v3013, 58
        %v3331 = vpop.permute.xlu0 %3330
        %v3332 = vsel %vm907, %v3303, %v3305
        %v3333 = vsel %vm907, %v3305, %v3307
        %v3334 = vsel %vm907, %v3309, %v3311
        %v3335 = vsel %vm907, %v3311, %v3313
        %v3336 = vsel %vm907, %v3315, %v3317
        %v3337 = vsel %vm907, %v3317, %v3319
        %v3338 = vsel %vm907, %v3321, %v3323
        %v3339 = vsel %vm907, %v3323, %v3325
        %v3340 = vsel %vm907, %v3327, %v3329
        %v3341 = vsel %vm907, %v3329, %v3331
        %v3353 = vsel %vm331, %v3300, 0
        %v3356 = vsel %vm331, %v3301, 0
        %3358 = vmatprep.subr.mxu0 %v3333
        %3359 = vmatpush1.msra.mxu0 %v3332
        %3360 = vmatprep.subr.mxu0 %v3335
        %3361 = vmatpush1.msra.mxu0 %v3334
        %3362 = vmatprep.subr.mxu0 %v3337
        %3363 = vmatpush1.msra.mxu0 %v3336
        %3364 = vmatprep.subr.mxu0 %v3339
        %3365 = vmatpush1.msra.mxu0 %v3338
        %3366 = vmatprep.subr.mxu0 %v3341
        %3367 = vmatpush1.msra.mxu0 %v3340
        %3368 = vmatprep.subr.mxu0 0.0
        %3369 = vmatpush1.msra.mxu0 0.0
        %3370 = vmatprep.subr.mxu0 0.0
        %3371 = vmatpush1.msra.mxu0 0.0
        %3372 = vmatprep.subr.mxu0 0.0
        %3373 = vmatpush1.msra.mxu0 0.0
        %3374 = vmatprep.subr.mxu0 0.0
        %3375 = vmatpush1.msra.mxu0 0.0
        %3376 = vmatprep.subr.mxu0 0.0
        %3377 = vmatpush1.msra.mxu0 0.0
        %3378 = vmatprep.subr.mxu0 0.0
        %3379 = vmatpush1.msra.mxu0 0.0
        %3380 = vmatprep.subr.mxu0 0.0
        %3381 = vmatpush1.msra.mxu0 0.0
        %3382 = vmatprep.subr.mxu0 0.0
        %3383 = vmatpush1.msra.mxu0 0.0
        %3384 = vmatprep.subr.mxu0 0.0
        %3385 = vmatpush1.msra.mxu0 0.0
        %3386 = vmatprep.subr.mxu0 0.0
        %3387 = vmatpush1.msra.mxu0 0.0
        %3388 = vmatprep.subr.mxu0 0.0
        %3389 = vmatpush1.msra.mxu0 0.0
        %3390 = vmatprep.subr.mxu0 0.0
        %3391 = vmatpush1.msra.mxu0 0.0
        %3392 = vmatprep.subr.mxu0 0.0
        %3393 = vmatpush1.msra.mxu0 0.0
        %3394 = vmatprep.subr.mxu0 0.0
        %3395 = vmatpush1.msra.mxu0 0.0
        %3396 = vmatprep.subr.mxu0 0.0
        %3397 = vmatpush1.msra.mxu0 0.0
        %3398 = vmatprep.subr.mxu0 0.0
        %3399 = vmatpush1.msra.mxu0 0.0
        %3400 = vmatprep.subr.mxu0 0.0
        %3401 = vmatpush1.msra.mxu0 0.0
        %3402 = vmatprep.subr.mxu0 0.0
        %3403 = vmatpush1.msra.mxu0 0.0
        %3404 = vmatprep.subr.mxu0 0.0
        %3405 = vmatpush1.msra.mxu0 0.0
        %3406 = vmatprep.subr.mxu0 0.0
        %3407 = vmatpush1.msra.mxu0 0.0
        %3408 = vmatprep.subr.mxu0 0.0
        %3409 = vmatpush1.msra.mxu0 0.0
        %3410 = vmatprep.subr.mxu0 0.0
        %3411 = vmatpush1.msra.mxu0 0.0
        %3412 = vmatprep.subr.mxu0 0.0
        %3413 = vmatpush1.msra.mxu0 0.0
        %3414 = vmatprep.subr.mxu0 0.0
        %3415 = vmatpush1.msra.mxu0 0.0
        %3416 = vmatprep.subr.mxu0 0.0
        %3417 = vmatpush1.msra.mxu0 0.0
        %3418 = vmatprep.subr.mxu0 0.0
        %3419 = vmatpush1.msra.mxu0 0.0
        %3420 = vmatprep.subr.mxu0 0.0
        %3421 = vmatpush1.msra.mxu0 0.0
        %3422 = vmatprep.mubr.f32.mxu0 0.0
        %3423 = vmatmul.mubr.f32.gmra.mrb[0].mxu0 %v3353
        %v3424 = vpop.f32.mrb[0].mxu0
        %v3425 = vadd.f32 0.0, %v3424
        %v3426 = vpop.f32.mrb[0].mxu0
        %v3427 = vadd.f32 0.0, %v3426
        %3428 = vmatprep.mubr.f32.mxu0 0.0
        %3429 = vmatmul.mubr.f32.gmra.mrb[0].mxu0 %v3356
        %v3430 = vpop.f32.mrb[0].mxu0
        %v3431 = vadd.f32 0.0, %v3430
        %v3432 = vpop.f32.mrb[0].mxu0
        %v3433 = vadd.f32 0.0, %v3432
        %3434 = vdwg.mxu0
        %v3435 = vadd.f32 %v3296, %v3425
        %v3436 = vadd.f32 %v3297, %v3427
        %v3437 = vadd.f32 %v3298, %v3431
        %v3438 = vadd.f32 %v3299, %v3433
        %v3439 = vld [vmem:[%s2] sm:$0xff]
        %v3440 = vld [vmem:[%s2 + $0x8] sm:$0xff]
        %3442 = vset.pattern.permute.xlu0 0
        %3443 = vperm.xlu0 %3442, %v3439
        %v3444 = vpop.permute.xlu0 %3443
        %3447 = vset.pattern.permute.xlu0 0
        %3448 = vperm.xlu0 %3447, %v3440
        %v3449 = vpop.permute.xlu0 %3448
        %v3451 = vadd.f32 %v3435, %v3444
        %v3452 = vadd.f32 %v3436, %v3444
        %v3453 = vadd.f32 %v3437, %v3449
        %v3454 = vadd.f32 %v3438, %v3449
        %v3455 = vmax.f32 %v3451, 0.0
        %v3456 = vmax.f32 %v3452, 0.0
        %v3457 = vmax.f32 %v3453, 0.0
        %v3458 = vmax.f32 %v3454, 0.0
        %v3459 = vld [vmem:[%s3 + $0x6] sm:$0x3]
        %v3461 = vlaneseq
        %v3462 = vshrl.u32 %v3461, 7
        %v3463 = vsub.s32 0, %v3462
        %v3464 = vrot.slane %v3459, %v3463
        %v3465 = vlaneseq
        %v3466 = vshrl.u32 %v3465, 7
        %v3467 = vsub.s32 1, %v3466
        %v3468 = vrot.slane %v3459, %v3467
        %v3471 = vmul.f32 %v3455, %v3464
        %v3472 = vmul.f32 %v3456, %v3468
        %v3473 = vmul.f32 %v3457, %v3464
        %v3474 = vmul.f32 %v3458, %v3468
        %3475 = vst [vmem:[%s228 + $0x38] sm:$0xff] %v3471
        %3476 = vst [vmem:[%s228 + $0x40] sm:$0xff] %v3472
        %3477 = vst [vmem:[%s228 + $0xa8] sm:$0xff] %v3473
        %3478 = vst [vmem:[%s228 + $0xb0] sm:$0xff] %v3474
        %v3479 = vld [vmem:[%s200 + $0x40] sm:$0xff]
        %v3480 = vld [vmem:[%s200 + $0x48] sm:$0xff]
        %v3481 = vld [vmem:[%s200 + $0x50] sm:$0xff]
        %3485 = vrot.lane.b32.xlu0 %v3479, 127
        %v3486 = vpop.permute.xlu0 %3485
        %3487 = vrot.lane.b32.xlu0 %v3480, 127
        %v3488 = vpop.permute.xlu0 %3487
        %3489 = vrot.lane.b32.xlu0 %v3481, 127
        %v3490 = vpop.permute.xlu0 %3489
        %v3491 = vsel %vm245, %v3486, %v3488
        %v3492 = vsel %vm245, %v3488, %v3490
        %3493 = vrot.lane.b32.xlu0 %v3479, 126
        %v3494 = vpop.permute.xlu0 %3493
        %3495 = vrot.lane.b32.xlu0 %v3480, 126
        %v3496 = vpop.permute.xlu0 %3495
        %3497 = vrot.lane.b32.xlu0 %v3481, 126
        %v3498 = vpop.permute.xlu0 %3497
        %v3499 = vsel %vm254, %v3494, %v3496
        %v3500 = vsel %vm254, %v3496, %v3498
        %3501 = vrot.lane.b32.xlu0 %v3479, 125
        %v3502 = vpop.permute.xlu0 %3501
        %3503 = vrot.lane.b32.xlu0 %v3480, 125
        %v3504 = vpop.permute.xlu0 %3503
        %3505 = vrot.lane.b32.xlu0 %v3481, 125
        %v3506 = vpop.permute.xlu0 %3505
        %v3507 = vsel %vm263, %v3502, %v3504
        %v3508 = vsel %vm263, %v3504, %v3506
        %3509 = vrot.lane.b32.xlu0 %v3479, 124
        %v3510 = vpop.permute.xlu0 %3509
        %3511 = vrot.lane.b32.xlu0 %v3480, 124
        %v3512 = vpop.permute.xlu0 %3511
        %3513 = vrot.lane.b32.xlu0 %v3481, 124
        %v3514 = vpop.permute.xlu0 %3513
        %v3515 = vsel %vm272, %v3510, %v3512
        %v3516 = vsel %vm272, %v3512, %v3514
        %v3517 = vld [vmem:[#allocation5] sm:$0xff]
        %v3518 = vld [vmem:[#allocation5 + $0x8] sm:$0xff]
        %v3519 = vld [vmem:[%s277] sm:$0xff]
        %v3520 = vld [vmem:[%s277 + $0x8] sm:$0xff]
        %3521 = vrot.lane.b32.xlu0 %v3479, 38
        %v3522 = vpop.permute.xlu0 %3521
        %3523 = vrot.lane.b32.xlu0 %v3480, 38
        %v3524 = vpop.permute.xlu0 %3523
        %3525 = vrot.lane.b32.xlu0 %v3481, 38
        %v3526 = vpop.permute.xlu0 %3525
        %3527 = vrot.lane.b32.xlu0 %v3491, 38
        %v3528 = vpop.permute.xlu0 %3527
        %3529 = vrot.lane.b32.xlu0 %v3492, 38
        %v3530 = vpop.permute.xlu0 %3529
        %3531 = vrot.lane.b32.xlu0 %v3490, 38
        %v3532 = vpop.permute.xlu0 %3531
        %3533 = vrot.lane.b32.xlu0 %v3499, 38
        %v3534 = vpop.permute.xlu0 %3533
        %3535 = vrot.lane.b32.xlu0 %v3500, 38
        %v3536 = vpop.permute.xlu0 %3535
        %3537 = vrot.lane.b32.xlu0 %v3498, 38
        %v3538 = vpop.permute.xlu0 %3537
        %3539 = vrot.lane.b32.xlu0 %v3507, 38
        %v3540 = vpop.permute.xlu0 %3539
        %3541 = vrot.lane.b32.xlu0 %v3508, 38
        %v3542 = vpop.permute.xlu0 %3541
        %3543 = vrot.lane.b32.xlu0 %v3506, 38
        %v3544 = vpop.permute.xlu0 %3543
        %3545 = vrot.lane.b32.xlu0 %v3515, 38
        %v3546 = vpop.permute.xlu0 %3545
        %3547 = vrot.lane.b32.xlu0 %v3516, 38
        %v3548 = vpop.permute.xlu0 %3547
        %3549 = vrot.lane.b32.xlu0 %v3514, 38
        %v3550 = vpop.permute.xlu0 %3549
        %v3551 = vsel %vm310, %v3522, %v3524
        %v3552 = vsel %vm310, %v3524, %v3526
        %v3553 = vsel %vm310, %v3528, %v3530
        %v3554 = vsel %vm310, %v3530, %v3532
        %v3555 = vsel %vm310, %v3534, %v3536
        %v3556 = vsel %vm310, %v3536, %v3538
        %v3557 = vsel %vm310, %v3540, %v3542
        %v3558 = vsel %vm310, %v3542, %v3544
        %v3559 = vsel %vm310, %v3546, %v3548
        %v3560 = vsel %vm310, %v3548, %v3550
        %v3572 = vsel %vm331, %v3519, 0
        %v3575 = vsel %vm331, %v3520, 0
        %3577 = vmatprep.subr.mxu0 %v3552
        %3578 = vmatpush1.msra.mxu0 %v3551
        %3579 = vmatprep.subr.mxu0 %v3554
        %3580 = vmatpush1.msra.mxu0 %v3553
        %3581 = vmatprep.subr.mxu0 %v3556
        %3582 = vmatpush1.msra.mxu0 %v3555
        %3583 = vmatprep.subr.mxu0 %v3558
        %3584 = vmatpush1.msra.mxu0 %v3557
        %3585 = vmatprep.subr.mxu0 %v3560
        %3586 = vmatpush1.msra.mxu0 %v3559
        %3587 = vmatprep.subr.mxu0 0.0
        %3588 = vmatpush1.msra.mxu0 0.0
        %3589 = vmatprep.subr.mxu0 0.0
        %3590 = vmatpush1.msra.mxu0 0.0
        %3591 = vmatprep.subr.mxu0 0.0
        %3592 = vmatpush1.msra.mxu0 0.0
        %3593 = vmatprep.subr.mxu0 0.0
        %3594 = vmatpush1.msra.mxu0 0.0
        %3595 = vmatprep.subr.mxu0 0.0
        %3596 = vmatpush1.msra.mxu0 0.0
        %3597 = vmatprep.subr.mxu0 0.0
        %3598 = vmatpush1.msra.mxu0 0.0
        %3599 = vmatprep.subr.mxu0 0.0
        %3600 = vmatpush1.msra.mxu0 0.0
        %3601 = vmatprep.subr.mxu0 0.0
        %3602 = vmatpush1.msra.mxu0 0.0
        %3603 = vmatprep.subr.mxu0 0.0
        %3604 = vmatpush1.msra.mxu0 0.0
        %3605 = vmatprep.subr.mxu0 0.0
        %3606 = vmatpush1.msra.mxu0 0.0
        %3607 = vmatprep.subr.mxu0 0.0
        %3608 = vmatpush1.msra.mxu0 0.0
        %3609 = vmatprep.subr.mxu0 0.0
        %3610 = vmatpush1.msra.mxu0 0.0
        %3611 = vmatprep.subr.mxu0 0.0
        %3612 = vmatpush1.msra.mxu0 0.0
        %3613 = vmatprep.subr.mxu0 0.0
        %3614 = vmatpush1.msra.mxu0 0.0
        %3615 = vmatprep.subr.mxu0 0.0
        %3616 = vmatpush1.msra.mxu0 0.0
        %3617 = vmatprep.subr.mxu0 0.0
        %3618 = vmatpush1.msra.mxu0 0.0
        %3619 = vmatprep.subr.mxu0 0.0
        %3620 = vmatpush1.msra.mxu0 0.0
        %3621 = vmatprep.subr.mxu0 0.0
        %3622 = vmatpush1.msra.mxu0 0.0
        %3623 = vmatprep.subr.mxu0 0.0
        %3624 = vmatpush1.msra.mxu0 0.0
        %3625 = vmatprep.subr.mxu0 0.0
        %3626 = vmatpush1.msra.mxu0 0.0
        %3627 = vmatprep.subr.mxu0 0.0
        %3628 = vmatpush1.msra.mxu0 0.0
        %3629 = vmatprep.subr.mxu0 0.0
        %3630 = vmatpush1.msra.mxu0 0.0
        %3631 = vmatprep.subr.mxu0 0.0
        %3632 = vmatpush1.msra.mxu0 0.0
        %3633 = vmatprep.subr.mxu0 0.0
        %3634 = vmatpush1.msra.mxu0 0.0
        %3635 = vmatprep.subr.mxu0 0.0
        %3636 = vmatpush1.msra.mxu0 0.0
        %3637 = vmatprep.subr.mxu0 0.0
        %3638 = vmatpush1.msra.mxu0 0.0
        %3639 = vmatprep.subr.mxu0 0.0
        %3640 = vmatpush1.msra.mxu0 0.0
        %3641 = vmatprep.mubr.f32.mxu0 0.0
        %3642 = vmatmul.mubr.f32.gmra.mrb[0].mxu0 %v3572
        %v3643 = vpop.f32.mrb[0].mxu0
        %v3644 = vadd.f32 0.0, %v3643
        %v3645 = vpop.f32.mrb[0].mxu0
        %v3646 = vadd.f32 0.0, %v3645
        %3647 = vmatprep.mubr.f32.mxu0 0.0
        %3648 = vmatmul.mubr.f32.gmra.mrb[0].mxu0 %v3575
        %v3649 = vpop.f32.mrb[0].mxu0
        %v3650 = vadd.f32 0.0, %v3649
        %v3651 = vpop.f32.mrb[0].mxu0
        %v3652 = vadd.f32 0.0, %v3651
        %3653 = vdwg.mxu0
        %3654 = vrot.lane.b32.xlu0 %v3479, 74
        %v3655 = vpop.permute.xlu0 %3654
        %3656 = vrot.lane.b32.xlu0 %v3480, 74
        %v3657 = vpop.permute.xlu0 %3656
        %3658 = vrot.lane.b32.xlu0 %v3481, 74
        %v3659 = vpop.permute.xlu0 %3658
        %3660 = vrot.lane.b32.xlu0 %v3491, 74
        %v3661 = vpop.permute.xlu0 %3660
        %3662 = vrot.lane.b32.xlu0 %v3492, 74
        %v3663 = vpop.permute.xlu0 %3662
        %3664 = vrot.lane.b32.xlu0 %v3490, 74
        %v3665 = vpop.permute.xlu0 %3664
        %3666 = vrot.lane.b32.xlu0 %v3499, 74
        %v3667 = vpop.permute.xlu0 %3666
        %3668 = vrot.lane.b32.xlu0 %v3500, 74
        %v3669 = vpop.permute.xlu0 %3668
        %3670 = vrot.lane.b32.xlu0 %v3498, 74
        %v3671 = vpop.permute.xlu0 %3670
        %3672 = vrot.lane.b32.xlu0 %v3507, 74
        %v3673 = vpop.permute.xlu0 %3672
        %3674 = vrot.lane.b32.xlu0 %v3508, 74
        %v3675 = vpop.permute.xlu0 %3674
        %3676 = vrot.lane.b32.xlu0 %v3506, 74
        %v3677 = vpop.permute.xlu0 %3676
        %3678 = vrot.lane.b32.xlu0 %v3515, 74
        %v3679 = vpop.permute.xlu0 %3678
        %3680 = vrot.lane.b32.xlu0 %v3516, 74
        %v3681 = vpop.permute.xlu0 %3680
        %3682 = vrot.lane.b32.xlu0 %v3514, 74
        %v3683 = vpop.permute.xlu0 %3682
        %v3684 = vsel %vm445, %v3655, %v3657
        %v3685 = vsel %vm445, %v3657, %v3659
        %v3686 = vsel %vm445, %v3661, %v3663
        %v3687 = vsel %vm445, %v3663, %v3665
        %v3688 = vsel %vm445, %v3667, %v3669
        %v3689 = vsel %vm445, %v3669, %v3671
        %v3690 = vsel %vm445, %v3673, %v3675
        %v3691 = vsel %vm445, %v3675, %v3677
        %v3692 = vsel %vm445, %v3679, %v3681
        %v3693 = vsel %vm445, %v3681, %v3683
        %v3705 = vsel %vm331, %v3517, 0
        %v3708 = vsel %vm331, %v3518, 0
        %3710 = vmatprep.subr.mxu0 %v3685
        %3711 = vmatpush1.msra.mxu0 %v3684
        %3712 = vmatprep.subr.mxu0 %v3687
        %3713 = vmatpush1.msra.mxu0 %v3686
        %3714 = vmatprep.subr.mxu0 %v3689
        %3715 = vmatpush1.msra.mxu0 %v3688
        %3716 = vmatprep.subr.mxu0 %v3691
        %3717 = vmatpush1.msra.mxu0 %v3690
        %3718 = vmatprep.subr.mxu0 %v3693
        %3719 = vmatpush1.msra.mxu0 %v3692
        %3720 = vmatprep.subr.mxu0 0.0
        %3721 = vmatpush1.msra.mxu0 0.0
        %3722 = vmatprep.subr.mxu0 0.0
        %3723 = vmatpush1.msra.mxu0 0.0
        %3724 = vmatprep.subr.mxu0 0.0
        %3725 = vmatpush1.msra.mxu0 0.0
        %3726 = vmatprep.subr.mxu0 0.0
        %3727 = vmatpush1.msra.mxu0 0.0
        %3728 = vmatprep.subr.mxu0 0.0
        %3729 = vmatpush1.msra.mxu0 0.0
        %3730 = vmatprep.subr.mxu0 0.0
        %3731 = vmatpush1.msra.mxu0 0.0
        %3732 = vmatprep.subr.mxu0 0.0
        %3733 = vmatpush1.msra.mxu0 0.0
        %3734 = vmatprep.subr.mxu0 0.0
        %3735 = vmatpush1.msra.mxu0 0.0
        %3736 = vmatprep.subr.mxu0 0.0
        %3737 = vmatpush1.msra.mxu0 0.0
        %3738 = vmatprep.subr.mxu0 0.0
        %3739 = vmatpush1.msra.mxu0 0.0
        %3740 = vmatprep.subr.mxu0 0.0
        %3741 = vmatpush1.msra.mxu0 0.0
        %3742 = vmatprep.subr.mxu0 0.0
        %3743 = vmatpush1.msra.mxu0 0.0
        %3744 = vmatprep.subr.mxu0 0.0
        %3745 = vmatpush1.msra.mxu0 0.0
        %3746 = vmatprep.subr.mxu0 0.0
        %3747 = vmatpush1.msra.mxu0 0.0
        %3748 = vmatprep.subr.mxu0 0.0
        %3749 = vmatpush1.msra.mxu0 0.0
        %3750 = vmatprep.subr.mxu0 0.0
        %3751 = vmatpush1.msra.mxu0 0.0
        %3752 = vmatprep.subr.mxu0 0.0
        %3753 = vmatpush1.msra.mxu0 0.0
        %3754 = vmatprep.subr.mxu0 0.0
        %3755 = vmatpush1.msra.mxu0 0.0
        %3756 = vmatprep.subr.mxu0 0.0
        %3757 = vmatpush1.msra.mxu0 0.0
        %3758 = vmatprep.subr.mxu0 0.0
        %3759 = vmatpush1.msra.mxu0 0.0
        %3760 = vmatprep.subr.mxu0 0.0
        %3761 = vmatpush1.msra.mxu0 0.0
        %3762 = vmatprep.subr.mxu0 0.0
        %3763 = vmatpush1.msra.mxu0 0.0
        %3764 = vmatprep.subr.mxu0 0.0
        %3765 = vmatpush1.msra.mxu0 0.0
        %3766 = vmatprep.subr.mxu0 0.0
        %3767 = vmatpush1.msra.mxu0 0.0
        %3768 = vmatprep.subr.mxu0 0.0
        %3769 = vmatpush1.msra.mxu0 0.0
        %3770 = vmatprep.subr.mxu0 0.0
        %3771 = vmatpush1.msra.mxu0 0.0
        %3772 = vmatprep.subr.mxu0 0.0
        %3773 = vmatpush1.msra.mxu0 0.0
        %3774 = vmatprep.mubr.f32.mxu0 0.0
        %3775 = vmatmul.mubr.f32.gmra.mrb[0].mxu0 %v3705
        %v3776 = vpop.f32.mrb[0].mxu0
        %v3777 = vadd.f32 %v3644, %v3776
        %v3778 = vpop.f32.mrb[0].mxu0
        %v3779 = vadd.f32 %v3646, %v3778
        %3780 = vmatprep.mubr.f32.mxu0 0.0
        %3781 = vmatmul.mubr.f32.gmra.mrb[0].mxu0 %v3708
        %v3782 = vpop.f32.mrb[0].mxu0
        %v3783 = vadd.f32 %v3650, %v3782
        %v3784 = vpop.f32.mrb[0].mxu0
        %v3785 = vadd.f32 %v3652, %v3784
        %3786 = vdwg.mxu0
        %v3787 = vld [vmem:[%s200 + $0x40] sm:$0xff]
        %v3788 = vld [vmem:[%s200 + $0x48] sm:$0xff]
        %v3789 = vld [vmem:[%s200 + $0x50] sm:$0xff]
        %v3790 = vld [vmem:[%s200 + $0x58] sm:$0xff]
        %3794 = vrot.lane.b32.xlu0 %v3787, 127
        %v3795 = vpop.permute.xlu0 %3794
        %3796 = vrot.lane.b32.xlu0 %v3788, 127
        %v3797 = vpop.permute.xlu0 %3796
        %3798 = vrot.lane.b32.xlu0 %v3789, 127
        %v3799 = vpop.permute.xlu0 %3798
        %v3800 = vsel %vm245, %v3795, %v3797
        %v3801 = vsel %vm245, %v3797, %v3799
        %3802 = vrot.lane.b32.xlu0 %v3788, 126
        %v3803 = vpop.permute.xlu0 %3802
        %3804 = vrot.lane.b32.xlu0 %v3789, 126
        %v3805 = vpop.permute.xlu0 %3804
        %v3806 = vsel %vm254, %v3803, %v3805
        %3808 = vrot.lane.b32.xlu0 %v3788, 125
        %v3809 = vpop.permute.xlu0 %3808
        %3810 = vrot.lane.b32.xlu0 %v3789, 125
        %v3811 = vpop.permute.xlu0 %3810
        %3812 = vrot.lane.b32.xlu0 %v3790, 125
        %v3813 = vpop.permute.xlu0 %3812
        %v3814 = vsel %vm263, %v3809, %v3811
        %v3815 = vsel %vm263, %v3811, %v3813
        %3816 = vrot.lane.b32.xlu0 %v3788, 124
        %v3817 = vpop.permute.xlu0 %3816
        %3818 = vrot.lane.b32.xlu0 %v3789, 124
        %v3819 = vpop.permute.xlu0 %3818
        %3820 = vrot.lane.b32.xlu0 %v3790, 124
        %v3821 = vpop.permute.xlu0 %3820
        %v3822 = vsel %vm272, %v3817, %v3819
        %v3823 = vsel %vm272, %v3819, %v3821
        %v3824 = vld [vmem:[%s586] sm:$0xff]
        %v3825 = vld [vmem:[%s586 + $0x8] sm:$0xff]
        %3826 = vrot.lane.b32.xlu0 %v3787, 2
        %v3827 = vpop.permute.xlu0 %3826
        %3828 = vrot.lane.b32.xlu0 %v3788, 2
        %v3829 = vpop.permute.xlu0 %3828
        %3830 = vrot.lane.b32.xlu0 %v3789, 2
        %v3831 = vpop.permute.xlu0 %3830
        %3832 = vrot.lane.b32.xlu0 %v3800, 2
        %v3833 = vpop.permute.xlu0 %3832
        %3834 = vrot.lane.b32.xlu0 %v3801, 2
        %v3835 = vpop.permute.xlu0 %3834
        %3836 = vrot.lane.b32.xlu0 %v3799, 2
        %v3837 = vpop.permute.xlu0 %3836
        %3838 = vrot.lane.b32.xlu0 %v3803, 2
        %v3839 = vpop.permute.xlu0 %3838
        %3840 = vrot.lane.b32.xlu0 %v3806, 2
        %v3841 = vpop.permute.xlu0 %3840
        %3842 = vrot.lane.b32.xlu0 %v3805, 2
        %v3843 = vpop.permute.xlu0 %3842
        %3844 = vrot.lane.b32.xlu0 %v3809, 2
        %v3845 = vpop.permute.xlu0 %3844
        %3846 = vrot.lane.b32.xlu0 %v3814, 2
        %v3847 = vpop.permute.xlu0 %3846
        %3848 = vrot.lane.b32.xlu0 %v3815, 2
        %v3849 = vpop.permute.xlu0 %3848
        %3850 = vrot.lane.b32.xlu0 %v3817, 2
        %v3851 = vpop.permute.xlu0 %3850
        %3852 = vrot.lane.b32.xlu0 %v3822, 2
        %v3853 = vpop.permute.xlu0 %3852
        %3854 = vrot.lane.b32.xlu0 %v3823, 2
        %v3855 = vpop.permute.xlu0 %3854
        %v3856 = vsel %vm619, %v3827, %v3829
        %v3857 = vsel %vm619, %v3829, %v3831
        %v3858 = vsel %vm619, %v3833, %v3835
        %v3859 = vsel %vm619, %v3835, %v3837
        %v3860 = vsel %vm619, %v3839, %v3841
        %v3861 = vsel %vm619, %v3841, %v3843
        %v3862 = vsel %vm619, %v3845, %v3847
        %v3863 = vsel %vm619, %v3847, %v3849
        %v3864 = vsel %vm619, %v3851, %v3853
        %v3865 = vsel %vm619, %v3853, %v3855
        %v3877 = vsel %vm331, %v3824, 0
        %v3880 = vsel %vm331, %v3825, 0
        %3882 = vmatprep.subr.mxu0 %v3857
        %3883 = vmatpush1.msra.mxu0 %v3856
        %3884 = vmatprep.subr.mxu0 %v3859
        %3885 = vmatpush1.msra.mxu0 %v3858
        %3886 = vmatprep.subr.mxu0 %v3861
        %3887 = vmatpush1.msra.mxu0 %v3860
        %3888 = vmatprep.subr.mxu0 %v3863
        %3889 = vmatpush1.msra.mxu0 %v3862
        %3890 = vmatprep.subr.mxu0 %v3865
        %3891 = vmatpush1.msra.mxu0 %v3864
        %3892 = vmatprep.subr.mxu0 0.0
        %3893 = vmatpush1.msra.mxu0 0.0
        %3894 = vmatprep.subr.mxu0 0.0
        %3895 = vmatpush1.msra.mxu0 0.0
        %3896 = vmatprep.subr.mxu0 0.0
        %3897 = vmatpush1.msra.mxu0 0.0
        %3898 = vmatprep.subr.mxu0 0.0
        %3899 = vmatpush1.msra.mxu0 0.0
        %3900 = vmatprep.subr.mxu0 0.0
        %3901 = vmatpush1.msra.mxu0 0.0
        %3902 = vmatprep.subr.mxu0 0.0
        %3903 = vmatpush1.msra.mxu0 0.0
        %3904 = vmatprep.subr.mxu0 0.0
        %3905 = vmatpush1.msra.mxu0 0.0
        %3906 = vmatprep.subr.mxu0 0.0
        %3907 = vmatpush1.msra.mxu0 0.0
        %3908 = vmatprep.subr.mxu0 0.0
        %3909 = vmatpush1.msra.mxu0 0.0
        %3910 = vmatprep.subr.mxu0 0.0
        %3911 = vmatpush1.msra.mxu0 0.0
        %3912 = vmatprep.subr.mxu0 0.0
        %3913 = vmatpush1.msra.mxu0 0.0
        %3914 = vmatprep.subr.mxu0 0.0
        %3915 = vmatpush1.msra.mxu0 0.0
        %3916 = vmatprep.subr.mxu0 0.0
        %3917 = vmatpush1.msra.mxu0 0.0
        %3918 = vmatprep.subr.mxu0 0.0
        %3919 = vmatpush1.msra.mxu0 0.0
        %3920 = vmatprep.subr.mxu0 0.0
        %3921 = vmatpush1.msra.mxu0 0.0
        %3922 = vmatprep.subr.mxu0 0.0
        %3923 = vmatpush1.msra.mxu0 0.0
        %3924 = vmatprep.subr.mxu0 0.0
        %3925 = vmatpush1.msra.mxu0 0.0
        %3926 = vmatprep.subr.mxu0 0.0
        %3927 = vmatpush1.msra.mxu0 0.0
        %3928 = vmatprep.subr.mxu0 0.0
        %3929 = vmatpush1.msra.mxu0 0.0
        %3930 = vmatprep.subr.mxu0 0.0
        %3931 = vmatpush1.msra.mxu0 0.0
        %3932 = vmatprep.subr.mxu0 0.0
        %3933 = vmatpush1.msra.mxu0 0.0
        %3934 = vmatprep.subr.mxu0 0.0
        %3935 = vmatpush1.msra.mxu0 0.0
        %3936 = vmatprep.subr.mxu0 0.0
        %3937 = vmatpush1.msra.mxu0 0.0
        %3938 = vmatprep.subr.mxu0 0.0
        %3939 = vmatpush1.msra.mxu0 0.0
        %3940 = vmatprep.subr.mxu0 0.0
        %3941 = vmatpush1.msra.mxu0 0.0
        %3942 = vmatprep.subr.mxu0 0.0
        %3943 = vmatpush1.msra.mxu0 0.0
        %3944 = vmatprep.subr.mxu0 0.0
        %3945 = vmatpush1.msra.mxu0 0.0
        %3946 = vmatprep.mubr.f32.mxu0 0.0
        %3947 = vmatmul.mubr.f32.gmra.mrb[0].mxu0 %v3877
        %v3948 = vpop.f32.mrb[0].mxu0
        %v3949 = vadd.f32 0.0, %v3948
        %v3950 = vpop.f32.mrb[0].mxu0
        %v3951 = vadd.f32 0.0, %v3950
        %3952 = vmatprep.mubr.f32.mxu0 0.0
        %3953 = vmatmul.mubr.f32.gmra.mrb[0].mxu0 %v3880
        %v3954 = vpop.f32.mrb[0].mxu0
        %v3955 = vadd.f32 0.0, %v3954
        %v3956 = vpop.f32.mrb[0].mxu0
        %v3957 = vadd.f32 0.0, %v3956
        %3958 = vdwg.mxu0
        %v3959 = vadd.f32 %v3777, %v3949
        %v3960 = vadd.f32 %v3779, %v3951
        %v3961 = vadd.f32 %v3783, %v3955
        %v3962 = vadd.f32 %v3785, %v3957
        %3963 = vrot.lane.b32.xlu0 %v3790, 127
        %v3964 = vpop.permute.xlu0 %3963
        %v3965 = vsel %vm245, %v3799, %v3964
        %3966 = vrot.lane.b32.xlu0 %v3790, 126
        %v3967 = vpop.permute.xlu0 %3966
        %v3968 = vsel %vm254, %v3805, %v3967
        %v3969 = vld [vmem:[%s733] sm:$0xff]
        %v3970 = vld [vmem:[%s733 + $0x8] sm:$0xff]
        %3971 = vrot.lane.b32.xlu0 %v3788, 94
        %v3972 = vpop.permute.xlu0 %3971
        %3973 = vrot.lane.b32.xlu0 %v3789, 94
        %v3974 = vpop.permute.xlu0 %3973
        %3975 = vrot.lane.b32.xlu0 %v3790, 94
        %v3976 = vpop.permute.xlu0 %3975
        %3977 = vrot.lane.b32.xlu0 %v3801, 94
        %v3978 = vpop.permute.xlu0 %3977
        %3979 = vrot.lane.b32.xlu0 %v3965, 94
        %v3980 = vpop.permute.xlu0 %3979
        %3981 = vrot.lane.b32.xlu0 %v3964, 94
        %v3982 = vpop.permute.xlu0 %3981
        %3983 = vrot.lane.b32.xlu0 %v3806, 94
        %v3984 = vpop.permute.xlu0 %3983
        %3985 = vrot.lane.b32.xlu0 %v3968, 94
        %v3986 = vpop.permute.xlu0 %3985
        %3987 = vrot.lane.b32.xlu0 %v3967, 94
        %v3988 = vpop.permute.xlu0 %3987
        %3989 = vrot.lane.b32.xlu0 %v3814, 94
        %v3990 = vpop.permute.xlu0 %3989
        %3991 = vrot.lane.b32.xlu0 %v3815, 94
        %v3992 = vpop.permute.xlu0 %3991
        %3993 = vrot.lane.b32.xlu0 %v3813, 94
        %v3994 = vpop.permute.xlu0 %3993
        %3995 = vrot.lane.b32.xlu0 %v3822, 94
        %v3996 = vpop.permute.xlu0 %3995
        %3997 = vrot.lane.b32.xlu0 %v3823, 94
        %v3998 = vpop.permute.xlu0 %3997
        %3999 = vrot.lane.b32.xlu0 %v3821, 94
        %v4000 = vpop.permute.xlu0 %3999
        %v4001 = vsel %vm766, %v3972, %v3974
        %v4002 = vsel %vm766, %v3974, %v3976
        %v4003 = vsel %vm766, %v3978, %v3980
        %v4004 = vsel %vm766, %v3980, %v3982
        %v4005 = vsel %vm766, %v3984, %v3986
        %v4006 = vsel %vm766, %v3986, %v3988
        %v4007 = vsel %vm766, %v3990, %v3992
        %v4008 = vsel %vm766, %v3992, %v3994
        %v4009 = vsel %vm766, %v3996, %v3998
        %v4010 = vsel %vm766, %v3998, %v4000
        %v4022 = vsel %vm331, %v3969, 0
        %v4025 = vsel %vm331, %v3970, 0
        %4027 = vmatprep.subr.mxu0 %v4002
        %4028 = vmatpush1.msra.mxu0 %v4001
        %4029 = vmatprep.subr.mxu0 %v4004
        %4030 = vmatpush1.msra.mxu0 %v4003
        %4031 = vmatprep.subr.mxu0 %v4006
        %4032 = vmatpush1.msra.mxu0 %v4005
        %4033 = vmatprep.subr.mxu0 %v4008
        %4034 = vmatpush1.msra.mxu0 %v4007
        %4035 = vmatprep.subr.mxu0 %v4010
        %4036 = vmatpush1.msra.mxu0 %v4009
        %4037 = vmatprep.subr.mxu0 0.0
        %4038 = vmatpush1.msra.mxu0 0.0
        %4039 = vmatprep.subr.mxu0 0.0
        %4040 = vmatpush1.msra.mxu0 0.0
        %4041 = vmatprep.subr.mxu0 0.0
        %4042 = vmatpush1.msra.mxu0 0.0
        %4043 = vmatprep.subr.mxu0 0.0
        %4044 = vmatpush1.msra.mxu0 0.0
        %4045 = vmatprep.subr.mxu0 0.0
        %4046 = vmatpush1.msra.mxu0 0.0
        %4047 = vmatprep.subr.mxu0 0.0
        %4048 = vmatpush1.msra.mxu0 0.0
        %4049 = vmatprep.subr.mxu0 0.0
        %4050 = vmatpush1.msra.mxu0 0.0
        %4051 = vmatprep.subr.mxu0 0.0
        %4052 = vmatpush1.msra.mxu0 0.0
        %4053 = vmatprep.subr.mxu0 0.0
        %4054 = vmatpush1.msra.mxu0 0.0
        %4055 = vmatprep.subr.mxu0 0.0
        %4056 = vmatpush1.msra.mxu0 0.0
        %4057 = vmatprep.subr.mxu0 0.0
        %4058 = vmatpush1.msra.mxu0 0.0
        %4059 = vmatprep.subr.mxu0 0.0
        %4060 = vmatpush1.msra.mxu0 0.0
        %4061 = vmatprep.subr.mxu0 0.0
        %4062 = vmatpush1.msra.mxu0 0.0
        %4063 = vmatprep.subr.mxu0 0.0
        %4064 = vmatpush1.msra.mxu0 0.0
        %4065 = vmatprep.subr.mxu0 0.0
        %4066 = vmatpush1.msra.mxu0 0.0
        %4067 = vmatprep.subr.mxu0 0.0
        %4068 = vmatpush1.msra.mxu0 0.0
        %4069 = vmatprep.subr.mxu0 0.0
        %4070 = vmatpush1.msra.mxu0 0.0
        %4071 = vmatprep.subr.mxu0 0.0
        %4072 = vmatpush1.msra.mxu0 0.0
        %4073 = vmatprep.subr.mxu0 0.0
        %4074 = vmatpush1.msra.mxu0 0.0
        %4075 = vmatprep.subr.mxu0 0.0
        %4076 = vmatpush1.msra.mxu0 0.0
        %4077 = vmatprep.subr.mxu0 0.0
        %4078 = vmatpush1.msra.mxu0 0.0
        %4079 = vmatprep.subr.mxu0 0.0
        %4080 = vmatpush1.msra.mxu0 0.0
        %4081 = vmatprep.subr.mxu0 0.0
        %4082 = vmatpush1.msra.mxu0 0.0
        %4083 = vmatprep.subr.mxu0 0.0
        %4084 = vmatpush1.msra.mxu0 0.0
        %4085 = vmatprep.subr.mxu0 0.0
        %4086 = vmatpush1.msra.mxu0 0.0
        %4087 = vmatprep.subr.mxu0 0.0
        %4088 = vmatpush1.msra.mxu0 0.0
        %4089 = vmatprep.subr.mxu0 0.0
        %4090 = vmatpush1.msra.mxu0 0.0
        %4091 = vmatprep.mubr.f32.mxu0 0.0
        %4092 = vmatmul.mubr.f32.gmra.mrb[0].mxu0 %v4022
        %v4093 = vpop.f32.mrb[0].mxu0
        %v4094 = vadd.f32 0.0, %v4093
        %v4095 = vpop.f32.mrb[0].mxu0
        %v4096 = vadd.f32 0.0, %v4095
        %4097 = vmatprep.mubr.f32.mxu0 0.0
        %4098 = vmatmul.mubr.f32.gmra.mrb[0].mxu0 %v4025
        %v4099 = vpop.f32.mrb[0].mxu0
        %v4100 = vadd.f32 0.0, %v4099
        %v4101 = vpop.f32.mrb[0].mxu0
        %v4102 = vadd.f32 0.0, %v4101
        %4103 = vdwg.mxu0
        %v4104 = vadd.f32 %v3959, %v4094
        %v4105 = vadd.f32 %v3960, %v4096
        %v4106 = vadd.f32 %v3961, %v4100
        %v4107 = vadd.f32 %v3962, %v4102
        %v4108 = vld [vmem:[%s874] sm:$0xff]
        %v4109 = vld [vmem:[%s874 + $0x8] sm:$0xff]
        %4110 = vrot.lane.b32.xlu0 %v3788, 58
        %v4111 = vpop.permute.xlu0 %4110
        %4112 = vrot.lane.b32.xlu0 %v3789, 58
        %v4113 = vpop.permute.xlu0 %4112
        %4114 = vrot.lane.b32.xlu0 %v3790, 58
        %v4115 = vpop.permute.xlu0 %4114
        %4116 = vrot.lane.b32.xlu0 %v3801, 58
        %v4117 = vpop.permute.xlu0 %4116
        %4118 = vrot.lane.b32.xlu0 %v3965, 58
        %v4119 = vpop.permute.xlu0 %4118
        %4120 = vrot.lane.b32.xlu0 %v3964, 58
        %v4121 = vpop.permute.xlu0 %4120
        %4122 = vrot.lane.b32.xlu0 %v3806, 58
        %v4123 = vpop.permute.xlu0 %4122
        %4124 = vrot.lane.b32.xlu0 %v3968, 58
        %v4125 = vpop.permute.xlu0 %4124
        %4126 = vrot.lane.b32.xlu0 %v3967, 58
        %v4127 = vpop.permute.xlu0 %4126
        %4128 = vrot.lane.b32.xlu0 %v3814, 58
        %v4129 = vpop.permute.xlu0 %4128
        %4130 = vrot.lane.b32.xlu0 %v3815, 58
        %v4131 = vpop.permute.xlu0 %4130
        %4132 = vrot.lane.b32.xlu0 %v3813, 58
        %v4133 = vpop.permute.xlu0 %4132
        %4134 = vrot.lane.b32.xlu0 %v3822, 58
        %v4135 = vpop.permute.xlu0 %4134
        %4136 = vrot.lane.b32.xlu0 %v3823, 58
        %v4137 = vpop.permute.xlu0 %4136
        %4138 = vrot.lane.b32.xlu0 %v3821, 58
        %v4139 = vpop.permute.xlu0 %4138
        %v4140 = vsel %vm907, %v4111, %v4113
        %v4141 = vsel %vm907, %v4113, %v4115
        %v4142 = vsel %vm907, %v4117, %v4119
        %v4143 = vsel %vm907, %v4119, %v4121
        %v4144 = vsel %vm907, %v4123, %v4125
        %v4145 = vsel %vm907, %v4125, %v4127
        %v4146 = vsel %vm907, %v4129, %v4131
        %v4147 = vsel %vm907, %v4131, %v4133
        %v4148 = vsel %vm907, %v4135, %v4137
        %v4149 = vsel %vm907, %v4137, %v4139
        %v4161 = vsel %vm331, %v4108, 0
        %v4164 = vsel %vm331, %v4109, 0
        %4166 = vmatprep.subr.mxu0 %v4141
        %4167 = vmatpush1.msra.mxu0 %v4140
        %4168 = vmatprep.subr.mxu0 %v4143
        %4169 = vmatpush1.msra.mxu0 %v4142
        %4170 = vmatprep.subr.mxu0 %v4145
        %4171 = vmatpush1.msra.mxu0 %v4144
        %4172 = vmatprep.subr.mxu0 %v4147
        %4173 = vmatpush1.msra.mxu0 %v4146
        %4174 = vmatprep.subr.mxu0 %v4149
        %4175 = vmatpush1.msra.mxu0 %v4148
        %4176 = vmatprep.subr.mxu0 0.0
        %4177 = vmatpush1.msra.mxu0 0.0
        %4178 = vmatprep.subr.mxu0 0.0
        %4179 = vmatpush1.msra.mxu0 0.0
        %4180 = vmatprep.subr.mxu0 0.0
        %4181 = vmatpush1.msra.mxu0 0.0
        %4182 = vmatprep.subr.mxu0 0.0
        %4183 = vmatpush1.msra.mxu0 0.0
        %4184 = vmatprep.subr.mxu0 0.0
        %4185 = vmatpush1.msra.mxu0 0.0
        %4186 = vmatprep.subr.mxu0 0.0
        %4187 = vmatpush1.msra.mxu0 0.0
        %4188 = vmatprep.subr.mxu0 0.0
        %4189 = vmatpush1.msra.mxu0 0.0
        %4190 = vmatprep.subr.mxu0 0.0
        %4191 = vmatpush1.msra.mxu0 0.0
        %4192 = vmatprep.subr.mxu0 0.0
        %4193 = vmatpush1.msra.mxu0 0.0
        %4194 = vmatprep.subr.mxu0 0.0
        %4195 = vmatpush1.msra.mxu0 0.0
        %4196 = vmatprep.subr.mxu0 0.0
        %4197 = vmatpush1.msra.mxu0 0.0
        %4198 = vmatprep.subr.mxu0 0.0
        %4199 = vmatpush1.msra.mxu0 0.0
        %4200 = vmatprep.subr.mxu0 0.0
        %4201 = vmatpush1.msra.mxu0 0.0
        %4202 = vmatprep.subr.mxu0 0.0
        %4203 = vmatpush1.msra.mxu0 0.0
        %4204 = vmatprep.subr.mxu0 0.0
        %4205 = vmatpush1.msra.mxu0 0.0
        %4206 = vmatprep.subr.mxu0 0.0
        %4207 = vmatpush1.msra.mxu0 0.0
        %4208 = vmatprep.subr.mxu0 0.0
        %4209 = vmatpush1.msra.mxu0 0.0
        %4210 = vmatprep.subr.mxu0 0.0
        %4211 = vmatpush1.msra.mxu0 0.0
        %4212 = vmatprep.subr.mxu0 0.0
        %4213 = vmatpush1.msra.mxu0 0.0
        %4214 = vmatprep.subr.mxu0 0.0
        %4215 = vmatpush1.msra.mxu0 0.0
        %4216 = vmatprep.subr.mxu0 0.0
        %4217 = vmatpush1.msra.mxu0 0.0
        %4218 = vmatprep.subr.mxu0 0.0
        %4219 = vmatpush1.msra.mxu0 0.0
        %4220 = vmatprep.subr.mxu0 0.0
        %4221 = vmatpush1.msra.mxu0 0.0
        %4222 = vmatprep.subr.mxu0 0.0
        %4223 = vmatpush1.msra.mxu0 0.0
        %4224 = vmatprep.subr.mxu0 0.0
        %4225 = vmatpush1.msra.mxu0 0.0
        %4226 = vmatprep.subr.mxu0 0.0
        %4227 = vmatpush1.msra.mxu0 0.0
        %4228 = vmatprep.subr.mxu0 0.0
        %4229 = vmatpush1.msra.mxu0 0.0
        %4230 = vmatprep.mubr.f32.mxu0 0.0
        %4231 = vmatmul.mubr.f32.gmra.mrb[0].mxu0 %v4161
        %v4232 = vpop.f32.mrb[0].mxu0
        %v4233 = vadd.f32 0.0, %v4232
        %v4234 = vpop.f32.mrb[0].mxu0
        %v4235 = vadd.f32 0.0, %v4234
        %4236 = vmatprep.mubr.f32.mxu0 0.0
        %4237 = vmatmul.mubr.f32.gmra.mrb[0].mxu0 %v4164
        %v4238 = vpop.f32.mrb[0].mxu0
        %v4239 = vadd.f32 0.0, %v4238
        %v4240 = vpop.f32.mrb[0].mxu0
        %v4241 = vadd.f32 0.0, %v4240
        %4242 = vdwg.mxu0
        %v4243 = vadd.f32 %v4104, %v4233
        %v4244 = vadd.f32 %v4105, %v4235
        %v4245 = vadd.f32 %v4106, %v4239
        %v4246 = vadd.f32 %v4107, %v4241
        %v4247 = vld [vmem:[%s2] sm:$0xff]
        %v4248 = vld [vmem:[%s2 + $0x8] sm:$0xff]
        %4250 = vset.pattern.permute.xlu0 0
        %4251 = vperm.xlu0 %4250, %v4247
        %v4252 = vpop.permute.xlu0 %4251
        %4255 = vset.pattern.permute.xlu0 0
        %4256 = vperm.xlu0 %4255, %v4248
        %v4257 = vpop.permute.xlu0 %4256
        %v4259 = vadd.f32 %v4243, %v4252
        %v4260 = vadd.f32 %v4244, %v4252
        %v4261 = vadd.f32 %v4245, %v4257
        %v4262 = vadd.f32 %v4246, %v4257
        %v4263 = vmax.f32 %v4259, 0.0
        %v4264 = vmax.f32 %v4260, 0.0
        %v4265 = vmax.f32 %v4261, 0.0
        %v4266 = vmax.f32 %v4262, 0.0
        %v4267 = vld [vmem:[%s3 + $0x8] sm:$0x3]
        %v4269 = vlaneseq
        %v4270 = vshrl.u32 %v4269, 7
        %v4271 = vsub.s32 0, %v4270
        %v4272 = vrot.slane %v4267, %v4271
        %v4273 = vlaneseq
        %v4274 = vshrl.u32 %v4273, 7
        %v4275 = vsub.s32 1, %v4274
        %v4276 = vrot.slane %v4267, %v4275
        %v4279 = vmul.f32 %v4263, %v4272
        %v4280 = vmul.f32 %v4264, %v4276
        %v4281 = vmul.f32 %v4265, %v4272
        %v4282 = vmul.f32 %v4266, %v4276
        %4283 = vst [vmem:[%s228 + $0x48] sm:$0xff] %v4279
        %4284 = vst [vmem:[%s228 + $0x50] sm:$0xff] %v4280
        %4285 = vst [vmem:[%s228 + $0xb8] sm:$0xff] %v4281
        %4286 = vst [vmem:[%s228 + $0xc0] sm:$0xff] %v4282
        %v4287 = vld [vmem:[%s200 + $0x50] sm:$0xff]
        %v4288 = vld [vmem:[%s200 + $0x58] sm:$0xff]
        %v4289 = vld [vmem:[%s200 + $0x60] sm:$0xff]
        %4293 = vrot.lane.b32.xlu0 %v4287, 127
        %v4294 = vpop.permute.xlu0 %4293
        %4295 = vrot.lane.b32.xlu0 %v4288, 127
        %v4296 = vpop.permute.xlu0 %4295
        %4297 = vrot.lane.b32.xlu0 %v4289, 127
        %v4298 = vpop.permute.xlu0 %4297
        %v4299 = vsel %vm245, %v4294, %v4296
        %v4300 = vsel %vm245, %v4296, %v4298
        %4301 = vrot.lane.b32.xlu0 %v4287, 126
        %v4302 = vpop.permute.xlu0 %4301
        %4303 = vrot.lane.b32.xlu0 %v4288, 126
        %v4304 = vpop.permute.xlu0 %4303
        %4305 = vrot.lane.b32.xlu0 %v4289, 126
        %v4306 = vpop.permute.xlu0 %4305
        %v4307 = vsel %vm254, %v4302, %v4304
        %v4308 = vsel %vm254, %v4304, %v4306
        %4309 = vrot.lane.b32.xlu0 %v4287, 125
        %v4310 = vpop.permute.xlu0 %4309
        %4311 = vrot.lane.b32.xlu0 %v4288, 125
        %v4312 = vpop.permute.xlu0 %4311
        %4313 = vrot.lane.b32.xlu0 %v4289, 125
        %v4314 = vpop.permute.xlu0 %4313
        %v4315 = vsel %vm263, %v4310, %v4312
        %v4316 = vsel %vm263, %v4312, %v4314
        %4317 = vrot.lane.b32.xlu0 %v4287, 124
        %v4318 = vpop.permute.xlu0 %4317
        %4319 = vrot.lane.b32.xlu0 %v4288, 124
        %v4320 = vpop.permute.xlu0 %4319
        %4321 = vrot.lane.b32.xlu0 %v4289, 124
        %v4322 = vpop.permute.xlu0 %4321
        %v4323 = vsel %vm272, %v4318, %v4320
        %v4324 = vsel %vm272, %v4320, %v4322
        %v4325 = vld [vmem:[#allocation5] sm:$0xff]
        %v4326 = vld [vmem:[#allocation5 + $0x8] sm:$0xff]
        %v4327 = vld [vmem:[%s277] sm:$0xff]
        %v4328 = vld [vmem:[%s277 + $0x8] sm:$0xff]
        %4329 = vrot.lane.b32.xlu0 %v4287, 38
        %v4330 = vpop.permute.xlu0 %4329
        %4331 = vrot.lane.b32.xlu0 %v4288, 38
        %v4332 = vpop.permute.xlu0 %4331
        %4333 = vrot.lane.b32.xlu0 %v4289, 38
        %v4334 = vpop.permute.xlu0 %4333
        %4335 = vrot.lane.b32.xlu0 %v4299, 38
        %v4336 = vpop.permute.xlu0 %4335
        %4337 = vrot.lane.b32.xlu0 %v4300, 38
        %v4338 = vpop.permute.xlu0 %4337
        %4339 = vrot.lane.b32.xlu0 %v4298, 38
        %v4340 = vpop.permute.xlu0 %4339
        %4341 = vrot.lane.b32.xlu0 %v4307, 38
        %v4342 = vpop.permute.xlu0 %4341
        %4343 = vrot.lane.b32.xlu0 %v4308, 38
        %v4344 = vpop.permute.xlu0 %4343
        %4345 = vrot.lane.b32.xlu0 %v4306, 38
        %v4346 = vpop.permute.xlu0 %4345
        %4347 = vrot.lane.b32.xlu0 %v4315, 38
        %v4348 = vpop.permute.xlu0 %4347
        %4349 = vrot.lane.b32.xlu0 %v4316, 38
        %v4350 = vpop.permute.xlu0 %4349
        %4351 = vrot.lane.b32.xlu0 %v4314, 38
        %v4352 = vpop.permute.xlu0 %4351
        %4353 = vrot.lane.b32.xlu0 %v4323, 38
        %v4354 = vpop.permute.xlu0 %4353
        %4355 = vrot.lane.b32.xlu0 %v4324, 38
        %v4356 = vpop.permute.xlu0 %4355
        %4357 = vrot.lane.b32.xlu0 %v4322, 38
        %v4358 = vpop.permute.xlu0 %4357
        %v4359 = vsel %vm310, %v4330, %v4332
        %v4360 = vsel %vm310, %v4332, %v4334
        %v4361 = vsel %vm310, %v4336, %v4338
        %v4362 = vsel %vm310, %v4338, %v4340
        %v4363 = vsel %vm310, %v4342, %v4344
        %v4364 = vsel %vm310, %v4344, %v4346
        %v4365 = vsel %vm310, %v4348, %v4350
        %v4366 = vsel %vm310, %v4350, %v4352
        %v4367 = vsel %vm310, %v4354, %v4356
        %v4368 = vsel %vm310, %v4356, %v4358
        %v4380 = vsel %vm331, %v4327, 0
        %v4383 = vsel %vm331, %v4328, 0
        %4385 = vmatprep.subr.mxu0 %v4360
        %4386 = vmatpush1.msra.mxu0 %v4359
        %4387 = vmatprep.subr.mxu0 %v4362
        %4388 = vmatpush1.msra.mxu0 %v4361
        %4389 = vmatprep.subr.mxu0 %v4364
        %4390 = vmatpush1.msra.mxu0 %v4363
        %4391 = vmatprep.subr.mxu0 %v4366
        %4392 = vmatpush1.msra.mxu0 %v4365
        %4393 = vmatprep.subr.mxu0 %v4368
        %4394 = vmatpush1.msra.mxu0 %v4367
        %4395 = vmatprep.subr.mxu0 0.0
        %4396 = vmatpush1.msra.mxu0 0.0
        %4397 = vmatprep.subr.mxu0 0.0
        %4398 = vmatpush1.msra.mxu0 0.0
        %4399 = vmatprep.subr.mxu0 0.0
        %4400 = vmatpush1.msra.mxu0 0.0
        %4401 = vmatprep.subr.mxu0 0.0
        %4402 = vmatpush1.msra.mxu0 0.0
        %4403 = vmatprep.subr.mxu0 0.0
        %4404 = vmatpush1.msra.mxu0 0.0
        %4405 = vmatprep.subr.mxu0 0.0
        %4406 = vmatpush1.msra.mxu0 0.0
        %4407 = vmatprep.subr.mxu0 0.0
        %4408 = vmatpush1.msra.mxu0 0.0
        %4409 = vmatprep.subr.mxu0 0.0
        %4410 = vmatpush1.msra.mxu0 0.0
        %4411 = vmatprep.subr.mxu0 0.0
        %4412 = vmatpush1.msra.mxu0 0.0
        %4413 = vmatprep.subr.mxu0 0.0
        %4414 = vmatpush1.msra.mxu0 0.0
        %4415 = vmatprep.subr.mxu0 0.0
        %4416 = vmatpush1.msra.mxu0 0.0
        %4417 = vmatprep.subr.mxu0 0.0
        %4418 = vmatpush1.msra.mxu0 0.0
        %4419 = vmatprep.subr.mxu0 0.0
        %4420 = vmatpush1.msra.mxu0 0.0
        %4421 = vmatprep.subr.mxu0 0.0
        %4422 = vmatpush1.msra.mxu0 0.0
        %4423 = vmatprep.subr.mxu0 0.0
        %4424 = vmatpush1.msra.mxu0 0.0
        %4425 = vmatprep.subr.mxu0 0.0
        %4426 = vmatpush1.msra.mxu0 0.0
        %4427 = vmatprep.subr.mxu0 0.0
        %4428 = vmatpush1.msra.mxu0 0.0
        %4429 = vmatprep.subr.mxu0 0.0
        %4430 = vmatpush1.msra.mxu0 0.0
        %4431 = vmatprep.subr.mxu0 0.0
        %4432 = vmatpush1.msra.mxu0 0.0
        %4433 = vmatprep.subr.mxu0 0.0
        %4434 = vmatpush1.msra.mxu0 0.0
        %4435 = vmatprep.subr.mxu0 0.0
        %4436 = vmatpush1.msra.mxu0 0.0
        %4437 = vmatprep.subr.mxu0 0.0
        %4438 = vmatpush1.msra.mxu0 0.0
        %4439 = vmatprep.subr.mxu0 0.0
        %4440 = vmatpush1.msra.mxu0 0.0
        %4441 = vmatprep.subr.mxu0 0.0
        %4442 = vmatpush1.msra.mxu0 0.0
        %4443 = vmatprep.subr.mxu0 0.0
        %4444 = vmatpush1.msra.mxu0 0.0
        %4445 = vmatprep.subr.mxu0 0.0
        %4446 = vmatpush1.msra.mxu0 0.0
        %4447 = vmatprep.subr.mxu0 0.0
        %4448 = vmatpush1.msra.mxu0 0.0
        %4449 = vmatprep.mubr.f32.mxu0 0.0
        %4450 = vmatmul.mubr.f32.gmra.mrb[0].mxu0 %v4380
        %v4451 = vpop.f32.mrb[0].mxu0
        %v4452 = vadd.f32 0.0, %v4451
        %v4453 = vpop.f32.mrb[0].mxu0
        %v4454 = vadd.f32 0.0, %v4453
        %4455 = vmatprep.mubr.f32.mxu0 0.0
        %4456 = vmatmul.mubr.f32.gmra.mrb[0].mxu0 %v4383
        %v4457 = vpop.f32.mrb[0].mxu0
        %v4458 = vadd.f32 0.0, %v4457
        %v4459 = vpop.f32.mrb[0].mxu0
        %v4460 = vadd.f32 0.0, %v4459
        %4461 = vdwg.mxu0
        %4462 = vrot.lane.b32.xlu0 %v4287, 74
        %v4463 = vpop.permute.xlu0 %4462
        %4464 = vrot.lane.b32.xlu0 %v4288, 74
        %v4465 = vpop.permute.xlu0 %4464
        %4466 = vrot.lane.b32.xlu0 %v4289, 74
        %v4467 = vpop.permute.xlu0 %4466
        %4468 = vrot.lane.b32.xlu0 %v4299, 74
        %v4469 = vpop.permute.xlu0 %4468
        %4470 = vrot.lane.b32.xlu0 %v4300, 74
        %v4471 = vpop.permute.xlu0 %4470
        %4472 = vrot.lane.b32.xlu0 %v4298, 74
        %v4473 = vpop.permute.xlu0 %4472
        %4474 = vrot.lane.b32.xlu0 %v4307, 74
        %v4475 = vpop.permute.xlu0 %4474
        %4476 = vrot.lane.b32.xlu0 %v4308, 74
        %v4477 = vpop.permute.xlu0 %4476
        %4478 = vrot.lane.b32.xlu0 %v4306, 74
        %v4479 = vpop.permute.xlu0 %4478
        %4480 = vrot.lane.b32.xlu0 %v4315, 74
        %v4481 = vpop.permute.xlu0 %4480
        %4482 = vrot.lane.b32.xlu0 %v4316, 74
        %v4483 = vpop.permute.xlu0 %4482
        %4484 = vrot.lane.b32.xlu0 %v4314, 74
        %v4485 = vpop.permute.xlu0 %4484
        %4486 = vrot.lane.b32.xlu0 %v4323, 74
        %v4487 = vpop.permute.xlu0 %4486
        %4488 = vrot.lane.b32.xlu0 %v4324, 74
        %v4489 = vpop.permute.xlu0 %4488
        %4490 = vrot.lane.b32.xlu0 %v4322, 74
        %v4491 = vpop.permute.xlu0 %4490
        %v4492 = vsel %vm445, %v4463, %v4465
        %v4493 = vsel %vm445, %v4465, %v4467
        %v4494 = vsel %vm445, %v4469, %v4471
        %v4495 = vsel %vm445, %v4471, %v4473
        %v4496 = vsel %vm445, %v4475, %v4477
        %v4497 = vsel %vm445, %v4477, %v4479
        %v4498 = vsel %vm445, %v4481, %v4483
        %v4499 = vsel %vm445, %v4483, %v4485
        %v4500 = vsel %vm445, %v4487, %v4489
        %v4501 = vsel %vm445, %v4489, %v4491
        %v4513 = vsel %vm331, %v4325, 0
        %v4516 = vsel %vm331, %v4326, 0
        %4518 = vmatprep.subr.mxu0 %v4493
        %4519 = vmatpush1.msra.mxu0 %v4492
        %4520 = vmatprep.subr.mxu0 %v4495
        %4521 = vmatpush1.msra.mxu0 %v4494
        %4522 = vmatprep.subr.mxu0 %v4497
        %4523 = vmatpush1.msra.mxu0 %v4496
        %4524 = vmatprep.subr.mxu0 %v4499
        %4525 = vmatpush1.msra.mxu0 %v4498
        %4526 = vmatprep.subr.mxu0 %v4501
        %4527 = vmatpush1.msra.mxu0 %v4500
        %4528 = vmatprep.subr.mxu0 0.0
        %4529 = vmatpush1.msra.mxu0 0.0
        %4530 = vmatprep.subr.mxu0 0.0
        %4531 = vmatpush1.msra.mxu0 0.0
        %4532 = vmatprep.subr.mxu0 0.0
        %4533 = vmatpush1.msra.mxu0 0.0
        %4534 = vmatprep.subr.mxu0 0.0
        %4535 = vmatpush1.msra.mxu0 0.0
        %4536 = vmatprep.subr.mxu0 0.0
        %4537 = vmatpush1.msra.mxu0 0.0
        %4538 = vmatprep.subr.mxu0 0.0
        %4539 = vmatpush1.msra.mxu0 0.0
        %4540 = vmatprep.subr.mxu0 0.0
        %4541 = vmatpush1.msra.mxu0 0.0
        %4542 = vmatprep.subr.mxu0 0.0
        %4543 = vmatpush1.msra.mxu0 0.0
        %4544 = vmatprep.subr.mxu0 0.0
        %4545 = vmatpush1.msra.mxu0 0.0
        %4546 = vmatprep.subr.mxu0 0.0
        %4547 = vmatpush1.msra.mxu0 0.0
        %4548 = vmatprep.subr.mxu0 0.0
        %4549 = vmatpush1.msra.mxu0 0.0
        %4550 = vmatprep.subr.mxu0 0.0
        %4551 = vmatpush1.msra.mxu0 0.0
        %4552 = vmatprep.subr.mxu0 0.0
        %4553 = vmatpush1.msra.mxu0 0.0
        %4554 = vmatprep.subr.mxu0 0.0
        %4555 = vmatpush1.msra.mxu0 0.0
        %4556 = vmatprep.subr.mxu0 0.0
        %4557 = vmatpush1.msra.mxu0 0.0
        %4558 = vmatprep.subr.mxu0 0.0
        %4559 = vmatpush1.msra.mxu0 0.0
        %4560 = vmatprep.subr.mxu0 0.0
        %4561 = vmatpush1.msra.mxu0 0.0
        %4562 = vmatprep.subr.mxu0 0.0
        %4563 = vmatpush1.msra.mxu0 0.0
        %4564 = vmatprep.subr.mxu0 0.0
        %4565 = vmatpush1.msra.mxu0 0.0
        %4566 = vmatprep.subr.mxu0 0.0
        %4567 = vmatpush1.msra.mxu0 0.0
        %4568 = vmatprep.subr.mxu0 0.0
        %4569 = vmatpush1.msra.mxu0 0.0
        %4570 = vmatprep.subr.mxu0 0.0
        %4571 = vmatpush1.msra.mxu0 0.0
        %4572 = vmatprep.subr.mxu0 0.0
        %4573 = vmatpush1.msra.mxu0 0.0
        %4574 = vmatprep.subr.mxu0 0.0
        %4575 = vmatpush1.msra.mxu0 0.0
        %4576 = vmatprep.subr.mxu0 0.0
        %4577 = vmatpush1.msra.mxu0 0.0
        %4578 = vmatprep.subr.mxu0 0.0
        %4579 = vmatpush1.msra.mxu0 0.0
        %4580 = vmatprep.subr.mxu0 0.0
        %4581 = vmatpush1.msra.mxu0 0.0
        %4582 = vmatprep.mubr.f32.mxu0 0.0
        %4583 = vmatmul.mubr.f32.gmra.mrb[0].mxu0 %v4513
        %v4584 = vpop.f32.mrb[0].mxu0
        %v4585 = vadd.f32 %v4452, %v4584
        %v4586 = vpop.f32.mrb[0].mxu0
        %v4587 = vadd.f32 %v4454, %v4586
        %4588 = vmatprep.mubr.f32.mxu0 0.0
        %4589 = vmatmul.mubr.f32.gmra.mrb[0].mxu0 %v4516
        %v4590 = vpop.f32.mrb[0].mxu0
        %v4591 = vadd.f32 %v4458, %v4590
        %v4592 = vpop.f32.mrb[0].mxu0
        %v4593 = vadd.f32 %v4460, %v4592
        %4594 = vdwg.mxu0
        %v4595 = vld [vmem:[%s200 + $0x50] sm:$0xff]
        %v4596 = vld [vmem:[%s200 + $0x58] sm:$0xff]
        %v4597 = vld [vmem:[%s200 + $0x60] sm:$0xff]
        %v4598 = vld [vmem:[%s200 + $0x68] sm:$0xff]
        %4602 = vrot.lane.b32.xlu0 %v4595, 127
        %v4603 = vpop.permute.xlu0 %4602
        %4604 = vrot.lane.b32.xlu0 %v4596, 127
        %v4605 = vpop.permute.xlu0 %4604
        %4606 = vrot.lane.b32.xlu0 %v4597, 127
        %v4607 = vpop.permute.xlu0 %4606
        %v4608 = vsel %vm245, %v4603, %v4605
        %v4609 = vsel %vm245, %v4605, %v4607
        %4610 = vrot.lane.b32.xlu0 %v4596, 126
        %v4611 = vpop.permute.xlu0 %4610
        %4612 = vrot.lane.b32.xlu0 %v4597, 126
        %v4613 = vpop.permute.xlu0 %4612
        %v4614 = vsel %vm254, %v4611, %v4613
        %4616 = vrot.lane.b32.xlu0 %v4596, 125
        %v4617 = vpop.permute.xlu0 %4616
        %4618 = vrot.lane.b32.xlu0 %v4597, 125
        %v4619 = vpop.permute.xlu0 %4618
        %4620 = vrot.lane.b32.xlu0 %v4598, 125
        %v4621 = vpop.permute.xlu0 %4620
        %v4622 = vsel %vm263, %v4617, %v4619
        %v4623 = vsel %vm263, %v4619, %v4621
        %4624 = vrot.lane.b32.xlu0 %v4596, 124
        %v4625 = vpop.permute.xlu0 %4624
        %4626 = vrot.lane.b32.xlu0 %v4597, 124
        %v4627 = vpop.permute.xlu0 %4626
        %4628 = vrot.lane.b32.xlu0 %v4598, 124
        %v4629 = vpop.permute.xlu0 %4628
        %v4630 = vsel %vm272, %v4625, %v4627
        %v4631 = vsel %vm272, %v4627, %v4629
        %v4632 = vld [vmem:[%s586] sm:$0xff]
        %v4633 = vld [vmem:[%s586 + $0x8] sm:$0xff]
        %4634 = vrot.lane.b32.xlu0 %v4595, 2
        %v4635 = vpop.permute.xlu0 %4634
        %4636 = vrot.lane.b32.xlu0 %v4596, 2
        %v4637 = vpop.permute.xlu0 %4636
        %4638 = vrot.lane.b32.xlu0 %v4597, 2
        %v4639 = vpop.permute.xlu0 %4638
        %4640 = vrot.lane.b32.xlu0 %v4608, 2
        %v4641 = vpop.permute.xlu0 %4640
        %4642 = vrot.lane.b32.xlu0 %v4609, 2
        %v4643 = vpop.permute.xlu0 %4642
        %4644 = vrot.lane.b32.xlu0 %v4607, 2
        %v4645 = vpop.permute.xlu0 %4644
        %4646 = vrot.lane.b32.xlu0 %v4611, 2
        %v4647 = vpop.permute.xlu0 %4646
        %4648 = vrot.lane.b32.xlu0 %v4614, 2
        %v4649 = vpop.permute.xlu0 %4648
        %4650 = vrot.lane.b32.xlu0 %v4613, 2
        %v4651 = vpop.permute.xlu0 %4650
        %4652 = vrot.lane.b32.xlu0 %v4617, 2
        %v4653 = vpop.permute.xlu0 %4652
        %4654 = vrot.lane.b32.xlu0 %v4622, 2
        %v4655 = vpop.permute.xlu0 %4654
        %4656 = vrot.lane.b32.xlu0 %v4623, 2
        %v4657 = vpop.permute.xlu0 %4656
        %4658 = vrot.lane.b32.xlu0 %v4625, 2
        %v4659 = vpop.permute.xlu0 %4658
        %4660 = vrot.lane.b32.xlu0 %v4630, 2
        %v4661 = vpop.permute.xlu0 %4660
        %4662 = vrot.lane.b32.xlu0 %v4631, 2
        %v4663 = vpop.permute.xlu0 %4662
        %v4664 = vsel %vm619, %v4635, %v4637
        %v4665 = vsel %vm619, %v4637, %v4639
        %v4666 = vsel %vm619, %v4641, %v4643
        %v4667 = vsel %vm619, %v4643, %v4645
        %v4668 = vsel %vm619, %v4647, %v4649
        %v4669 = vsel %vm619, %v4649, %v4651
        %v4670 = vsel %vm619, %v4653, %v4655
        %v4671 = vsel %vm619, %v4655, %v4657
        %v4672 = vsel %vm619, %v4659, %v4661
        %v4673 = vsel %vm619, %v4661, %v4663
        %v4685 = vsel %vm331, %v4632, 0
        %v4688 = vsel %vm331, %v4633, 0
        %4690 = vmatprep.subr.mxu0 %v4665
        %4691 = vmatpush1.msra.mxu0 %v4664
        %4692 = vmatprep.subr.mxu0 %v4667
        %4693 = vmatpush1.msra.mxu0 %v4666
        %4694 = vmatprep.subr.mxu0 %v4669
        %4695 = vmatpush1.msra.mxu0 %v4668
        %4696 = vmatprep.subr.mxu0 %v4671
        %4697 = vmatpush1.msra.mxu0 %v4670
        %4698 = vmatprep.subr.mxu0 %v4673
        %4699 = vmatpush1.msra.mxu0 %v4672
        %4700 = vmatprep.subr.mxu0 0.0
        %4701 = vmatpush1.msra.mxu0 0.0
        %4702 = vmatprep.subr.mxu0 0.0
        %4703 = vmatpush1.msra.mxu0 0.0
        %4704 = vmatprep.subr.mxu0 0.0
        %4705 = vmatpush1.msra.mxu0 0.0
        %4706 = vmatprep.subr.mxu0 0.0
        %4707 = vmatpush1.msra.mxu0 0.0
        %4708 = vmatprep.subr.mxu0 0.0
        %4709 = vmatpush1.msra.mxu0 0.0
        %4710 = vmatprep.subr.mxu0 0.0
        %4711 = vmatpush1.msra.mxu0 0.0
        %4712 = vmatprep.subr.mxu0 0.0
        %4713 = vmatpush1.msra.mxu0 0.0
        %4714 = vmatprep.subr.mxu0 0.0
        %4715 = vmatpush1.msra.mxu0 0.0
        %4716 = vmatprep.subr.mxu0 0.0
        %4717 = vmatpush1.msra.mxu0 0.0
        %4718 = vmatprep.subr.mxu0 0.0
        %4719 = vmatpush1.msra.mxu0 0.0
        %4720 = vmatprep.subr.mxu0 0.0
        %4721 = vmatpush1.msra.mxu0 0.0
        %4722 = vmatprep.subr.mxu0 0.0
        %4723 = vmatpush1.msra.mxu0 0.0
        %4724 = vmatprep.subr.mxu0 0.0
        %4725 = vmatpush1.msra.mxu0 0.0
        %4726 = vmatprep.subr.mxu0 0.0
        %4727 = vmatpush1.msra.mxu0 0.0
        %4728 = vmatprep.subr.mxu0 0.0
        %4729 = vmatpush1.msra.mxu0 0.0
        %4730 = vmatprep.subr.mxu0 0.0
        %4731 = vmatpush1.msra.mxu0 0.0
        %4732 = vmatprep.subr.mxu0 0.0
        %4733 = vmatpush1.msra.mxu0 0.0
        %4734 = vmatprep.subr.mxu0 0.0
        %4735 = vmatpush1.msra.mxu0 0.0
        %4736 = vmatprep.subr.mxu0 0.0
        %4737 = vmatpush1.msra.mxu0 0.0
        %4738 = vmatprep.subr.mxu0 0.0
        %4739 = vmatpush1.msra.mxu0 0.0
        %4740 = vmatprep.subr.mxu0 0.0
        %4741 = vmatpush1.msra.mxu0 0.0
        %4742 = vmatprep.subr.mxu0 0.0
        %4743 = vmatpush1.msra.mxu0 0.0
        %4744 = vmatprep.subr.mxu0 0.0
        %4745 = vmatpush1.msra.mxu0 0.0
        %4746 = vmatprep.subr.mxu0 0.0
        %4747 = vmatpush1.msra.mxu0 0.0
        %4748 = vmatprep.subr.mxu0 0.0
        %4749 = vmatpush1.msra.mxu0 0.0
        %4750 = vmatprep.subr.mxu0 0.0
        %4751 = vmatpush1.msra.mxu0 0.0
        %4752 = vmatprep.subr.mxu0 0.0
        %4753 = vmatpush1.msra.mxu0 0.0
        %4754 = vmatprep.mubr.f32.mxu0 0.0
        %4755 = vmatmul.mubr.f32.gmra.mrb[0].mxu0 %v4685
        %v4756 = vpop.f32.mrb[0].mxu0
        %v4757 = vadd.f32 0.0, %v4756
        %v4758 = vpop.f32.mrb[0].mxu0
        %v4759 = vadd.f32 0.0, %v4758
        %4760 = vmatprep.mubr.f32.mxu0 0.0
        %4761 = vmatmul.mubr.f32.gmra.mrb[0].mxu0 %v4688
        %v4762 = vpop.f32.mrb[0].mxu0
        %v4763 = vadd.f32 0.0, %v4762
        %v4764 = vpop.f32.mrb[0].mxu0
        %v4765 = vadd.f32 0.0, %v4764
        %4766 = vdwg.mxu0
        %v4767 = vadd.f32 %v4585, %v4757
        %v4768 = vadd.f32 %v4587, %v4759
        %v4769 = vadd.f32 %v4591, %v4763
        %v4770 = vadd.f32 %v4593, %v4765
        %4771 = vrot.lane.b32.xlu0 %v4598, 127
        %v4772 = vpop.permute.xlu0 %4771
        %v4773 = vsel %vm245, %v4607, %v4772
        %4774 = vrot.lane.b32.xlu0 %v4598, 126
        %v4775 = vpop.permute.xlu0 %4774
        %v4776 = vsel %vm254, %v4613, %v4775
        %v4777 = vld [vmem:[%s733] sm:$0xff]
        %v4778 = vld [vmem:[%s733 + $0x8] sm:$0xff]
        %4779 = vrot.lane.b32.xlu0 %v4596, 94
        %v4780 = vpop.permute.xlu0 %4779
        %4781 = vrot.lane.b32.xlu0 %v4597, 94
        %v4782 = vpop.permute.xlu0 %4781
        %4783 = vrot.lane.b32.xlu0 %v4598, 94
        %v4784 = vpop.permute.xlu0 %4783
        %4785 = vrot.lane.b32.xlu0 %v4609, 94
        %v4786 = vpop.permute.xlu0 %4785
        %4787 = vrot.lane.b32.xlu0 %v4773, 94
        %v4788 = vpop.permute.xlu0 %4787
        %4789 = vrot.lane.b32.xlu0 %v4772, 94
        %v4790 = vpop.permute.xlu0 %4789
        %4791 = vrot.lane.b32.xlu0 %v4614, 94
        %v4792 = vpop.permute.xlu0 %4791
        %4793 = vrot.lane.b32.xlu0 %v4776, 94
        %v4794 = vpop.permute.xlu0 %4793
        %4795 = vrot.lane.b32.xlu0 %v4775, 94
        %v4796 = vpop.permute.xlu0 %4795
        %4797 = vrot.lane.b32.xlu0 %v4622, 94
        %v4798 = vpop.permute.xlu0 %4797
        %4799 = vrot.lane.b32.xlu0 %v4623, 94
        %v4800 = vpop.permute.xlu0 %4799
        %4801 = vrot.lane.b32.xlu0 %v4621, 94
        %v4802 = vpop.permute.xlu0 %4801
        %4803 = vrot.lane.b32.xlu0 %v4630, 94
        %v4804 = vpop.permute.xlu0 %4803
        %4805 = vrot.lane.b32.xlu0 %v4631, 94
        %v4806 = vpop.permute.xlu0 %4805
        %4807 = vrot.lane.b32.xlu0 %v4629, 94
        %v4808 = vpop.permute.xlu0 %4807
        %v4809 = vsel %vm766, %v4780, %v4782
        %v4810 = vsel %vm766, %v4782, %v4784
        %v4811 = vsel %vm766, %v4786, %v4788
        %v4812 = vsel %vm766, %v4788, %v4790
        %v4813 = vsel %vm766, %v4792, %v4794
        %v4814 = vsel %vm766, %v4794, %v4796
        %v4815 = vsel %vm766, %v4798, %v4800
        %v4816 = vsel %vm766, %v4800, %v4802
        %v4817 = vsel %vm766, %v4804, %v4806
        %v4818 = vsel %vm766, %v4806, %v4808
        %v4830 = vsel %vm331, %v4777, 0
        %v4833 = vsel %vm331, %v4778, 0
        %4835 = vmatprep.subr.mxu0 %v4810
        %4836 = vmatpush1.msra.mxu0 %v4809
        %4837 = vmatprep.subr.mxu0 %v4812
        %4838 = vmatpush1.msra.mxu0 %v4811
        %4839 = vmatprep.subr.mxu0 %v4814
        %4840 = vmatpush1.msra.mxu0 %v4813
        %4841 = vmatprep.subr.mxu0 %v4816
        %4842 = vmatpush1.msra.mxu0 %v4815
        %4843 = vmatprep.subr.mxu0 %v4818
        %4844 = vmatpush1.msra.mxu0 %v4817
        %4845 = vmatprep.subr.mxu0 0.0
        %4846 = vmatpush1.msra.mxu0 0.0
        %4847 = vmatprep.subr.mxu0 0.0
        %4848 = vmatpush1.msra.mxu0 0.0
        %4849 = vmatprep.subr.mxu0 0.0
        %4850 = vmatpush1.msra.mxu0 0.0
        %4851 = vmatprep.subr.mxu0 0.0
        %4852 = vmatpush1.msra.mxu0 0.0
        %4853 = vmatprep.subr.mxu0 0.0
        %4854 = vmatpush1.msra.mxu0 0.0
        %4855 = vmatprep.subr.mxu0 0.0
        %4856 = vmatpush1.msra.mxu0 0.0
        %4857 = vmatprep.subr.mxu0 0.0
        %4858 = vmatpush1.msra.mxu0 0.0
        %4859 = vmatprep.subr.mxu0 0.0
        %4860 = vmatpush1.msra.mxu0 0.0
        %4861 = vmatprep.subr.mxu0 0.0
        %4862 = vmatpush1.msra.mxu0 0.0
        %4863 = vmatprep.subr.mxu0 0.0
        %4864 = vmatpush1.msra.mxu0 0.0
        %4865 = vmatprep.subr.mxu0 0.0
        %4866 = vmatpush1.msra.mxu0 0.0
        %4867 = vmatprep.subr.mxu0 0.0
        %4868 = vmatpush1.msra.mxu0 0.0
        %4869 = vmatprep.subr.mxu0 0.0
        %4870 = vmatpush1.msra.mxu0 0.0
        %4871 = vmatprep.subr.mxu0 0.0
        %4872 = vmatpush1.msra.mxu0 0.0
        %4873 = vmatprep.subr.mxu0 0.0
        %4874 = vmatpush1.msra.mxu0 0.0
        %4875 = vmatprep.subr.mxu0 0.0
        %4876 = vmatpush1.msra.mxu0 0.0
        %4877 = vmatprep.subr.mxu0 0.0
        %4878 = vmatpush1.msra.mxu0 0.0
        %4879 = vmatprep.subr.mxu0 0.0
        %4880 = vmatpush1.msra.mxu0 0.0
        %4881 = vmatprep.subr.mxu0 0.0
        %4882 = vmatpush1.msra.mxu0 0.0
        %4883 = vmatprep.subr.mxu0 0.0
        %4884 = vmatpush1.msra.mxu0 0.0
        %4885 = vmatprep.subr.mxu0 0.0
        %4886 = vmatpush1.msra.mxu0 0.0
        %4887 = vmatprep.subr.mxu0 0.0
        %4888 = vmatpush1.msra.mxu0 0.0
        %4889 = vmatprep.subr.mxu0 0.0
        %4890 = vmatpush1.msra.mxu0 0.0
        %4891 = vmatprep.subr.mxu0 0.0
        %4892 = vmatpush1.msra.mxu0 0.0
        %4893 = vmatprep.subr.mxu0 0.0
        %4894 = vmatpush1.msra.mxu0 0.0
        %4895 = vmatprep.subr.mxu0 0.0
        %4896 = vmatpush1.msra.mxu0 0.0
        %4897 = vmatprep.subr.mxu0 0.0
        %4898 = vmatpush1.msra.mxu0 0.0
        %4899 = vmatprep.mubr.f32.mxu0 0.0
        %4900 = vmatmul.mubr.f32.gmra.mrb[0].mxu0 %v4830
        %v4901 = vpop.f32.mrb[0].mxu0
        %v4902 = vadd.f32 0.0, %v4901
        %v4903 = vpop.f32.mrb[0].mxu0
        %v4904 = vadd.f32 0.0, %v4903
        %4905 = vmatprep.mubr.f32.mxu0 0.0
        %4906 = vmatmul.mubr.f32.gmra.mrb[0].mxu0 %v4833
        %v4907 = vpop.f32.mrb[0].mxu0
        %v4908 = vadd.f32 0.0, %v4907
        %v4909 = vpop.f32.mrb[0].mxu0
        %v4910 = vadd.f32 0.0, %v4909
        %4911 = vdwg.mxu0
        %v4912 = vadd.f32 %v4767, %v4902
        %v4913 = vadd.f32 %v4768, %v4904
        %v4914 = vadd.f32 %v4769, %v4908
        %v4915 = vadd.f32 %v4770, %v4910
        %v4916 = vld [vmem:[%s874] sm:$0xff]
        %v4917 = vld [vmem:[%s874 + $0x8] sm:$0xff]
        %4918 = vrot.lane.b32.xlu0 %v4596, 58
        %v4919 = vpop.permute.xlu0 %4918
        %4920 = vrot.lane.b32.xlu0 %v4597, 58
        %v4921 = vpop.permute.xlu0 %4920
        %4922 = vrot.lane.b32.xlu0 %v4598, 58
        %v4923 = vpop.permute.xlu0 %4922
        %4924 = vrot.lane.b32.xlu0 %v4609, 58
        %v4925 = vpop.permute.xlu0 %4924
        %4926 = vrot.lane.b32.xlu0 %v4773, 58
        %v4927 = vpop.permute.xlu0 %4926
        %4928 = vrot.lane.b32.xlu0 %v4772, 58
        %v4929 = vpop.permute.xlu0 %4928
        %4930 = vrot.lane.b32.xlu0 %v4614, 58
        %v4931 = vpop.permute.xlu0 %4930
        %4932 = vrot.lane.b32.xlu0 %v4776, 58
        %v4933 = vpop.permute.xlu0 %4932
        %4934 = vrot.lane.b32.xlu0 %v4775, 58
        %v4935 = vpop.permute.xlu0 %4934
        %4936 = vrot.lane.b32.xlu0 %v4622, 58
        %v4937 = vpop.permute.xlu0 %4936
        %4938 = vrot.lane.b32.xlu0 %v4623, 58
        %v4939 = vpop.permute.xlu0 %4938
        %4940 = vrot.lane.b32.xlu0 %v4621, 58
        %v4941 = vpop.permute.xlu0 %4940
        %4942 = vrot.lane.b32.xlu0 %v4630, 58
        %v4943 = vpop.permute.xlu0 %4942
        %4944 = vrot.lane.b32.xlu0 %v4631, 58
        %v4945 = vpop.permute.xlu0 %4944
        %4946 = vrot.lane.b32.xlu0 %v4629, 58
        %v4947 = vpop.permute.xlu0 %4946
        %v4948 = vsel %vm907, %v4919, %v4921
        %v4949 = vsel %vm907, %v4921, %v4923
        %v4950 = vsel %vm907, %v4925, %v4927
        %v4951 = vsel %vm907, %v4927, %v4929
        %v4952 = vsel %vm907, %v4931, %v4933
        %v4953 = vsel %vm907, %v4933, %v4935
        %v4954 = vsel %vm907, %v4937, %v4939
        %v4955 = vsel %vm907, %v4939, %v4941
        %v4956 = vsel %vm907, %v4943, %v4945
        %v4957 = vsel %vm907, %v4945, %v4947
        %v4969 = vsel %vm331, %v4916, 0
        %v4972 = vsel %vm331, %v4917, 0
        %4974 = vmatprep.subr.mxu0 %v4949
        %4975 = vmatpush1.msra.mxu0 %v4948
        %4976 = vmatprep.subr.mxu0 %v4951
        %4977 = vmatpush1.msra.mxu0 %v4950
        %4978 = vmatprep.subr.mxu0 %v4953
        %4979 = vmatpush1.msra.mxu0 %v4952
        %4980 = vmatprep.subr.mxu0 %v4955
        %4981 = vmatpush1.msra.mxu0 %v4954
        %4982 = vmatprep.subr.mxu0 %v4957
        %4983 = vmatpush1.msra.mxu0 %v4956
        %4984 = vmatprep.subr.mxu0 0.0
        %4985 = vmatpush1.msra.mxu0 0.0
        %4986 = vmatprep.subr.mxu0 0.0
        %4987 = vmatpush1.msra.mxu0 0.0
        %4988 = vmatprep.subr.mxu0 0.0
        %4989 = vmatpush1.msra.mxu0 0.0
        %4990 = vmatprep.subr.mxu0 0.0
        %4991 = vmatpush1.msra.mxu0 0.0
        %4992 = vmatprep.subr.mxu0 0.0
        %4993 = vmatpush1.msra.mxu0 0.0
        %4994 = vmatprep.subr.mxu0 0.0
        %4995 = vmatpush1.msra.mxu0 0.0
        %4996 = vmatprep.subr.mxu0 0.0
        %4997 = vmatpush1.msra.mxu0 0.0
        %4998 = vmatprep.subr.mxu0 0.0
        %4999 = vmatpush1.msra.mxu0 0.0
        %5000 = vmatprep.subr.mxu0 0.0
        %5001 = vmatpush1.msra.mxu0 0.0
        %5002 = vmatprep.subr.mxu0 0.0
        %5003 = vmatpush1.msra.mxu0 0.0
        %5004 = vmatprep.subr.mxu0 0.0
        %5005 = vmatpush1.msra.mxu0 0.0
        %5006 = vmatprep.subr.mxu0 0.0
        %5007 = vmatpush1.msra.mxu0 0.0
        %5008 = vmatprep.subr.mxu0 0.0
        %5009 = vmatpush1.msra.mxu0 0.0
        %5010 = vmatprep.subr.mxu0 0.0
        %5011 = vmatpush1.msra.mxu0 0.0
        %5012 = vmatprep.subr.mxu0 0.0
        %5013 = vmatpush1.msra.mxu0 0.0
        %5014 = vmatprep.subr.mxu0 0.0
        %5015 = vmatpush1.msra.mxu0 0.0
        %5016 = vmatprep.subr.mxu0 0.0
        %5017 = vmatpush1.msra.mxu0 0.0
        %5018 = vmatprep.subr.mxu0 0.0
        %5019 = vmatpush1.msra.mxu0 0.0
        %5020 = vmatprep.subr.mxu0 0.0
        %5021 = vmatpush1.msra.mxu0 0.0
        %5022 = vmatprep.subr.mxu0 0.0
        %5023 = vmatpush1.msra.mxu0 0.0
        %5024 = vmatprep.subr.mxu0 0.0
        %5025 = vmatpush1.msra.mxu0 0.0
        %5026 = vmatprep.subr.mxu0 0.0
        %5027 = vmatpush1.msra.mxu0 0.0
        %5028 = vmatprep.subr.mxu0 0.0
        %5029 = vmatpush1.msra.mxu0 0.0
        %5030 = vmatprep.subr.mxu0 0.0
        %5031 = vmatpush1.msra.mxu0 0.0
        %5032 = vmatprep.subr.mxu0 0.0
        %5033 = vmatpush1.msra.mxu0 0.0
        %5034 = vmatprep.subr.mxu0 0.0
        %5035 = vmatpush1.msra.mxu0 0.0
        %5036 = vmatprep.subr.mxu0 0.0
        %5037 = vmatpush1.msra.mxu0 0.0
        %5038 = vmatprep.mubr.f32.mxu0 0.0
        %5039 = vmatmul.mubr.f32.gmra.mrb[0].mxu0 %v4969
        %v5040 = vpop.f32.mrb[0].mxu0
        %v5041 = vadd.f32 0.0, %v5040
        %v5042 = vpop.f32.mrb[0].mxu0
        %v5043 = vadd.f32 0.0, %v5042
        %5044 = vmatprep.mubr.f32.mxu0 0.0
        %5045 = vmatmul.mubr.f32.gmra.mrb[0].mxu0 %v4972
        %v5046 = vpop.f32.mrb[0].mxu0
        %v5047 = vadd.f32 0.0, %v5046
        %v5048 = vpop.f32.mrb[0].mxu0
        %v5049 = vadd.f32 0.0, %v5048
        %5050 = vdwg.mxu0
        %v5051 = vadd.f32 %v4912, %v5041
        %v5052 = vadd.f32 %v4913, %v5043
        %v5053 = vadd.f32 %v4914, %v5047
        %v5054 = vadd.f32 %v4915, %v5049
        %v5055 = vld [vmem:[%s2] sm:$0xff]
        %v5056 = vld [vmem:[%s2 + $0x8] sm:$0xff]
        %5058 = vset.pattern.permute.xlu0 0
        %5059 = vperm.xlu0 %5058, %v5055
        %v5060 = vpop.permute.xlu0 %5059
        %5063 = vset.pattern.permute.xlu0 0
        %5064 = vperm.xlu0 %5063, %v5056
        %v5065 = vpop.permute.xlu0 %5064
        %v5067 = vadd.f32 %v5051, %v5060
        %v5068 = vadd.f32 %v5052, %v5060
        %v5069 = vadd.f32 %v5053, %v5065
        %v5070 = vadd.f32 %v5054, %v5065
        %v5071 = vmax.f32 %v5067, 0.0
        %v5072 = vmax.f32 %v5068, 0.0
        %v5073 = vmax.f32 %v5069, 0.0
        %v5074 = vmax.f32 %v5070, 0.0
        %v5075 = vld [vmem:[%s3 + $0xa] sm:$0x3]
        %v5077 = vlaneseq
        %v5078 = vshrl.u32 %v5077, 7
        %v5079 = vsub.s32 0, %v5078
        %v5080 = vrot.slane %v5075, %v5079
        %v5081 = vlaneseq
        %v5082 = vshrl.u32 %v5081, 7
        %v5083 = vsub.s32 1, %v5082
        %v5084 = vrot.slane %v5075, %v5083
        %v5087 = vmul.f32 %v5071, %v5080
        %v5088 = vmul.f32 %v5072, %v5084
        %v5089 = vmul.f32 %v5073, %v5080
        %v5090 = vmul.f32 %v5074, %v5084
        %5091 = vst [vmem:[%s228 + $0x58] sm:$0xff] %v5087
        %5092 = vst [vmem:[%s228 + $0x60] sm:$0xff] %v5088
        %5093 = vst [vmem:[%s228 + $0xc8] sm:$0xff] %v5089
        %5094 = vst [vmem:[%s228 + $0xd0] sm:$0xff] %v5090
        %s5095 = sand.u32 %s119, 1
        %s5096 = scalar_lea.sflag [#allocation4], %s5095
        %s5097 = sand.u32 %s119, 1
        %s5098 = smul.addr %s5097, 224
        %s5099 = scalar_lea.vmem [#allocation7], %s5098
        // Predicated region
        $region45: #{tpu_custom_call.1} parent=35 // pred_check
          %p5100 = pneg %p129
        $region46: #{tpu_custom_call.1} parent=35 // pred_check_branch
          %5102 = sbr.rel (%p5100) target = $region48
        $region47: #{tpu_custom_call.1} parent=35 // pred_region
          %s5104 = ssub.s32 3584, 3584
          %5105 = vsyncadd %s5096, %s5104
          %s5106 = smul.addr %s22, 28
          %s5107 = smul.addr %s5106, 128
          %s5108 = scalar_lea.hbm %s4, %s5107
          %s5109 = sshll.u32 %s5099, 4
          %s5110 = int_to_ptr.vmem [resolvable:$true] %s5109
          %5115 = dma.vmem_to_hbm [thread:$0]  %s5110, 3584, %s5108, %s5096, 1792, 1792, 112
        $region48: #{tpu_custom_call.1} parent=35 // pred_fallthru
          _
      $region36: #{tpu_custom_call.1} parent=5 // pred_fallthru
        _
      %p5116 = scmp.le.s32.totalorder 2, %s17
      // Predicated region
      $region49: #{tpu_custom_call.1} parent=5 // pred_check
        %p5117 = pneg %p5116
      $region50: #{tpu_custom_call.1} parent=5 // pred_check_branch
        %5119 = sbr.rel (%p5117) target = $region52
      $region51: #{tpu_custom_call.1} parent=5 // pred_region
        %s5120 = ssub.s32 %s17, 2
        // Predicated region
        $region53: #{tpu_custom_call.1} parent=51 // pred_check
          %p5121 = pneg %p135
        $region54: #{tpu_custom_call.1} parent=51 // pred_check_branch
          %5123 = sbr.rel (%p5121) target = $region56
        $region55: #{tpu_custom_call.1} parent=51 // pred_region
          %s5124 = sand.u32 %s120, 1
          %s5125 = scalar_lea.sflag [#allocation4], %s5124
          %s5126 = sand.u32 %s120, 1
          %s5127 = smul.addr %s5126, 224
          %s5128 = scalar_lea.vmem [#allocation7], %s5127
          %5129 = dma.done %s5125, 3584
        $region56: #{tpu_custom_call.1} parent=51 // pred_fallthru
          _
      $region52: #{tpu_custom_call.1} parent=5 // pred_fallthru
        _
    $region6: #{tpu_custom_call.1} parent=1 // loop_footer
      %s21 = sadd.s32 1, %s17
    $region7: #{tpu_custom_call.1} parent=1 // loop_footer_branch
      %16 = sbr.rel target = $region3
    $region8: #{tpu_custom_call.1} parent=1 // loop_exit
      _
    %5130 = vsyncpa [#allocation3], 1
    %s5131 = scalar_lea.sflag [#allocation3], 1
    %5132 = vsyncpa %s5131, 1
    %5133 = vsyncpa [#allocation6], 1
    %5134 = vsyncpa [#allocation4], 1
    %s5135 = scalar_lea.sflag [#allocation4], 1
    %5136 = vsyncpa %s5135, 1

</llo_original>
